<compile_context>
chip_gen: v5e
topology: v5e:2x2
jax: 0.10.0
libtpu: 0.0.40
codegen_flags: <defaults>
</compile_context>

<pallas_src>
import functools
import numpy as np
import jax
import jax.numpy as jnp
from jax.experimental import pallas as pl
from jax.experimental.pallas import tpu as pltpu

# ----------------------------- model config ---------------------------------
IN_XYZ, IN_DIR, IN_A, IN_T = 3, 3, 48, 16          # input split sizes
HASH_XYZ, HASH_DIR = 16, 16                        # xyz feature / SH deg-4 dims
L_LEVELS, F_FEAT, LOG2_T, N_MIN = 16, 2, 19, 16    # hash-grid config
SCALE = 0.5
TABLE_T = 1 << LOG2_T
PER_LEVEL_SCALE = float(np.exp(np.log(2048 * SCALE / N_MIN) / (L_LEVELS - 1)))

TN = 512          # points per Pallas grid step (multiple of 128)
PACK_C = 128      # lane-dense packed input width: 32 + 16 + 48 + 16 + pad
OUT_C = 16        # lane-dense output width: 9 used + 7 pad


# --------------------------- shared math helpers -----------------------------
def _softplus(x):
    # matches torch.nn.Softplus(beta=1, threshold=20)
    return jnp.where(x > 20.0, x, jnp.log(1.0 + jnp.exp(jnp.minimum(x, 20.0))))


def _sigmoid(x):
    # tanh form: numerically stable and maps to the EUP (no divide on VALU)
    return 0.5 * jnp.tanh(0.5 * x) + 0.5


def _sh_deg4(d):
    # tcnn SphericalHarmonics degree-4 basis; d is the normalized direction.
    x, y, z = d[:, 0:1], d[:, 1:2], d[:, 2:3]
    xx, yy, zz = x * x, y * y, z * z
    xy, yz, xz = x * y, y * z, x * z
    return jnp.concatenate([
        jnp.full_like(x, 0.28209479177387814),
        -0.48860251190291987 * y,
        0.48860251190291987 * z,
        -0.48860251190291987 * x,
        1.0925484305920792 * xy,
        -1.0925484305920792 * yz,
        0.94617469575755997 * zz - 0.31539156525252005,
        -1.0925484305920792 * xz,
        0.54627421529603959 * (xx - yy),
        0.59004358992664352 * y * (yy - 3.0 * xx),
        2.8906114426405538 * xy * z,
        0.45704579946446572 * y * (1.0 - 5.0 * zz),
        0.3731763325901154 * z * (5.0 * zz - 3.0),
        0.45704579946446572 * x * (1.0 - 5.0 * zz),
        1.4453057213202769 * z * (xx - yy),
        0.59004358992664352 * x * (3.0 * yy - xx),
    ], axis=-1)


# ------------------- hash-grid encoding (plain-JAX glue) --------------------
def hash_grid_encode(x01, tables):
    """x01: [N,3] in [0,1]; tables: [L, T, F]. Returns [N, L*F]."""
    primes = jnp.array([1, 2654435761, 805459861], dtype=jnp.uint32)
    feats = []
    for lvl in range(L_LEVELS):
        scale = N_MIN * (PER_LEVEL_SCALE ** lvl) - 1.0
        pos = x01 * scale + 0.5
        pos0f = jnp.floor(pos)
        frac = pos - pos0f
        pos0 = pos0f.astype(jnp.uint32)
        acc = jnp.zeros((x01.shape[0], F_FEAT), jnp.float32)
        for c in range(8):
            off = np.array([(c >> 0) & 1, (c >> 1) & 1, (c >> 2) & 1],
                           dtype=np.uint32)
            corner = pos0 + off[None, :]
            hashed = corner * primes[None, :]
            idx = (hashed[:, 0] ^ hashed[:, 1] ^ hashed[:, 2]) % jnp.uint32(TABLE_T)
            w = jnp.prod(jnp.where(off[None, :] == 1, frac, 1.0 - frac),
                         axis=-1, keepdims=True)
            acc = acc + w * tables[lvl][idx]
        feats.append(acc)
    return jnp.concatenate(feats, axis=-1)


# ------------------------------ Pallas kernel --------------------------------
def nerf_kernel(pk_ref,
                wh1_ref, wh2_ref,
                wde_x_ref, wde_da_ref, bde_ref,
                wsr1_ref, bsr1_ref,
                wte1_x_ref, wte1_t_ref, bte1_ref,
                wte2_ref, bte2_ref, wte3_ref, bte3_ref,
                w_out_sr_ref, w_out_xf_ref, w_out_te_ref, b_out_ref,
                out_ref):
    f32 = jnp.float32
    bf16 = jnp.bfloat16
    dot = functools.partial(jnp.dot, preferred_element_type=f32)

    pk = pk_ref[...]                         # [TN, 128] bf16 packed input
    gf = pk[:, 0:32]                         # hash-grid features
    sha = pk[:, 32:96]                       # SH(16) ++ appearance(48)
    tt = pk[:, 96:112]                       # transient embedding

    # xyz_encoder MLP (tcnn FullyFusedMLP 32 -> 64 ReLU -> 16, no bias)
    h = jnp.maximum(dot(gf, wh1_ref[...]), 0.0)             # [TN, 64] f32
    xyz_feat = dot(h.astype(bf16), wh2_ref[...])            # [TN, 16] f32
    xf_b = xyz_feat.astype(bf16)

    # dir_encoding: Linear(16+16+48, 64) + ReLU  (concat removed: weight split)
    de = jnp.maximum(dot(xf_b, wde_x_ref[...]) + dot(sha, wde_da_ref[...])
                     + bde_ref[...], 0.0)                    # [TN, 64] f32

    # static_rgb hidden: Linear(64,64) + Sigmoid
    sr = _sigmoid(dot(de.astype(bf16), wsr1_ref[...]) + bsr1_ref[...])

    # transient trunk: 3 x (Linear + ReLU)  (concat removed: weight split)
    te = jnp.maximum(dot(xf_b, wte1_x_ref[...]) + dot(tt, wte1_t_ref[...])
                     + bte1_ref[...], 0.0)
    te = jnp.maximum(dot(te.astype(bf16), wte2_ref[...]) + bte2_ref[...], 0.0)
    te = jnp.maximum(dot(te.astype(bf16), wte3_ref[...]) + bte3_ref[...], 0.0)

    # fused output heads -> lane-dense [TN, 16] pre-activation slab:
    #   cols 0:3 static_rgb (sigmoid), 3 static_sigma (softplus),
    #   4:7 transient_rgb (sigmoid), 7 transient_sigma, 8 transient_beta
    #   (softplus), 9:16 padding (zeroed).
    pre = (dot(sr.astype(bf16), w_out_sr_ref[...])
           + dot(xf_b, w_out_xf_ref[...])
           + dot(te.astype(bf16), w_out_te_ref[...])
           + b_out_ref[...])                                 # [TN, 16] f32
    col = jax.lax.broadcasted_iota(jnp.int32, pre.shape, 1)
    is_sig = (col < 3) | ((col >= 4) & (col < 7))
    out = jnp.where(is_sig, _sigmoid(pre), _softplus(pre))
    out_ref[...] = jnp.where(col < 9, out, 0.0)


# ------------------------------- wrapper -------------------------------------
def nerf_forward_pallas(x, params):
    N = x.shape[0]
    bf16 = jnp.bfloat16

    input_xyz = x[:, :IN_XYZ]
    input_dir = x[:, IN_XYZ:IN_XYZ + IN_DIR]
    input_a = x[:, IN_XYZ + IN_DIR:IN_XYZ + IN_DIR + IN_A]
    input_t = x[:, IN_XYZ + IN_DIR + IN_A:]

    # density(): (x - xyz_min) / (xyz_max - xyz_min), then hash-grid encode.
    xyz01 = (input_xyz + SCALE) / (2.0 * SCALE)
    grid_feat = hash_grid_encode(xyz01, params["hash_tables"])   # [N, 32]

    # direction: normalize + SH degree-4 (hoisted out of the kernel)
    d = input_dir * jax.lax.rsqrt(
        jnp.sum(input_dir * input_dir, axis=-1, keepdims=True))
    sh = _sh_deg4(d)                                             # [N, 16]

    # one lane-dense packed input: [gf 32 | sh 16 | a 48 | t 16 | pad 16]
    pad = jnp.zeros((N, PACK_C - (32 + 16 + IN_A + IN_T)), jnp.float32)
    packed = jnp.concatenate([grid_feat, sh, input_a, input_t, pad],
                             axis=-1).astype(bf16)               # [N, 128]

    n_pad = (-N) % TN
    if n_pad:
        packed = jnp.concatenate(
            [packed, jnp.zeros((n_pad, PACK_C), bf16)], axis=0)
    Np = N + n_pad

    # ---- weight prep (done once, outside the kernel; bf16 matmul operands) --
    p = params
    wh1 = p["wh1"].astype(bf16)                  # [32, 64]
    wh2 = p["wh2"].astype(bf16)                  # [64, 16]
    wde_x = p["wde"][:HASH_XYZ].astype(bf16)     # [16, 64]  (xyz_feat rows)
    wde_da = p["wde"][HASH_XYZ:].astype(bf16)    # [64, 64]  (sh + a rows)
    bde = p["bde"]
    wsr1 = p["wsr1"].astype(bf16)
    bsr1 = p["bsr1"]
    wte1_x = p["wte1"][:HASH_XYZ].astype(bf16)   # [16, 64]
    wte1_t = p["wte1"][HASH_XYZ:].astype(bf16)   # [16, 64]
    bte1 = p["bte1"]
    wte2 = p["wte2"].astype(bf16)
    bte2 = p["bte2"]
    wte3 = p["wte3"].astype(bf16)
    bte3 = p["bte3"]

    # fused, lane-dense output heads (block-diagonal by construction)
    w_out_sr = jnp.zeros((64, OUT_C), jnp.float32).at[:, 0:3].set(p["wsr2"])
    w_out_xf = jnp.zeros((HASH_XYZ, OUT_C), jnp.float32).at[:, 3:4].set(p["wss"])
    w_out_te = jnp.zeros((64, OUT_C), jnp.float32).at[:, 4:9].set(p["wth"])
    b_out = (jnp.zeros((1, OUT_C), jnp.float32)
             .at[:, 0:3].set(p["bsr2"])
             .at[:, 3:4].set(p["bss"])
             .at[:, 4:9].set(p["bth"]))
    w_out_sr = w_out_sr.astype(bf16)
    w_out_xf = w_out_xf.astype(bf16)
    w_out_te = w_out_te.astype(bf16)

    weights = [wh1, wh2, wde_x, wde_da, bde, wsr1, bsr1,
               wte1_x, wte1_t, bte1, wte2, bte2, wte3, bte3,
               w_out_sr, w_out_xf, w_out_te, b_out]

    row_spec = pl.BlockSpec((TN, PACK_C), lambda i: (i, 0))
    full_spec = lambda w: pl.BlockSpec(w.shape, lambda i: (0, 0))

    out = pl.pallas_call(
        nerf_kernel,
        out_shape=jax.ShapeDtypeStruct((Np, OUT_C), jnp.float32),
        grid=(Np // TN,),
        in_specs=[row_spec] + [full_spec(w) for w in weights],
        out_specs=pl.BlockSpec((TN, OUT_C), lambda i: (i, 0)),
        compiler_params=pltpu.CompilerParams(dimension_semantics=("parallel",)),
    )(packed, *weights)
    return out[:N, :9]


# --------------------------- pure-JAX reference ------------------------------
def nerf_forward_ref(x, params):
    input_xyz = x[:, :IN_XYZ]
    input_dir = x[:, IN_XYZ:IN_XYZ + IN_DIR]
    input_a = x[:, IN_XYZ + IN_DIR:IN_XYZ + IN_DIR + IN_A]
    input_t = x[:, IN_XYZ + IN_DIR + IN_A:]

    d = input_dir / jnp.sqrt(jnp.sum(input_dir ** 2, -1, keepdims=True))
    sh = _sh_deg4(d)

    xyz01 = (input_xyz + SCALE) / (2.0 * SCALE)
    gf = hash_grid_encode(xyz01, params["hash_tables"])

    p = params
    h = jnp.maximum(gf @ p["wh1"], 0.0)
    xyz_feat = h @ p["wh2"]
    static_sigma = _softplus(xyz_feat @ p["wss"] + p["bss"])
    de_in = jnp.concatenate([xyz_feat, sh, input_a], axis=-1)
    de = jnp.maximum(de_in @ p["wde"] + p["bde"], 0.0)
    sr = _sigmoid(de @ p["wsr1"] + p["bsr1"])
    static_rgb = _sigmoid(sr @ p["wsr2"] + p["bsr2"])
    te = jnp.concatenate([xyz_feat, input_t], axis=-1)
    te = jnp.maximum(te @ p["wte1"] + p["bte1"], 0.0)
    te = jnp.maximum(te @ p["wte2"] + p["bte2"], 0.0)
    te = jnp.maximum(te @ p["wte3"] + p["bte3"], 0.0)
    th = te @ p["wth"] + p["bth"]
    return jnp.concatenate(
        [static_rgb, static_sigma, _sigmoid(th[:, 0:3]), _softplus(th[:, 3:5])],
        axis=-1)


# ----------------------------- parameter init --------------------------------
def init_params(key):
    ks = jax.random.split(key, 24)

    def lin(kw, kb, fan_in, fan_out):
        bound = 1.0 / np.sqrt(fan_in)
        w = jax.random.uniform(kw, (fan_in, fan_out), jnp.float32, -bound, bound)
        b = jax.random.uniform(kb, (1, fan_out), jnp.float32, -bound, bound)
        return w, b

    p = {}
    p["hash_tables"] = jax.random.uniform(
        ks[0], (L_LEVELS, TABLE_T, F_FEAT), jnp.float32, -1e-4, 1e-4)
    p["wh1"] = jax.random.uniform(ks[1], (L_LEVELS * F_FEAT, 64), jnp.float32,
                                  -1.0 / np.sqrt(32), 1.0 / np.sqrt(32))
    p["wh2"] = jax.random.uniform(ks[2], (64, HASH_XYZ), jnp.float32,
                                  -1.0 / np.sqrt(64), 1.0 / np.sqrt(64))
    p["wss"], p["bss"] = lin(ks[3], ks[4], HASH_XYZ, 1)
    p["wde"], p["bde"] = lin(ks[5], ks[6], HASH_XYZ + HASH_DIR + IN_A, 64)
    p["wsr1"], p["bsr1"] = lin(ks[7], ks[8], 64, 64)
    p["wsr2"], p["bsr2"] = lin(ks[9], ks[10], 64, 3)
    p["wte1"], p["bte1"] = lin(ks[11], ks[12], HASH_XYZ + IN_T, 64)
    p["wte2"], p["bte2"] = lin(ks[13], ks[14], 64, 64)
    p["wte3"], p["bte3"] = lin(ks[15], ks[16], 64, 64)
    wtr, btr = lin(ks[17], ks[18], 64, 3)   # transient_rgb
    wts, bts = lin(ks[19], ks[20], 64, 1)   # transient_sigma
    wtb, btb = lin(ks[21], ks[22], 64, 1)   # transient_beta
    p["wth"] = jnp.concatenate([wtr, wts, wtb], axis=1)
    p["bth"] = jnp.concatenate([btr, bts, btb], axis=1)
    return p


# --------------------------------- main ---------------------------------------
if __name__ == "__main__":
    key = jax.random.PRNGKey(0)
    kp, kx, kd, ka, kt = jax.random.split(key, 5)

    N = 1024  # 2 grid steps of TN=512 points
    params = init_params(kp)

    xyz = jax.random.uniform(kx, (N, IN_XYZ), jnp.float32, -SCALE, SCALE)
    dirs = jax.random.normal(kd, (N, IN_DIR), jnp.float32)
    app = jax.random.normal(ka, (N, IN_A), jnp.float32)
    tra = jax.random.normal(kt, (N, IN_T), jnp.float32)
    x = jnp.concatenate([xyz, dirs, app, tra], axis=-1)   # [N, 70]

    fwd = jax.jit(nerf_forward_pallas)
    out = jax.block_until_ready(fwd(x, params))
    ref = jax.block_until_ready(nerf_forward_ref(x, params))

    assert out.shape == (N, 9), out.shape
    # bf16 MXU operands with f32 accumulation -> loosened tolerance vs f32 ref.
    np.testing.assert_allclose(np.asarray(out), np.asarray(ref),
                               rtol=2e-2, atol=2e-2)
    print("KERNEL_OK")
</pallas_src>

<mosaic_0001>
module attributes {stable_mosaic.version = 11 : i64} {
  func.func @nerf_kernel(%arg0: i32, %arg1: memref<512x128xbf16, #tpu.memory_space<vmem>>, %arg2: memref<32x64xbf16, #tpu.memory_space<vmem>>, %arg3: memref<64x16xbf16, #tpu.memory_space<vmem>>, %arg4: memref<16x64xbf16, #tpu.memory_space<vmem>>, %arg5: memref<64x64xbf16, #tpu.memory_space<vmem>>, %arg6: memref<1x64xf32, #tpu.memory_space<vmem>>, %arg7: memref<64x64xbf16, #tpu.memory_space<vmem>>, %arg8: memref<1x64xf32, #tpu.memory_space<vmem>>, %arg9: memref<16x64xbf16, #tpu.memory_space<vmem>>, %arg10: memref<16x64xbf16, #tpu.memory_space<vmem>>, %arg11: memref<1x64xf32, #tpu.memory_space<vmem>>, %arg12: memref<64x64xbf16, #tpu.memory_space<vmem>>, %arg13: memref<1x64xf32, #tpu.memory_space<vmem>>, %arg14: memref<64x64xbf16, #tpu.memory_space<vmem>>, %arg15: memref<1x64xf32, #tpu.memory_space<vmem>>, %arg16: memref<64x16xbf16, #tpu.memory_space<vmem>>, %arg17: memref<16x16xbf16, #tpu.memory_space<vmem>>, %arg18: memref<64x16xbf16, #tpu.memory_space<vmem>>, %arg19: memref<1x16xf32, #tpu.memory_space<vmem>>, %arg20: memref<512x16xf32, #tpu.memory_space<vmem>>) attributes {dimension_semantics = [#tpu.dimension_semantics<parallel>], iteration_bounds = array<i64: 2>, scalar_prefetch = 0 : i64, scratch_operands = 0 : i64, tpu.core_type = #tpu.core_type<tc>, window_params = [{transform_indices = @transform_0, window_bounds = array<i64: 512, 128>}, {pipeline_mode = #tpu.pipeline_mode<synchronous>, transform_indices = @transform_1, window_bounds = array<i64: 32, 64>}, {pipeline_mode = #tpu.pipeline_mode<synchronous>, transform_indices = @transform_2, window_bounds = array<i64: 64, 16>}, {pipeline_mode = #tpu.pipeline_mode<synchronous>, transform_indices = @transform_3, window_bounds = array<i64: 16, 64>}, {pipeline_mode = #tpu.pipeline_mode<synchronous>, transform_indices = @transform_4, window_bounds = array<i64: 64, 64>}, {pipeline_mode = #tpu.pipeline_mode<synchronous>, transform_indices = @transform_5, window_bounds = array<i64: 1, 64>}, {pipeline_mode = #tpu.pipeline_mode<synchronous>, transform_indices = @transform_6, window_bounds = array<i64: 64, 64>}, {pipeline_mode = #tpu.pipeline_mode<synchronous>, transform_indices = @transform_7, window_bounds = array<i64: 1, 64>}, {pipeline_mode = #tpu.pipeline_mode<synchronous>, transform_indices = @transform_8, window_bounds = array<i64: 16, 64>}, {pipeline_mode = #tpu.pipeline_mode<synchronous>, transform_indices = @transform_9, window_bounds = array<i64: 16, 64>}, {pipeline_mode = #tpu.pipeline_mode<synchronous>, transform_indices = @transform_10, window_bounds = array<i64: 1, 64>}, {pipeline_mode = #tpu.pipeline_mode<synchronous>, transform_indices = @transform_11, window_bounds = array<i64: 64, 64>}, {pipeline_mode = #tpu.pipeline_mode<synchronous>, transform_indices = @transform_12, window_bounds = array<i64: 1, 64>}, {pipeline_mode = #tpu.pipeline_mode<synchronous>, transform_indices = @transform_13, window_bounds = array<i64: 64, 64>}, {pipeline_mode = #tpu.pipeline_mode<synchronous>, transform_indices = @transform_14, window_bounds = array<i64: 1, 64>}, {pipeline_mode = #tpu.pipeline_mode<synchronous>, transform_indices = @transform_15, window_bounds = array<i64: 64, 16>}, {pipeline_mode = #tpu.pipeline_mode<synchronous>, transform_indices = @transform_16, window_bounds = array<i64: 16, 16>}, {pipeline_mode = #tpu.pipeline_mode<synchronous>, transform_indices = @transform_17, window_bounds = array<i64: 64, 16>}, {pipeline_mode = #tpu.pipeline_mode<synchronous>, transform_indices = @transform_18, window_bounds = array<i64: 1, 16>}, {transform_indices = @transform_19, window_bounds = array<i64: 512, 16>}]} {
    %c0 = arith.constant 0 : index
    %c0_0 = arith.constant 0 : index
    %0 = vector.load %arg1[%c0, %c0_0] : memref<512x128xbf16, #tpu.memory_space<vmem>>, vector<512x128xbf16>
    %1 = vector.extract_strided_slice %0 {offsets = [0, 0], sizes = [512, 32], strides = [1, 1]} : vector<512x128xbf16> to vector<512x32xbf16>
    %2 = vector.extract_strided_slice %0 {offsets = [0, 32], sizes = [512, 64], strides = [1, 1]} : vector<512x128xbf16> to vector<512x64xbf16>
    %3 = vector.extract_strided_slice %0 {offsets = [0, 96], sizes = [512, 16], strides = [1, 1]} : vector<512x128xbf16> to vector<512x16xbf16>
    %c0_1 = arith.constant 0 : index
    %c0_2 = arith.constant 0 : index
    %4 = vector.load %arg2[%c0_1, %c0_2] : memref<32x64xbf16, #tpu.memory_space<vmem>>, vector<32x64xbf16>
    %cst = arith.constant dense<0.000000e+00> : vector<512x64xf32>
    %5 = tpu.matmul %1, %4, %cst {dimension_numbers = #tpu.dot_dimension_numbers<[1], [0], [0], [1], [0, 0, 1, 1], [], []>} : vector<512x32xbf16>, vector<32x64xbf16>, vector<512x64xf32> -> vector<512x64xf32>
    %cst_3 = arith.constant 0.000000e+00 : f32
    %6 = vector.broadcast %cst_3 : f32 to vector<512x64xf32>
    %7 = arith.maximumf %5, %6 : vector<512x64xf32>
    %8 = arith.truncf %7 : vector<512x64xf32> to vector<512x64xbf16>
    %c0_4 = arith.constant 0 : index
    %c0_5 = arith.constant 0 : index
    %9 = vector.load %arg3[%c0_4, %c0_5] : memref<64x16xbf16, #tpu.memory_space<vmem>>, vector<64x16xbf16>
    %cst_6 = arith.constant dense<0.000000e+00> : vector<512x16xf32>
    %10 = tpu.matmul %8, %9, %cst_6 {dimension_numbers = #tpu.dot_dimension_numbers<[1], [0], [0], [1], [0, 0, 1, 1], [], []>} : vector<512x64xbf16>, vector<64x16xbf16>, vector<512x16xf32> -> vector<512x16xf32>
    %11 = arith.truncf %10 : vector<512x16xf32> to vector<512x16xbf16>
    %c0_7 = arith.constant 0 : index
    %c0_8 = arith.constant 0 : index
    %12 = vector.load %arg4[%c0_7, %c0_8] : memref<16x64xbf16, #tpu.memory_space<vmem>>, vector<16x64xbf16>
    %cst_9 = arith.constant dense<0.000000e+00> : vector<512x64xf32>
    %13 = tpu.matmul %11, %12, %cst_9 {dimension_numbers = #tpu.dot_dimension_numbers<[1], [0], [0], [1], [0, 0, 1, 1], [], []>} : vector<512x16xbf16>, vector<16x64xbf16>, vector<512x64xf32> -> vector<512x64xf32>
    %c0_10 = arith.constant 0 : index
    %c0_11 = arith.constant 0 : index
    %14 = vector.load %arg5[%c0_10, %c0_11] : memref<64x64xbf16, #tpu.memory_space<vmem>>, vector<64x64xbf16>
    %cst_12 = arith.constant dense<0.000000e+00> : vector<512x64xf32>
    %15 = tpu.matmul %2, %14, %cst_12 {dimension_numbers = #tpu.dot_dimension_numbers<[1], [0], [0], [1], [0, 0, 1, 1], [], []>} : vector<512x64xbf16>, vector<64x64xbf16>, vector<512x64xf32> -> vector<512x64xf32>
    %16 = arith.addf %13, %15 : vector<512x64xf32>
    %c0_13 = arith.constant 0 : index
    %c0_14 = arith.constant 0 : index
    %17 = vector.load %arg6[%c0_13, %c0_14] : memref<1x64xf32, #tpu.memory_space<vmem>>, vector<1x64xf32>
    %18 = vector.broadcast %17 : vector<1x64xf32> to vector<512x64xf32>
    %19 = arith.addf %16, %18 : vector<512x64xf32>
    %cst_15 = arith.constant 0.000000e+00 : f32
    %20 = vector.broadcast %cst_15 : f32 to vector<512x64xf32>
    %21 = arith.maximumf %19, %20 : vector<512x64xf32>
    %22 = arith.truncf %21 : vector<512x64xf32> to vector<512x64xbf16>
    %c0_16 = arith.constant 0 : index
    %c0_17 = arith.constant 0 : index
    %23 = vector.load %arg7[%c0_16, %c0_17] : memref<64x64xbf16, #tpu.memory_space<vmem>>, vector<64x64xbf16>
    %cst_18 = arith.constant dense<0.000000e+00> : vector<512x64xf32>
    %24 = tpu.matmul %22, %23, %cst_18 {dimension_numbers = #tpu.dot_dimension_numbers<[1], [0], [0], [1], [0, 0, 1, 1], [], []>} : vector<512x64xbf16>, vector<64x64xbf16>, vector<512x64xf32> -> vector<512x64xf32>
    %c0_19 = arith.constant 0 : index
    %c0_20 = arith.constant 0 : index
    %25 = vector.load %arg8[%c0_19, %c0_20] : memref<1x64xf32, #tpu.memory_space<vmem>>, vector<1x64xf32>
    %26 = vector.broadcast %25 : vector<1x64xf32> to vector<512x64xf32>
    %27 = arith.addf %24, %26 : vector<512x64xf32>
    %cst_21 = arith.constant 5.000000e-01 : f32
    %28 = vector.broadcast %cst_21 : f32 to vector<512x64xf32>
    %29 = arith.mulf %28, %27 : vector<512x64xf32>
    %30 = math.tanh %29 : vector<512x64xf32>
    %cst_22 = arith.constant 5.000000e-01 : f32
    %31 = vector.broadcast %cst_22 : f32 to vector<512x64xf32>
    %32 = arith.mulf %31, %30 : vector<512x64xf32>
    %cst_23 = arith.constant 5.000000e-01 : f32
    %33 = vector.broadcast %cst_23 : f32 to vector<512x64xf32>
    %34 = arith.addf %32, %33 : vector<512x64xf32>
    %c0_24 = arith.constant 0 : index
    %c0_25 = arith.constant 0 : index
    %35 = vector.load %arg9[%c0_24, %c0_25] : memref<16x64xbf16, #tpu.memory_space<vmem>>, vector<16x64xbf16>
    %cst_26 = arith.constant dense<0.000000e+00> : vector<512x64xf32>
    %36 = tpu.matmul %11, %35, %cst_26 {dimension_numbers = #tpu.dot_dimension_numbers<[1], [0], [0], [1], [0, 0, 1, 1], [], []>} : vector<512x16xbf16>, vector<16x64xbf16>, vector<512x64xf32> -> vector<512x64xf32>
    %c0_27 = arith.constant 0 : index
    %c0_28 = arith.constant 0 : index
    %37 = vector.load %arg10[%c0_27, %c0_28] : memref<16x64xbf16, #tpu.memory_space<vmem>>, vector<16x64xbf16>
    %cst_29 = arith.constant dense<0.000000e+00> : vector<512x64xf32>
    %38 = tpu.matmul %3, %37, %cst_29 {dimension_numbers = #tpu.dot_dimension_numbers<[1], [0], [0], [1], [0, 0, 1, 1], [], []>} : vector<512x16xbf16>, vector<16x64xbf16>, vector<512x64xf32> -> vector<512x64xf32>
    %39 = arith.addf %36, %38 : vector<512x64xf32>
    %c0_30 = arith.constant 0 : index
    %c0_31 = arith.constant 0 : index
    %40 = vector.load %arg11[%c0_30, %c0_31] : memref<1x64xf32, #tpu.memory_space<vmem>>, vector<1x64xf32>
    %41 = vector.broadcast %40 : vector<1x64xf32> to vector<512x64xf32>
    %42 = arith.addf %39, %41 : vector<512x64xf32>
    %cst_32 = arith.constant 0.000000e+00 : f32
    %43 = vector.broadcast %cst_32 : f32 to vector<512x64xf32>
    %44 = arith.maximumf %42, %43 : vector<512x64xf32>
    %45 = arith.truncf %44 : vector<512x64xf32> to vector<512x64xbf16>
    %c0_33 = arith.constant 0 : index
    %c0_34 = arith.constant 0 : index
    %46 = vector.load %arg12[%c0_33, %c0_34] : memref<64x64xbf16, #tpu.memory_space<vmem>>, vector<64x64xbf16>
    %cst_35 = arith.constant dense<0.000000e+00> : vector<512x64xf32>
    %47 = tpu.matmul %45, %46, %cst_35 {dimension_numbers = #tpu.dot_dimension_numbers<[1], [0], [0], [1], [0, 0, 1, 1], [], []>} : vector<512x64xbf16>, vector<64x64xbf16>, vector<512x64xf32> -> vector<512x64xf32>
    %c0_36 = arith.constant 0 : index
    %c0_37 = arith.constant 0 : index
    %48 = vector.load %arg13[%c0_36, %c0_37] : memref<1x64xf32, #tpu.memory_space<vmem>>, vector<1x64xf32>
    %49 = vector.broadcast %48 : vector<1x64xf32> to vector<512x64xf32>
    %50 = arith.addf %47, %49 : vector<512x64xf32>
    %cst_38 = arith.constant 0.000000e+00 : f32
    %51 = vector.broadcast %cst_38 : f32 to vector<512x64xf32>
    %52 = arith.maximumf %50, %51 : vector<512x64xf32>
    %53 = arith.truncf %52 : vector<512x64xf32> to vector<512x64xbf16>
    %c0_39 = arith.constant 0 : index
    %c0_40 = arith.constant 0 : index
    %54 = vector.load %arg14[%c0_39, %c0_40] : memref<64x64xbf16, #tpu.memory_space<vmem>>, vector<64x64xbf16>
    %cst_41 = arith.constant dense<0.000000e+00> : vector<512x64xf32>
    %55 = tpu.matmul %53, %54, %cst_41 {dimension_numbers = #tpu.dot_dimension_numbers<[1], [0], [0], [1], [0, 0, 1, 1], [], []>} : vector<512x64xbf16>, vector<64x64xbf16>, vector<512x64xf32> -> vector<512x64xf32>
    %c0_42 = arith.constant 0 : index
    %c0_43 = arith.constant 0 : index
    %56 = vector.load %arg15[%c0_42, %c0_43] : memref<1x64xf32, #tpu.memory_space<vmem>>, vector<1x64xf32>
    %57 = vector.broadcast %56 : vector<1x64xf32> to vector<512x64xf32>
    %58 = arith.addf %55, %57 : vector<512x64xf32>
    %cst_44 = arith.constant 0.000000e+00 : f32
    %59 = vector.broadcast %cst_44 : f32 to vector<512x64xf32>
    %60 = arith.maximumf %58, %59 : vector<512x64xf32>
    %61 = arith.truncf %34 : vector<512x64xf32> to vector<512x64xbf16>
    %c0_45 = arith.constant 0 : index
    %c0_46 = arith.constant 0 : index
    %62 = vector.load %arg16[%c0_45, %c0_46] : memref<64x16xbf16, #tpu.memory_space<vmem>>, vector<64x16xbf16>
    %cst_47 = arith.constant dense<0.000000e+00> : vector<512x16xf32>
    %63 = tpu.matmul %61, %62, %cst_47 {dimension_numbers = #tpu.dot_dimension_numbers<[1], [0], [0], [1], [0, 0, 1, 1], [], []>} : vector<512x64xbf16>, vector<64x16xbf16>, vector<512x16xf32> -> vector<512x16xf32>
    %c0_48 = arith.constant 0 : index
    %c0_49 = arith.constant 0 : index
    %64 = vector.load %arg17[%c0_48, %c0_49] : memref<16x16xbf16, #tpu.memory_space<vmem>>, vector<16x16xbf16>
    %cst_50 = arith.constant dense<0.000000e+00> : vector<512x16xf32>
    %65 = tpu.matmul %11, %64, %cst_50 {dimension_numbers = #tpu.dot_dimension_numbers<[1], [0], [0], [1], [0, 0, 1, 1], [], []>} : vector<512x16xbf16>, vector<16x16xbf16>, vector<512x16xf32> -> vector<512x16xf32>
    %66 = arith.addf %63, %65 : vector<512x16xf32>
    %67 = arith.truncf %60 : vector<512x64xf32> to vector<512x64xbf16>
    %c0_51 = arith.constant 0 : index
    %c0_52 = arith.constant 0 : index
    %68 = vector.load %arg18[%c0_51, %c0_52] : memref<64x16xbf16, #tpu.memory_space<vmem>>, vector<64x16xbf16>
    %cst_53 = arith.constant dense<0.000000e+00> : vector<512x16xf32>
    %69 = tpu.matmul %67, %68, %cst_53 {dimension_numbers = #tpu.dot_dimension_numbers<[1], [0], [0], [1], [0, 0, 1, 1], [], []>} : vector<512x64xbf16>, vector<64x16xbf16>, vector<512x16xf32> -> vector<512x16xf32>
    %70 = arith.addf %66, %69 : vector<512x16xf32>
    %c0_54 = arith.constant 0 : index
    %c0_55 = arith.constant 0 : index
    %71 = vector.load %arg19[%c0_54, %c0_55] : memref<1x16xf32, #tpu.memory_space<vmem>>, vector<1x16xf32>
    %72 = vector.broadcast %71 : vector<1x16xf32> to vector<512x16xf32>
    %73 = arith.addf %70, %72 : vector<512x16xf32>
    %74 = tpu.iota {dimensions = array<i32: 1>} : vector<512x16xi32>
    %c3_i32 = arith.constant 3 : i32
    %75 = vector.broadcast %c3_i32 : i32 to vector<512x16xi32>
    %76 = arith.cmpi slt, %74, %75 : vector<512x16xi32>
    %c4_i32 = arith.constant 4 : i32
    %77 = vector.broadcast %c4_i32 : i32 to vector<512x16xi32>
    %78 = arith.cmpi sge, %74, %77 : vector<512x16xi32>
    %c7_i32 = arith.constant 7 : i32
    %79 = vector.broadcast %c7_i32 : i32 to vector<512x16xi32>
    %80 = arith.cmpi slt, %74, %79 : vector<512x16xi32>
    %81 = arith.andi %78, %80 : vector<512x16xi1>
    %82 = arith.ori %76, %81 : vector<512x16xi1>
    %cst_56 = arith.constant 5.000000e-01 : f32
    %83 = vector.broadcast %cst_56 : f32 to vector<512x16xf32>
    %84 = arith.mulf %83, %73 : vector<512x16xf32>
    %85 = math.tanh %84 : vector<512x16xf32>
    %cst_57 = arith.constant 5.000000e-01 : f32
    %86 = vector.broadcast %cst_57 : f32 to vector<512x16xf32>
    %87 = arith.mulf %86, %85 : vector<512x16xf32>
    %cst_58 = arith.constant 5.000000e-01 : f32
    %88 = vector.broadcast %cst_58 : f32 to vector<512x16xf32>
    %89 = arith.addf %87, %88 : vector<512x16xf32>
    %cst_59 = arith.constant 2.000000e+01 : f32
    %90 = vector.broadcast %cst_59 : f32 to vector<512x16xf32>
    %91 = arith.cmpf ogt, %73, %90 : vector<512x16xf32>
    %cst_60 = arith.constant 2.000000e+01 : f32
    %92 = vector.broadcast %cst_60 : f32 to vector<512x16xf32>
    %93 = arith.minimumf %73, %92 : vector<512x16xf32>
    %94 = math.exp %93 : vector<512x16xf32>
    %cst_61 = arith.constant 1.000000e+00 : f32
    %95 = vector.broadcast %cst_61 : f32 to vector<512x16xf32>
    %96 = arith.addf %95, %94 : vector<512x16xf32>
    %97 = math.log %96 : vector<512x16xf32>
    %98 = arith.select %91, %73, %97 : vector<512x16xi1>, vector<512x16xf32>
    %99 = arith.select %82, %89, %98 : vector<512x16xi1>, vector<512x16xf32>
    %c9_i32 = arith.constant 9 : i32
    %100 = vector.broadcast %c9_i32 : i32 to vector<512x16xi32>
    %101 = arith.cmpi slt, %74, %100 : vector<512x16xi32>
    %cst_62 = arith.constant 0.000000e+00 : f32
    %102 = vector.broadcast %cst_62 : f32 to vector<512x16xf32>
    %103 = arith.select %101, %99, %102 : vector<512x16xi1>, vector<512x16xf32>
    %c0_63 = arith.constant 0 : index
    %c0_64 = arith.constant 0 : index
    %104 = vector.load %arg20[%c0_63, %c0_64] : memref<512x16xf32, #tpu.memory_space<vmem>>, vector<512x16xf32>
    tpu.vector_store %arg20[%c0_63, %c0_64], %103 {strides = array<i32>} : memref<512x16xf32, #tpu.memory_space<vmem>>, vector<512x16xf32>,
    return
  }
  func.func @transform_0(%arg0: i32) -> (i32, i32) {
    %c0_i32 = arith.constant 0 : i32
    %c0_i32_0 = arith.constant 0 : i32
    return %arg0, %c0_i32 : i32, i32
  }
  func.func @transform_1(%arg0: i32) -> (i32, i32) {
    %c0_i32 = arith.constant 0 : i32
    %c0_i32_0 = arith.constant 0 : i32
    %c0_i32_1 = arith.constant 0 : i32
    return %c0_i32, %c0_i32_0 : i32, i32
  }
  func.func @transform_2(%arg0: i32) -> (i32, i32) {
    %c0_i32 = arith.constant 0 : i32
    %c0_i32_0 = arith.constant 0 : i32
    %c0_i32_1 = arith.constant 0 : i32
    return %c0_i32, %c0_i32_0 : i32, i32
  }
  func.func @transform_3(%arg0: i32) -> (i32, i32) {
    %c0_i32 = arith.constant 0 : i32
    %c0_i32_0 = arith.constant 0 : i32
    %c0_i32_1 = arith.constant 0 : i32
    return %c0_i32, %c0_i32_0 : i32, i32
  }
  func.func @transform_4(%arg0: i32) -> (i32, i32) {
    %c0_i32 = arith.constant 0 : i32
    %c0_i32_0 = arith.constant 0 : i32
    %c0_i32_1 = arith.constant 0 : i32
    return %c0_i32, %c0_i32_0 : i32, i32
  }
  func.func @transform_5(%arg0: i32) -> (i32, i32) {
    %c0_i32 = arith.constant 0 : i32
    %c0_i32_0 = arith.constant 0 : i32
    %c0_i32_1 = arith.constant 0 : i32
    return %c0_i32, %c0_i32_0 : i32, i32
  }
  func.func @transform_6(%arg0: i32) -> (i32, i32) {
    %c0_i32 = arith.constant 0 : i32
    %c0_i32_0 = arith.constant 0 : i32
    %c0_i32_1 = arith.constant 0 : i32
    return %c0_i32, %c0_i32_0 : i32, i32
  }
  func.func @transform_7(%arg0: i32) -> (i32, i32) {
    %c0_i32 = arith.constant 0 : i32
    %c0_i32_0 = arith.constant 0 : i32
    %c0_i32_1 = arith.constant 0 : i32
    return %c0_i32, %c0_i32_0 : i32, i32
  }
  func.func @transform_8(%arg0: i32) -> (i32, i32) {
    %c0_i32 = arith.constant 0 : i32
    %c0_i32_0 = arith.constant 0 : i32
    %c0_i32_1 = arith.constant 0 : i32
    return %c0_i32, %c0_i32_0 : i32, i32
  }
  func.func @transform_9(%arg0: i32) -> (i32, i32) {
    %c0_i32 = arith.constant 0 : i32
    %c0_i32_0 = arith.constant 0 : i32
    %c0_i32_1 = arith.constant 0 : i32
    return %c0_i32, %c0_i32_0 : i32, i32
  }
  func.func @transform_10(%arg0: i32) -> (i32, i32) {
    %c0_i32 = arith.constant 0 : i32
    %c0_i32_0 = arith.constant 0 : i32
    %c0_i32_1 = arith.constant 0 : i32
    return %c0_i32, %c0_i32_0 : i32, i32
  }
  func.func @transform_11(%arg0: i32) -> (i32, i32) {
    %c0_i32 = arith.constant 0 : i32
    %c0_i32_0 = arith.constant 0 : i32
    %c0_i32_1 = arith.constant 0 : i32
    return %c0_i32, %c0_i32_0 : i32, i32
  }
  func.func @transform_12(%arg0: i32) -> (i32, i32) {
    %c0_i32 = arith.constant 0 : i32
    %c0_i32_0 = arith.constant 0 : i32
    %c0_i32_1 = arith.constant 0 : i32
    return %c0_i32, %c0_i32_0 : i32, i32
  }
  func.func @transform_13(%arg0: i32) -> (i32, i32) {
    %c0_i32 = arith.constant 0 : i32
    %c0_i32_0 = arith.constant 0 : i32
    %c0_i32_1 = arith.constant 0 : i32
    return %c0_i32, %c0_i32_0 : i32, i32
  }
  func.func @transform_14(%arg0: i32) -> (i32, i32) {
    %c0_i32 = arith.constant 0 : i32
    %c0_i32_0 = arith.constant 0 : i32
    %c0_i32_1 = arith.constant 0 : i32
    return %c0_i32, %c0_i32_0 : i32, i32
  }
  func.func @transform_15(%arg0: i32) -> (i32, i32) {
    %c0_i32 = arith.constant 0 : i32
    %c0_i32_0 = arith.constant 0 : i32
    %c0_i32_1 = arith.constant 0 : i32
    return %c0_i32, %c0_i32_0 : i32, i32
  }
  func.func @transform_16(%arg0: i32) -> (i32, i32) {
    %c0_i32 = arith.constant 0 : i32
    %c0_i32_0 = arith.constant 0 : i32
    %c0_i32_1 = arith.constant 0 : i32
    return %c0_i32, %c0_i32_0 : i32, i32
  }
  func.func @transform_17(%arg0: i32) -> (i32, i32) {
    %c0_i32 = arith.constant 0 : i32
    %c0_i32_0 = arith.constant 0 : i32
    %c0_i32_1 = arith.constant 0 : i32
    return %c0_i32, %c0_i32_0 : i32, i32
  }
  func.func @transform_18(%arg0: i32) -> (i32, i32) {
    %c0_i32 = arith.constant 0 : i32
    %c0_i32_0 = arith.constant 0 : i32
    %c0_i32_1 = arith.constant 0 : i32
    return %c0_i32, %c0_i32_0 : i32, i32
  }
  func.func @transform_19(%arg0: i32) -> (i32, i32) {
    %c0_i32 = arith.constant 0 : i32
    %c0_i32_0 = arith.constant 0 : i32
    return %arg0, %c0_i32 : i32, i32
  }
}

</mosaic_0001>

<llo_original>
// kernel: nerf_forward_pallas.1
$region0: #{nerf_forward_pallas.1}
  #allocation0 [shape = 'u32[]', space=smem, size = 0x4, offset = 0x4, fixed_abs, tag = 'smem constant byte address 0x4 - core index']
  #allocation1 [shape = 'u32[72,128]{1,0:T(1,128)}', space=vmem, size = 0x9000, scoped, tag = 'internal scratch']
  %s0 = inlined_call_operand.vmem [shape: bf16[1024,128], index: 0, kind: input, shape index: {}]
  %s1 = inlined_call_operand.vmem [shape: bf16[32,64], index: 1, kind: input, shape index: {}]
  %s2 = inlined_call_operand.vmem [shape: bf16[64,16], index: 2, kind: input, shape index: {}]
  %s3 = inlined_call_operand.vmem [shape: bf16[16,64], index: 3, kind: input, shape index: {}]
  %s4 = inlined_call_operand.vmem [shape: bf16[64,64], index: 4, kind: input, shape index: {}]
  %s5 = inlined_call_operand.vmem [shape: f32[1,64], index: 5, kind: input, shape index: {}]
  %s6 = inlined_call_operand.vmem [shape: bf16[64,64], index: 6, kind: input, shape index: {}]
  %s7 = inlined_call_operand.vmem [shape: f32[1,64], index: 7, kind: input, shape index: {}]
  %s8 = inlined_call_operand.vmem [shape: bf16[16,64], index: 8, kind: input, shape index: {}]
  %s9 = inlined_call_operand.vmem [shape: bf16[16,64], index: 9, kind: input, shape index: {}]
  %s10 = inlined_call_operand.vmem [shape: f32[1,64], index: 10, kind: input, shape index: {}]
  %s11 = inlined_call_operand.vmem [shape: bf16[64,64], index: 11, kind: input, shape index: {}]
  %s12 = inlined_call_operand.vmem [shape: f32[1,64], index: 12, kind: input, shape index: {}]
  %s13 = inlined_call_operand.vmem [shape: bf16[64,64], index: 13, kind: input, shape index: {}]
  %s14 = inlined_call_operand.vmem [shape: f32[1,64], index: 14, kind: input, shape index: {}]
  %s15 = inlined_call_operand.vmem [shape: bf16[64,16], index: 15, kind: input, shape index: {}]
  %s16 = inlined_call_operand.vmem [shape: bf16[16,16], index: 16, kind: input, shape index: {}]
  %s17 = inlined_call_operand.vmem [shape: bf16[64,16], index: 17, kind: input, shape index: {}]
  %s18 = inlined_call_operand.vmem [shape: f32[1,16], index: 18, kind: input, shape index: {}]
  %s19 = inlined_call_operand.vmem [shape: f32[1024,16], index: 19, kind: output, shape index: {}]
  %s20 = sld [smem:[#allocation0]]
  $region109: #{nerf_forward_pallas.1} parent=0
    _
  %s22 = ssub.s32 1, %s20
  %s23 = scalar_select 0, %s22, %s20
  loop: start=0, step=1, limit=4
  $region2: #{nerf_forward_pallas.1} parent=0 // loop_pre_header
    _
  $region3: #{nerf_forward_pallas.1} parent=0 // loop_header
    %s25 = sphi 0, %s29
    %p26 = scmp.ge.s32.totalorder %s25, 4
    %s35 = sphi 0, %s37
    %s38 = sphi 0, %s35
    %s39 = sphi 0, %s38
    %s55 = sphi 0, %s39
    %s59 = sphi 0, %s59
    %s61 = sphi 0, %s59
    %s62 = sphi 0, %s61
    %s76 = sphi 0, %s62
    %s80 = sphi 0, %s80
    %s82 = sphi 0, %s80
    %s83 = sphi 0, %s82
    %s97 = sphi 0, %s83
    %s101 = sphi 0, %s101
    %s103 = sphi 0, %s101
    %s104 = sphi 0, %s103
    %s118 = sphi 0, %s104
    %s122 = sphi 0, %s122
    %s124 = sphi 0, %s122
    %s125 = sphi 0, %s124
    %s139 = sphi 0, %s125
    %s143 = sphi 0, %s143
    %s145 = sphi 0, %s143
    %s146 = sphi 0, %s145
    %s160 = sphi 0, %s146
    %s164 = sphi 0, %s164
    %s166 = sphi 0, %s164
    %s167 = sphi 0, %s166
    %s181 = sphi 0, %s167
    %s185 = sphi 0, %s185
    %s187 = sphi 0, %s185
    %s188 = sphi 0, %s187
    %s202 = sphi 0, %s188
    %s206 = sphi 0, %s206
    %s208 = sphi 0, %s206
    %s209 = sphi 0, %s208
    %s223 = sphi 0, %s209
    %s227 = sphi 0, %s227
    %s229 = sphi 0, %s227
    %s230 = sphi 0, %s229
    %s244 = sphi 0, %s230
    %s248 = sphi 0, %s248
    %s250 = sphi 0, %s248
    %s251 = sphi 0, %s250
    %s265 = sphi 0, %s251
    %s269 = sphi 0, %s269
    %s271 = sphi 0, %s269
    %s272 = sphi 0, %s271
    %s286 = sphi 0, %s272
    %s290 = sphi 0, %s290
    %s292 = sphi 0, %s290
    %s293 = sphi 0, %s292
    %s307 = sphi 0, %s293
    %s311 = sphi 0, %s311
    %s313 = sphi 0, %s311
    %s314 = sphi 0, %s313
    %s328 = sphi 0, %s314
    %s332 = sphi 0, %s332
    %s334 = sphi 0, %s332
    %s335 = sphi 0, %s334
    %s349 = sphi 0, %s335
    %s353 = sphi 0, %s353
    %s355 = sphi 0, %s353
    %s356 = sphi 0, %s355
    %s370 = sphi 0, %s356
    %s374 = sphi 0, %s374
    %s376 = sphi 0, %s374
    %s377 = sphi 0, %s376
    %s391 = sphi 0, %s377
    %s395 = sphi 0, %s395
    %s397 = sphi 0, %s395
    %s398 = sphi 0, %s397
    %s412 = sphi 0, %s398
    %s416 = sphi 0, %s416
    %s418 = sphi 0, %s416
    %s419 = sphi 0, %s418
    %s433 = sphi 0, %s419
    %s439 = sphi 0, %s441
    %s442 = sphi 0, %s439
    %s443 = sphi 0, %s442
    %s459 = sphi 0, %s443
  $region4: #{nerf_forward_pallas.1} parent=0 // loop_header_branch
    %28 = sbr.rel (%p26) target = $region8
  $region5: #{nerf_forward_pallas.1} parent=0 // loop_body
    %s30 = ssub.s32 %s25, 1
    %s31 = ssub.s32 %s25, 2
    %s32 = sadd.s32 %s25, 1
    %s33 = ssub.s32 %s25, %s32
    %p34 = scmp.eq.s32.totalorder %s33, 0
    %s36 = sadd.s32 %s35, 1
    %s37 = scalar_select %p34, %s35, %s36
    %p40 = pneg %p34
    %p41 = scmp.eq.s32.totalorder %s25, 1
    %p42 = por %p40, %p41
    %p43 = scmp.ne.s32.totalorder %s35, %s38
    %p44 = scmp.eq.s32.totalorder %s25, 0
    %p45 = por %p43, %p44
    %p46 = scmp.ne.s32.totalorder %s35, %s38
    %p47 = scmp.eq.s32.totalorder %s30, 1
    %p48 = por %p46, %p47
    %p49 = scmp.ne.s32.totalorder %s38, %s39
    %p50 = scmp.eq.s32.totalorder %s30, 0
    %p51 = por %p49, %p50
    %p52 = scmp.ne.s32.totalorder %s38, %s39
    %p53 = scmp.eq.s32.totalorder %s31, 1
    %p54 = por %p52, %p53
    %p56 = scmp.ne.s32.totalorder %s39, %s55
    %p57 = scmp.eq.s32.totalorder %s31, 0
    %p58 = por %p56, %p57
    %s60 = sadd.s32 %s59, 1
    %p63 = scmp.eq.s32.totalorder %s25, 1
    %p64 = scmp.ne.s32.totalorder %s59, %s61
    %p65 = scmp.eq.s32.totalorder %s25, 0
    %p66 = por %p64, %p65
    %p67 = scmp.ne.s32.totalorder %s59, %s61
    %p68 = scmp.eq.s32.totalorder %s30, 1
    %p69 = por %p67, %p68
    %p70 = scmp.ne.s32.totalorder %s61, %s62
    %p71 = scmp.eq.s32.totalorder %s30, 0
    %p72 = por %p70, %p71
    %p73 = scmp.ne.s32.totalorder %s61, %s62
    %p74 = scmp.eq.s32.totalorder %s31, 1
    %p75 = por %p73, %p74
    %p77 = scmp.ne.s32.totalorder %s62, %s76
    %p78 = scmp.eq.s32.totalorder %s31, 0
    %p79 = por %p77, %p78
    %s81 = sadd.s32 %s80, 1
    %p84 = scmp.eq.s32.totalorder %s25, 1
    %p85 = scmp.ne.s32.totalorder %s80, %s82
    %p86 = scmp.eq.s32.totalorder %s25, 0
    %p87 = por %p85, %p86
    %p88 = scmp.ne.s32.totalorder %s80, %s82
    %p89 = scmp.eq.s32.totalorder %s30, 1
    %p90 = por %p88, %p89
    %p91 = scmp.ne.s32.totalorder %s82, %s83
    %p92 = scmp.eq.s32.totalorder %s30, 0
    %p93 = por %p91, %p92
    %p94 = scmp.ne.s32.totalorder %s82, %s83
    %p95 = scmp.eq.s32.totalorder %s31, 1
    %p96 = por %p94, %p95
    %p98 = scmp.ne.s32.totalorder %s83, %s97
    %p99 = scmp.eq.s32.totalorder %s31, 0
    %p100 = por %p98, %p99
    %s102 = sadd.s32 %s101, 1
    %p105 = scmp.eq.s32.totalorder %s25, 1
    %p106 = scmp.ne.s32.totalorder %s101, %s103
    %p107 = scmp.eq.s32.totalorder %s25, 0
    %p108 = por %p106, %p107
    %p109 = scmp.ne.s32.totalorder %s101, %s103
    %p110 = scmp.eq.s32.totalorder %s30, 1
    %p111 = por %p109, %p110
    %p112 = scmp.ne.s32.totalorder %s103, %s104
    %p113 = scmp.eq.s32.totalorder %s30, 0
    %p114 = por %p112, %p113
    %p115 = scmp.ne.s32.totalorder %s103, %s104
    %p116 = scmp.eq.s32.totalorder %s31, 1
    %p117 = por %p115, %p116
    %p119 = scmp.ne.s32.totalorder %s104, %s118
    %p120 = scmp.eq.s32.totalorder %s31, 0
    %p121 = por %p119, %p120
    %s123 = sadd.s32 %s122, 1
    %p126 = scmp.eq.s32.totalorder %s25, 1
    %p127 = scmp.ne.s32.totalorder %s122, %s124
    %p128 = scmp.eq.s32.totalorder %s25, 0
    %p129 = por %p127, %p128
    %p130 = scmp.ne.s32.totalorder %s122, %s124
    %p131 = scmp.eq.s32.totalorder %s30, 1
    %p132 = por %p130, %p131
    %p133 = scmp.ne.s32.totalorder %s124, %s125
    %p134 = scmp.eq.s32.totalorder %s30, 0
    %p135 = por %p133, %p134
    %p136 = scmp.ne.s32.totalorder %s124, %s125
    %p137 = scmp.eq.s32.totalorder %s31, 1
    %p138 = por %p136, %p137
    %p140 = scmp.ne.s32.totalorder %s125, %s139
    %p141 = scmp.eq.s32.totalorder %s31, 0
    %p142 = por %p140, %p141
    %s144 = sadd.s32 %s143, 1
    %p147 = scmp.eq.s32.totalorder %s25, 1
    %p148 = scmp.ne.s32.totalorder %s143, %s145
    %p149 = scmp.eq.s32.totalorder %s25, 0
    %p150 = por %p148, %p149
    %p151 = scmp.ne.s32.totalorder %s143, %s145
    %p152 = scmp.eq.s32.totalorder %s30, 1
    %p153 = por %p151, %p152
    %p154 = scmp.ne.s32.totalorder %s145, %s146
    %p155 = scmp.eq.s32.totalorder %s30, 0
    %p156 = por %p154, %p155
    %p157 = scmp.ne.s32.totalorder %s145, %s146
    %p158 = scmp.eq.s32.totalorder %s31, 1
    %p159 = por %p157, %p158
    %p161 = scmp.ne.s32.totalorder %s146, %s160
    %p162 = scmp.eq.s32.totalorder %s31, 0
    %p163 = por %p161, %p162
    %s165 = sadd.s32 %s164, 1
    %p168 = scmp.eq.s32.totalorder %s25, 1
    %p169 = scmp.ne.s32.totalorder %s164, %s166
    %p170 = scmp.eq.s32.totalorder %s25, 0
    %p171 = por %p169, %p170
    %p172 = scmp.ne.s32.totalorder %s164, %s166
    %p173 = scmp.eq.s32.totalorder %s30, 1
    %p174 = por %p172, %p173
    %p175 = scmp.ne.s32.totalorder %s166, %s167
    %p176 = scmp.eq.s32.totalorder %s30, 0
    %p177 = por %p175, %p176
    %p178 = scmp.ne.s32.totalorder %s166, %s167
    %p179 = scmp.eq.s32.totalorder %s31, 1
    %p180 = por %p178, %p179
    %p182 = scmp.ne.s32.totalorder %s167, %s181
    %p183 = scmp.eq.s32.totalorder %s31, 0
    %p184 = por %p182, %p183
    %s186 = sadd.s32 %s185, 1
    %p189 = scmp.eq.s32.totalorder %s25, 1
    %p190 = scmp.ne.s32.totalorder %s185, %s187
    %p191 = scmp.eq.s32.totalorder %s25, 0
    %p192 = por %p190, %p191
    %p193 = scmp.ne.s32.totalorder %s185, %s187
    %p194 = scmp.eq.s32.totalorder %s30, 1
    %p195 = por %p193, %p194
    %p196 = scmp.ne.s32.totalorder %s187, %s188
    %p197 = scmp.eq.s32.totalorder %s30, 0
    %p198 = por %p196, %p197
    %p199 = scmp.ne.s32.totalorder %s187, %s188
    %p200 = scmp.eq.s32.totalorder %s31, 1
    %p201 = por %p199, %p200
    %p203 = scmp.ne.s32.totalorder %s188, %s202
    %p204 = scmp.eq.s32.totalorder %s31, 0
    %p205 = por %p203, %p204
    %s207 = sadd.s32 %s206, 1
    %p210 = scmp.eq.s32.totalorder %s25, 1
    %p211 = scmp.ne.s32.totalorder %s206, %s208
    %p212 = scmp.eq.s32.totalorder %s25, 0
    %p213 = por %p211, %p212
    %p214 = scmp.ne.s32.totalorder %s206, %s208
    %p215 = scmp.eq.s32.totalorder %s30, 1
    %p216 = por %p214, %p215
    %p217 = scmp.ne.s32.totalorder %s208, %s209
    %p218 = scmp.eq.s32.totalorder %s30, 0
    %p219 = por %p217, %p218
    %p220 = scmp.ne.s32.totalorder %s208, %s209
    %p221 = scmp.eq.s32.totalorder %s31, 1
    %p222 = por %p220, %p221
    %p224 = scmp.ne.s32.totalorder %s209, %s223
    %p225 = scmp.eq.s32.totalorder %s31, 0
    %p226 = por %p224, %p225
    %s228 = sadd.s32 %s227, 1
    %p231 = scmp.eq.s32.totalorder %s25, 1
    %p232 = scmp.ne.s32.totalorder %s227, %s229
    %p233 = scmp.eq.s32.totalorder %s25, 0
    %p234 = por %p232, %p233
    %p235 = scmp.ne.s32.totalorder %s227, %s229
    %p236 = scmp.eq.s32.totalorder %s30, 1
    %p237 = por %p235, %p236
    %p238 = scmp.ne.s32.totalorder %s229, %s230
    %p239 = scmp.eq.s32.totalorder %s30, 0
    %p240 = por %p238, %p239
    %p241 = scmp.ne.s32.totalorder %s229, %s230
    %p242 = scmp.eq.s32.totalorder %s31, 1
    %p243 = por %p241, %p242
    %p245 = scmp.ne.s32.totalorder %s230, %s244
    %p246 = scmp.eq.s32.totalorder %s31, 0
    %p247 = por %p245, %p246
    %s249 = sadd.s32 %s248, 1
    %p252 = scmp.eq.s32.totalorder %s25, 1
    %p253 = scmp.ne.s32.totalorder %s248, %s250
    %p254 = scmp.eq.s32.totalorder %s25, 0
    %p255 = por %p253, %p254
    %p256 = scmp.ne.s32.totalorder %s248, %s250
    %p257 = scmp.eq.s32.totalorder %s30, 1
    %p258 = por %p256, %p257
    %p259 = scmp.ne.s32.totalorder %s250, %s251
    %p260 = scmp.eq.s32.totalorder %s30, 0
    %p261 = por %p259, %p260
    %p262 = scmp.ne.s32.totalorder %s250, %s251
    %p263 = scmp.eq.s32.totalorder %s31, 1
    %p264 = por %p262, %p263
    %p266 = scmp.ne.s32.totalorder %s251, %s265
    %p267 = scmp.eq.s32.totalorder %s31, 0
    %p268 = por %p266, %p267
    %s270 = sadd.s32 %s269, 1
    %p273 = scmp.eq.s32.totalorder %s25, 1
    %p274 = scmp.ne.s32.totalorder %s269, %s271
    %p275 = scmp.eq.s32.totalorder %s25, 0
    %p276 = por %p274, %p275
    %p277 = scmp.ne.s32.totalorder %s269, %s271
    %p278 = scmp.eq.s32.totalorder %s30, 1
    %p279 = por %p277, %p278
    %p280 = scmp.ne.s32.totalorder %s271, %s272
    %p281 = scmp.eq.s32.totalorder %s30, 0
    %p282 = por %p280, %p281
    %p283 = scmp.ne.s32.totalorder %s271, %s272
    %p284 = scmp.eq.s32.totalorder %s31, 1
    %p285 = por %p283, %p284
    %p287 = scmp.ne.s32.totalorder %s272, %s286
    %p288 = scmp.eq.s32.totalorder %s31, 0
    %p289 = por %p287, %p288
    %s291 = sadd.s32 %s290, 1
    %p294 = scmp.eq.s32.totalorder %s25, 1
    %p295 = scmp.ne.s32.totalorder %s290, %s292
    %p296 = scmp.eq.s32.totalorder %s25, 0
    %p297 = por %p295, %p296
    %p298 = scmp.ne.s32.totalorder %s290, %s292
    %p299 = scmp.eq.s32.totalorder %s30, 1
    %p300 = por %p298, %p299
    %p301 = scmp.ne.s32.totalorder %s292, %s293
    %p302 = scmp.eq.s32.totalorder %s30, 0
    %p303 = por %p301, %p302
    %p304 = scmp.ne.s32.totalorder %s292, %s293
    %p305 = scmp.eq.s32.totalorder %s31, 1
    %p306 = por %p304, %p305
    %p308 = scmp.ne.s32.totalorder %s293, %s307
    %p309 = scmp.eq.s32.totalorder %s31, 0
    %p310 = por %p308, %p309
    %s312 = sadd.s32 %s311, 1
    %p315 = scmp.eq.s32.totalorder %s25, 1
    %p316 = scmp.ne.s32.totalorder %s311, %s313
    %p317 = scmp.eq.s32.totalorder %s25, 0
    %p318 = por %p316, %p317
    %p319 = scmp.ne.s32.totalorder %s311, %s313
    %p320 = scmp.eq.s32.totalorder %s30, 1
    %p321 = por %p319, %p320
    %p322 = scmp.ne.s32.totalorder %s313, %s314
    %p323 = scmp.eq.s32.totalorder %s30, 0
    %p324 = por %p322, %p323
    %p325 = scmp.ne.s32.totalorder %s313, %s314
    %p326 = scmp.eq.s32.totalorder %s31, 1
    %p327 = por %p325, %p326
    %p329 = scmp.ne.s32.totalorder %s314, %s328
    %p330 = scmp.eq.s32.totalorder %s31, 0
    %p331 = por %p329, %p330
    %s333 = sadd.s32 %s332, 1
    %p336 = scmp.eq.s32.totalorder %s25, 1
    %p337 = scmp.ne.s32.totalorder %s332, %s334
    %p338 = scmp.eq.s32.totalorder %s25, 0
    %p339 = por %p337, %p338
    %p340 = scmp.ne.s32.totalorder %s332, %s334
    %p341 = scmp.eq.s32.totalorder %s30, 1
    %p342 = por %p340, %p341
    %p343 = scmp.ne.s32.totalorder %s334, %s335
    %p344 = scmp.eq.s32.totalorder %s30, 0
    %p345 = por %p343, %p344
    %p346 = scmp.ne.s32.totalorder %s334, %s335
    %p347 = scmp.eq.s32.totalorder %s31, 1
    %p348 = por %p346, %p347
    %p350 = scmp.ne.s32.totalorder %s335, %s349
    %p351 = scmp.eq.s32.totalorder %s31, 0
    %p352 = por %p350, %p351
    %s354 = sadd.s32 %s353, 1
    %p357 = scmp.eq.s32.totalorder %s25, 1
    %p358 = scmp.ne.s32.totalorder %s353, %s355
    %p359 = scmp.eq.s32.totalorder %s25, 0
    %p360 = por %p358, %p359
    %p361 = scmp.ne.s32.totalorder %s353, %s355
    %p362 = scmp.eq.s32.totalorder %s30, 1
    %p363 = por %p361, %p362
    %p364 = scmp.ne.s32.totalorder %s355, %s356
    %p365 = scmp.eq.s32.totalorder %s30, 0
    %p366 = por %p364, %p365
    %p367 = scmp.ne.s32.totalorder %s355, %s356
    %p368 = scmp.eq.s32.totalorder %s31, 1
    %p369 = por %p367, %p368
    %p371 = scmp.ne.s32.totalorder %s356, %s370
    %p372 = scmp.eq.s32.totalorder %s31, 0
    %p373 = por %p371, %p372
    %s375 = sadd.s32 %s374, 1
    %p378 = scmp.eq.s32.totalorder %s25, 1
    %p379 = scmp.ne.s32.totalorder %s374, %s376
    %p380 = scmp.eq.s32.totalorder %s25, 0
    %p381 = por %p379, %p380
    %p382 = scmp.ne.s32.totalorder %s374, %s376
    %p383 = scmp.eq.s32.totalorder %s30, 1
    %p384 = por %p382, %p383
    %p385 = scmp.ne.s32.totalorder %s376, %s377
    %p386 = scmp.eq.s32.totalorder %s30, 0
    %p387 = por %p385, %p386
    %p388 = scmp.ne.s32.totalorder %s376, %s377
    %p389 = scmp.eq.s32.totalorder %s31, 1
    %p390 = por %p388, %p389
    %p392 = scmp.ne.s32.totalorder %s377, %s391
    %p393 = scmp.eq.s32.totalorder %s31, 0
    %p394 = por %p392, %p393
    %s396 = sadd.s32 %s395, 1
    %p399 = scmp.eq.s32.totalorder %s25, 1
    %p400 = scmp.ne.s32.totalorder %s395, %s397
    %p401 = scmp.eq.s32.totalorder %s25, 0
    %p402 = por %p400, %p401
    %p403 = scmp.ne.s32.totalorder %s395, %s397
    %p404 = scmp.eq.s32.totalorder %s30, 1
    %p405 = por %p403, %p404
    %p406 = scmp.ne.s32.totalorder %s397, %s398
    %p407 = scmp.eq.s32.totalorder %s30, 0
    %p408 = por %p406, %p407
    %p409 = scmp.ne.s32.totalorder %s397, %s398
    %p410 = scmp.eq.s32.totalorder %s31, 1
    %p411 = por %p409, %p410
    %p413 = scmp.ne.s32.totalorder %s398, %s412
    %p414 = scmp.eq.s32.totalorder %s31, 0
    %p415 = por %p413, %p414
    %s417 = sadd.s32 %s416, 1
    %p420 = scmp.eq.s32.totalorder %s25, 1
    %p421 = scmp.ne.s32.totalorder %s416, %s418
    %p422 = scmp.eq.s32.totalorder %s25, 0
    %p423 = por %p421, %p422
    %p424 = scmp.ne.s32.totalorder %s416, %s418
    %p425 = scmp.eq.s32.totalorder %s30, 1
    %p426 = por %p424, %p425
    %p427 = scmp.ne.s32.totalorder %s418, %s419
    %p428 = scmp.eq.s32.totalorder %s30, 0
    %p429 = por %p427, %p428
    %p430 = scmp.ne.s32.totalorder %s418, %s419
    %p431 = scmp.eq.s32.totalorder %s31, 1
    %p432 = por %p430, %p431
    %p434 = scmp.ne.s32.totalorder %s419, %s433
    %p435 = scmp.eq.s32.totalorder %s31, 0
    %p436 = por %p434, %p435
    %s437 = ssub.s32 %s25, %s32
    %p438 = scmp.eq.s32.totalorder %s437, 0
    %s440 = sadd.s32 %s439, 1
    %s441 = scalar_select %p438, %s439, %s440
    %p444 = pneg %p438
    %p445 = scmp.eq.s32.totalorder %s25, 1
    %p446 = por %p444, %p445
    %p447 = scmp.ne.s32.totalorder %s439, %s442
    %p448 = scmp.eq.s32.totalorder %s25, 0
    %p449 = por %p447, %p448
    %p450 = scmp.ne.s32.totalorder %s439, %s442
    %p451 = scmp.eq.s32.totalorder %s30, 1
    %p452 = por %p450, %p451
    %p453 = scmp.ne.s32.totalorder %s442, %s443
    %p454 = scmp.eq.s32.totalorder %s30, 0
    %p455 = por %p453, %p454
    %p456 = scmp.ne.s32.totalorder %s442, %s443
    %p457 = scmp.eq.s32.totalorder %s31, 1
    %p458 = por %p456, %p457
    %p460 = scmp.ne.s32.totalorder %s443, %s459
    %p461 = scmp.eq.s32.totalorder %s31, 0
    %p462 = por %p460, %p461
    %p463 = scmp.le.s32.totalorder 1, %s25
    %p464 = scmp.lt.s32.totalorder %s25, 3
    %p465 = pnand %p463, %p464
    %p466 = pneg %p465
    // Predicated region
    $region9: #{nerf_forward_pallas.1} parent=5 // pred_check
      _
    $region10: #{nerf_forward_pallas.1} parent=5 // pred_check_branch
      %468 = sbr.rel (%p465) target = $region12
    $region11: #{nerf_forward_pallas.1} parent=5 // pred_region
      %s469 = ssub.s32 %s25, 1
      // Predicated region
      $region13: #{nerf_forward_pallas.1} parent=11 // pred_check
        %p470 = pneg %p72
      $region14: #{nerf_forward_pallas.1} parent=11 // pred_check_branch
        %472 = sbr.rel (%p470) target = $region16
      $region15: #{nerf_forward_pallas.1} parent=11 // pred_region
        _
      $region16: #{nerf_forward_pallas.1} parent=11 // pred_fallthru
        _
      // Predicated region
      $region17: #{nerf_forward_pallas.1} parent=11 // pred_check
        %p473 = pneg %p93
      $region18: #{nerf_forward_pallas.1} parent=11 // pred_check_branch
        %475 = sbr.rel (%p473) target = $region20
      $region19: #{nerf_forward_pallas.1} parent=11 // pred_region
        _
      $region20: #{nerf_forward_pallas.1} parent=11 // pred_fallthru
        _
      // Predicated region
      $region21: #{nerf_forward_pallas.1} parent=11 // pred_check
        %p476 = pneg %p114
      $region22: #{nerf_forward_pallas.1} parent=11 // pred_check_branch
        %478 = sbr.rel (%p476) target = $region24
      $region23: #{nerf_forward_pallas.1} parent=11 // pred_region
        _
      $region24: #{nerf_forward_pallas.1} parent=11 // pred_fallthru
        _
      // Predicated region
      $region25: #{nerf_forward_pallas.1} parent=11 // pred_check
        %p479 = pneg %p135
      $region26: #{nerf_forward_pallas.1} parent=11 // pred_check_branch
        %481 = sbr.rel (%p479) target = $region28
      $region27: #{nerf_forward_pallas.1} parent=11 // pred_region
        _
      $region28: #{nerf_forward_pallas.1} parent=11 // pred_fallthru
        _
      // Predicated region
      $region29: #{nerf_forward_pallas.1} parent=11 // pred_check
        %p482 = pneg %p156
      $region30: #{nerf_forward_pallas.1} parent=11 // pred_check_branch
        %484 = sbr.rel (%p482) target = $region32
      $region31: #{nerf_forward_pallas.1} parent=11 // pred_region
        _
      $region32: #{nerf_forward_pallas.1} parent=11 // pred_fallthru
        _
      // Predicated region
      $region33: #{nerf_forward_pallas.1} parent=11 // pred_check
        %p485 = pneg %p177
      $region34: #{nerf_forward_pallas.1} parent=11 // pred_check_branch
        %487 = sbr.rel (%p485) target = $region36
      $region35: #{nerf_forward_pallas.1} parent=11 // pred_region
        _
      $region36: #{nerf_forward_pallas.1} parent=11 // pred_fallthru
        _
      // Predicated region
      $region37: #{nerf_forward_pallas.1} parent=11 // pred_check
        %p488 = pneg %p198
      $region38: #{nerf_forward_pallas.1} parent=11 // pred_check_branch
        %490 = sbr.rel (%p488) target = $region40
      $region39: #{nerf_forward_pallas.1} parent=11 // pred_region
        _
      $region40: #{nerf_forward_pallas.1} parent=11 // pred_fallthru
        _
      // Predicated region
      $region41: #{nerf_forward_pallas.1} parent=11 // pred_check
        %p491 = pneg %p219
      $region42: #{nerf_forward_pallas.1} parent=11 // pred_check_branch
        %493 = sbr.rel (%p491) target = $region44
      $region43: #{nerf_forward_pallas.1} parent=11 // pred_region
        _
      $region44: #{nerf_forward_pallas.1} parent=11 // pred_fallthru
        _
      // Predicated region
      $region45: #{nerf_forward_pallas.1} parent=11 // pred_check
        %p494 = pneg %p240
      $region46: #{nerf_forward_pallas.1} parent=11 // pred_check_branch
        %496 = sbr.rel (%p494) target = $region48
      $region47: #{nerf_forward_pallas.1} parent=11 // pred_region
        _
      $region48: #{nerf_forward_pallas.1} parent=11 // pred_fallthru
        _
      // Predicated region
      $region49: #{nerf_forward_pallas.1} parent=11 // pred_check
        %p497 = pneg %p261
      $region50: #{nerf_forward_pallas.1} parent=11 // pred_check_branch
        %499 = sbr.rel (%p497) target = $region52
      $region51: #{nerf_forward_pallas.1} parent=11 // pred_region
        _
      $region52: #{nerf_forward_pallas.1} parent=11 // pred_fallthru
        _
      // Predicated region
      $region53: #{nerf_forward_pallas.1} parent=11 // pred_check
        %p500 = pneg %p282
      $region54: #{nerf_forward_pallas.1} parent=11 // pred_check_branch
        %502 = sbr.rel (%p500) target = $region56
      $region55: #{nerf_forward_pallas.1} parent=11 // pred_region
        _
      $region56: #{nerf_forward_pallas.1} parent=11 // pred_fallthru
        _
      // Predicated region
      $region57: #{nerf_forward_pallas.1} parent=11 // pred_check
        %p503 = pneg %p303
      $region58: #{nerf_forward_pallas.1} parent=11 // pred_check_branch
        %505 = sbr.rel (%p503) target = $region60
      $region59: #{nerf_forward_pallas.1} parent=11 // pred_region
        _
      $region60: #{nerf_forward_pallas.1} parent=11 // pred_fallthru
        _
      // Predicated region
      $region61: #{nerf_forward_pallas.1} parent=11 // pred_check
        %p506 = pneg %p324
      $region62: #{nerf_forward_pallas.1} parent=11 // pred_check_branch
        %508 = sbr.rel (%p506) target = $region64
      $region63: #{nerf_forward_pallas.1} parent=11 // pred_region
        _
      $region64: #{nerf_forward_pallas.1} parent=11 // pred_fallthru
        _
      // Predicated region
      $region65: #{nerf_forward_pallas.1} parent=11 // pred_check
        %p509 = pneg %p345
      $region66: #{nerf_forward_pallas.1} parent=11 // pred_check_branch
        %511 = sbr.rel (%p509) target = $region68
      $region67: #{nerf_forward_pallas.1} parent=11 // pred_region
        _
      $region68: #{nerf_forward_pallas.1} parent=11 // pred_fallthru
        _
      // Predicated region
      $region69: #{nerf_forward_pallas.1} parent=11 // pred_check
        %p512 = pneg %p366
      $region70: #{nerf_forward_pallas.1} parent=11 // pred_check_branch
        %514 = sbr.rel (%p512) target = $region72
      $region71: #{nerf_forward_pallas.1} parent=11 // pred_region
        _
      $region72: #{nerf_forward_pallas.1} parent=11 // pred_fallthru
        _
      // Predicated region
      $region73: #{nerf_forward_pallas.1} parent=11 // pred_check
        %p515 = pneg %p387
      $region74: #{nerf_forward_pallas.1} parent=11 // pred_check_branch
        %517 = sbr.rel (%p515) target = $region76
      $region75: #{nerf_forward_pallas.1} parent=11 // pred_region
        _
      $region76: #{nerf_forward_pallas.1} parent=11 // pred_fallthru
        _
      // Predicated region
      $region77: #{nerf_forward_pallas.1} parent=11 // pred_check
        %p518 = pneg %p408
      $region78: #{nerf_forward_pallas.1} parent=11 // pred_check_branch
        %520 = sbr.rel (%p518) target = $region80
      $region79: #{nerf_forward_pallas.1} parent=11 // pred_region
        _
      $region80: #{nerf_forward_pallas.1} parent=11 // pred_fallthru
        _
      // Predicated region
      $region81: #{nerf_forward_pallas.1} parent=11 // pred_check
        %p521 = pneg %p429
      $region82: #{nerf_forward_pallas.1} parent=11 // pred_check_branch
        %523 = sbr.rel (%p521) target = $region84
      $region83: #{nerf_forward_pallas.1} parent=11 // pred_region
        _
      $region84: #{nerf_forward_pallas.1} parent=11 // pred_fallthru
        _
    $region12: #{nerf_forward_pallas.1} parent=5 // pred_fallthru
      _
    %p524 = scmp.lt.s32.totalorder %s25, 2
    // Predicated region
    $region85: #{nerf_forward_pallas.1} parent=5 // pred_check
      %p525 = pneg %p524
    $region86: #{nerf_forward_pallas.1} parent=5 // pred_check_branch
      %527 = sbr.rel (%p525) target = $region88
    $region87: #{nerf_forward_pallas.1} parent=5 // pred_region
      // Predicated region
      $region89: #{nerf_forward_pallas.1} parent=87 // pred_check
        %p528 = pneg %p45
      $region90: #{nerf_forward_pallas.1} parent=87 // pred_check_branch
        %530 = sbr.rel (%p528) target = $region92
      $region91: #{nerf_forward_pallas.1} parent=87 // pred_region
        %s531 = smul.u32 64, %s25
        %p532 = scmp.lt.s32.totalorder %s531, 127
        %s533 = scalar_select %p532, %s531, 127
        %s534 = smul.addr %s533, 4
        %s535 = scalar_lea.vmem %s0, %s534
        %s536 = smul.u32 64, %s25
      $region92: #{nerf_forward_pallas.1} parent=87 // pred_fallthru
        _
    $region88: #{nerf_forward_pallas.1} parent=5 // pred_fallthru
      _
    %p537 = scmp.le.s32.totalorder 1, %s25
    %p538 = scmp.lt.s32.totalorder %s25, 3
    %p539 = pnand %p537, %p538
    %p540 = pneg %p539
    // Predicated region
    $region93: #{nerf_forward_pallas.1} parent=5 // pred_check
      _
    $region94: #{nerf_forward_pallas.1} parent=5 // pred_check_branch
      %542 = sbr.rel (%p539) target = $region96
    $region95: #{nerf_forward_pallas.1} parent=5 // pred_region
      %s543 = ssub.s32 %s25, 1
      %s544 = smul.u32 64, %s30
      %p545 = scmp.lt.s32.totalorder %s544, 127
      %s546 = scalar_select %p545, %s544, 127
      %s547 = smul.addr %s546, 4
      %s548 = scalar_lea.vmem %s0, %s547
      %p549 = pneg %p51
      %p550 = pneg %p48
      %p551 = pneg %p72
      %p552 = pneg %p69
      %p553 = pneg %p93
      %p554 = pneg %p90
      %p555 = pneg %p114
      %p556 = pneg %p111
      %p557 = pneg %p135
      %p558 = pneg %p132
      %p559 = pneg %p156
      %p560 = pneg %p153
      %p561 = pneg %p177
      %p562 = pneg %p174
      %p563 = pneg %p198
      %p564 = pneg %p195
      %p565 = pneg %p219
      %p566 = pneg %p216
      %p567 = pneg %p240
      %p568 = pneg %p237
      %p569 = pneg %p261
      %p570 = pneg %p258
      %p571 = pneg %p282
      %p572 = pneg %p279
      %p573 = pneg %p303
      %p574 = pneg %p300
      %p575 = pneg %p324
      %p576 = pneg %p321
      %p577 = pneg %p345
      %p578 = pneg %p342
      %p579 = pneg %p366
      %p580 = pneg %p363
      %p581 = pneg %p387
      %p582 = pneg %p384
      %p583 = pneg %p408
      %p584 = pneg %p405
      %p585 = pneg %p429
      %p586 = pneg %p426
      %p587 = pneg %p455
      %p588 = pneg %p452
      %s589 = smul.u32 64, %s30
      %p590 = scmp.lt.s32.totalorder %s589, 127
      %s591 = scalar_select %p590, %s589, 127
      %s592 = smul.addr %s591, 8
      %s593 = scalar_lea.vmem %s19, %s592
      %s594 = smul.u32 64, %s30
      %p595 = scmp.lt.s32.totalorder %s594, 127
      %s596 = scalar_select %p595, %s594, 127
      %s597 = smul.addr %s596, 4
      %s598 = scalar_lea.vmem %s0, %s597
      %s599 = smul.u32 64, %s30
      %s600 = smul.u32 64, %s30
      %p601 = scmp.lt.s32.totalorder %s600, 127
      %s602 = scalar_select %p601, %s600, 127
      %s603 = smul.addr %s602, 8
      %s604 = scalar_lea.vmem %s19, %s603
      %s605 = smul.u32 64, %s30
      %v607 = vld [vmem:[%s598] sm:$0xf]
      %v608 = vld [vmem:[%s598 + $0x4] sm:$0xf]
      %v609 = vld [vmem:[%s598 + $0x8] sm:$0xf]
      %v610 = vld [vmem:[%s598 + $0xc] sm:$0xf]
      %v611 = vld [vmem:[%s598 + $0x10] sm:$0xf]
      %v612 = vld [vmem:[%s598 + $0x14] sm:$0xf]
      %v613 = vld [vmem:[%s598 + $0x18] sm:$0xf]
      %v614 = vld [vmem:[%s598 + $0x1c] sm:$0xf]
      %v615 = vld [vmem:[%s598 + $0x20] sm:$0xf]
      %v616 = vld [vmem:[%s598 + $0x24] sm:$0xf]
      %v617 = vld [vmem:[%s598 + $0x28] sm:$0xf]
      %v618 = vld [vmem:[%s598 + $0x2c] sm:$0xf]
      %v619 = vld [vmem:[%s598 + $0x30] sm:$0xf]
      %v620 = vld [vmem:[%s598 + $0x34] sm:$0xf]
      %v621 = vld [vmem:[%s598 + $0x38] sm:$0xf]
      %v622 = vld [vmem:[%s598 + $0x3c] sm:$0xf]
      %v623 = vld [vmem:[%s598 + $0x40] sm:$0xf]
      %v624 = vld [vmem:[%s598 + $0x44] sm:$0xf]
      %v625 = vld [vmem:[%s598 + $0x48] sm:$0xf]
      %v626 = vld [vmem:[%s598 + $0x4c] sm:$0xf]
      %v627 = vld [vmem:[%s598 + $0x50] sm:$0xf]
      %v628 = vld [vmem:[%s598 + $0x54] sm:$0xf]
      %v629 = vld [vmem:[%s598 + $0x58] sm:$0xf]
      %v630 = vld [vmem:[%s598 + $0x5c] sm:$0xf]
      %v631 = vld [vmem:[%s598 + $0x60] sm:$0xf]
      %v632 = vld [vmem:[%s598 + $0x64] sm:$0xf]
      %v633 = vld [vmem:[%s598 + $0x68] sm:$0xf]
      %v634 = vld [vmem:[%s598 + $0x6c] sm:$0xf]
      %v635 = vld [vmem:[%s598 + $0x70] sm:$0xf]
      %v636 = vld [vmem:[%s598 + $0x74] sm:$0xf]
      %v637 = vld [vmem:[%s598 + $0x78] sm:$0xf]
      %v638 = vld [vmem:[%s598 + $0x7c] sm:$0xf]
      %v639 = vld [vmem:[%s598 + $0x80] sm:$0xf]
      %v640 = vld [vmem:[%s598 + $0x84] sm:$0xf]
      %v641 = vld [vmem:[%s598 + $0x88] sm:$0xf]
      %v642 = vld [vmem:[%s598 + $0x8c] sm:$0xf]
      %v643 = vld [vmem:[%s598 + $0x90] sm:$0xf]
      %v644 = vld [vmem:[%s598 + $0x94] sm:$0xf]
      %v645 = vld [vmem:[%s598 + $0x98] sm:$0xf]
      %v646 = vld [vmem:[%s598 + $0x9c] sm:$0xf]
      %v647 = vld [vmem:[%s598 + $0xa0] sm:$0xf]
      %v648 = vld [vmem:[%s598 + $0xa4] sm:$0xf]
      %v649 = vld [vmem:[%s598 + $0xa8] sm:$0xf]
      %v650 = vld [vmem:[%s598 + $0xac] sm:$0xf]
      %v651 = vld [vmem:[%s598 + $0xb0] sm:$0xf]
      %v652 = vld [vmem:[%s598 + $0xb4] sm:$0xf]
      %v653 = vld [vmem:[%s598 + $0xb8] sm:$0xf]
      %v654 = vld [vmem:[%s598 + $0xbc] sm:$0xf]
      %v655 = vld [vmem:[%s598 + $0xc0] sm:$0xf]
      %v656 = vld [vmem:[%s598 + $0xc4] sm:$0xf]
      %v657 = vld [vmem:[%s598 + $0xc8] sm:$0xf]
      %v658 = vld [vmem:[%s598 + $0xcc] sm:$0xf]
      %v659 = vld [vmem:[%s598 + $0xd0] sm:$0xf]
      %v660 = vld [vmem:[%s598 + $0xd4] sm:$0xf]
      %v661 = vld [vmem:[%s598 + $0xd8] sm:$0xf]
      %v662 = vld [vmem:[%s598 + $0xdc] sm:$0xf]
      %v663 = vld [vmem:[%s598 + $0xe0] sm:$0xf]
      %v664 = vld [vmem:[%s598 + $0xe4] sm:$0xf]
      %v665 = vld [vmem:[%s598 + $0xe8] sm:$0xf]
      %v666 = vld [vmem:[%s598 + $0xec] sm:$0xf]
      %v667 = vld [vmem:[%s598 + $0xf0] sm:$0xf]
      %v668 = vld [vmem:[%s598 + $0xf4] sm:$0xf]
      %v669 = vld [vmem:[%s598 + $0xf8] sm:$0xf]
      %v670 = vld [vmem:[%s598 + $0xfc] sm:$0xf]
      %v671 = vld [vmem:[%s1] sm:$0xf]
      %v672 = vld [vmem:[%s1 + $0x4] sm:$0xf]
      %v673 = vld [vmem:[%s1 + $0x8] sm:$0xf]
      %v674 = vld [vmem:[%s1 + $0xc] sm:$0xf]
      %v739 = vunpack.c.l.b16 %v607
      %v740 = vunpack.c.l.b16 %v608
      %v741 = vunpack.c.l.b16 %v609
      %v742 = vunpack.c.l.b16 %v610
      %v743 = vunpack.c.l.b16 %v611
      %v744 = vunpack.c.l.b16 %v612
      %v745 = vunpack.c.l.b16 %v613
      %v746 = vunpack.c.l.b16 %v614
      %v747 = vunpack.c.l.b16 %v615
      %v748 = vunpack.c.l.b16 %v616
      %v749 = vunpack.c.l.b16 %v617
      %v750 = vunpack.c.l.b16 %v618
      %v751 = vunpack.c.l.b16 %v619
      %v752 = vunpack.c.l.b16 %v620
      %v753 = vunpack.c.l.b16 %v621
      %v754 = vunpack.c.l.b16 %v622
      %v755 = vunpack.c.l.b16 %v623
      %v756 = vunpack.c.l.b16 %v624
      %v757 = vunpack.c.l.b16 %v625
      %v758 = vunpack.c.l.b16 %v626
      %v759 = vunpack.c.l.b16 %v627
      %v760 = vunpack.c.l.b16 %v628
      %v761 = vunpack.c.l.b16 %v629
      %v762 = vunpack.c.l.b16 %v630
      %v763 = vunpack.c.l.b16 %v631
      %v764 = vunpack.c.l.b16 %v632
      %v765 = vunpack.c.l.b16 %v633
      %v766 = vunpack.c.l.b16 %v634
      %v767 = vunpack.c.l.b16 %v635
      %v768 = vunpack.c.l.b16 %v636
      %v769 = vunpack.c.l.b16 %v637
      %v770 = vunpack.c.l.b16 %v638
      %v771 = vunpack.c.l.b16 %v639
      %v772 = vunpack.c.l.b16 %v640
      %v773 = vunpack.c.l.b16 %v641
      %v774 = vunpack.c.l.b16 %v642
      %v775 = vunpack.c.l.b16 %v643
      %v776 = vunpack.c.l.b16 %v644
      %v777 = vunpack.c.l.b16 %v645
      %v778 = vunpack.c.l.b16 %v646
      %v779 = vunpack.c.l.b16 %v647
      %v780 = vunpack.c.l.b16 %v648
      %v781 = vunpack.c.l.b16 %v649
      %v782 = vunpack.c.l.b16 %v650
      %v783 = vunpack.c.l.b16 %v651
      %v784 = vunpack.c.l.b16 %v652
      %v785 = vunpack.c.l.b16 %v653
      %v786 = vunpack.c.l.b16 %v654
      %v787 = vunpack.c.l.b16 %v655
      %v788 = vunpack.c.l.b16 %v656
      %v789 = vunpack.c.l.b16 %v657
      %v790 = vunpack.c.l.b16 %v658
      %v791 = vunpack.c.l.b16 %v659
      %v792 = vunpack.c.l.b16 %v660
      %v793 = vunpack.c.l.b16 %v661
      %v794 = vunpack.c.l.b16 %v662
      %v795 = vunpack.c.l.b16 %v663
      %v796 = vunpack.c.l.b16 %v664
      %v797 = vunpack.c.l.b16 %v665
      %v798 = vunpack.c.l.b16 %v666
      %v799 = vunpack.c.l.b16 %v667
      %v800 = vunpack.c.l.b16 %v668
      %v801 = vunpack.c.l.b16 %v669
      %v802 = vunpack.c.l.b16 %v670
      %v803 = vpack.c.b16 %v740, %v739
      %v804 = vpack.c.b16 %v742, %v741
      %v805 = vpack.c.b16 %v744, %v743
      %v806 = vpack.c.b16 %v746, %v745
      %v807 = vpack.c.b16 %v748, %v747
      %v808 = vpack.c.b16 %v750, %v749
      %v809 = vpack.c.b16 %v752, %v751
      %v810 = vpack.c.b16 %v754, %v753
      %v811 = vpack.c.b16 %v756, %v755
      %v812 = vpack.c.b16 %v758, %v757
      %v813 = vpack.c.b16 %v760, %v759
      %v814 = vpack.c.b16 %v762, %v761
      %v815 = vpack.c.b16 %v764, %v763
      %v816 = vpack.c.b16 %v766, %v765
      %v817 = vpack.c.b16 %v768, %v767
      %v818 = vpack.c.b16 %v770, %v769
      %v819 = vpack.c.b16 %v772, %v771
      %v820 = vpack.c.b16 %v774, %v773
      %v821 = vpack.c.b16 %v776, %v775
      %v822 = vpack.c.b16 %v778, %v777
      %v823 = vpack.c.b16 %v780, %v779
      %v824 = vpack.c.b16 %v782, %v781
      %v825 = vpack.c.b16 %v784, %v783
      %v826 = vpack.c.b16 %v786, %v785
      %v827 = vpack.c.b16 %v788, %v787
      %v828 = vpack.c.b16 %v790, %v789
      %v829 = vpack.c.b16 %v792, %v791
      %v830 = vpack.c.b16 %v794, %v793
      %v831 = vpack.c.b16 %v796, %v795
      %v832 = vpack.c.b16 %v798, %v797
      %v833 = vpack.c.b16 %v800, %v799
      %v834 = vpack.c.b16 %v802, %v801
      %v839 = vunpack.c.l.b16 %v671
      %v840 = vunpack.c.l.b16 %v672
      %v841 = vunpack.c.l.b16 %v673
      %v842 = vunpack.c.l.b16 %v674
      %v843 = vpack.c.b16 %v840, %v839
      %v844 = vpack.c.b16 %v842, %v841
      %vm847 = vcmask 261120
      %v849 = vsel %vm847, %v803, 0
      %v852 = vsel %vm847, %v804, 0
      %v855 = vsel %vm847, %v805, 0
      %v858 = vsel %vm847, %v806, 0
      %v861 = vsel %vm847, %v807, 0
      %v864 = vsel %vm847, %v808, 0
      %v867 = vsel %vm847, %v809, 0
      %v870 = vsel %vm847, %v810, 0
      %v873 = vsel %vm847, %v811, 0
      %v876 = vsel %vm847, %v812, 0
      %v879 = vsel %vm847, %v813, 0
      %v882 = vsel %vm847, %v814, 0
      %v885 = vsel %vm847, %v815, 0
      %v888 = vsel %vm847, %v816, 0
      %v891 = vsel %vm847, %v817, 0
      %v894 = vsel %vm847, %v818, 0
      %v897 = vsel %vm847, %v819, 0
      %v900 = vsel %vm847, %v820, 0
      %v903 = vsel %vm847, %v821, 0
      %v906 = vsel %vm847, %v822, 0
      %v909 = vsel %vm847, %v823, 0
      %v912 = vsel %vm847, %v824, 0
      %v915 = vsel %vm847, %v825, 0
      %v918 = vsel %vm847, %v826, 0
      %v921 = vsel %vm847, %v827, 0
      %v924 = vsel %vm847, %v828, 0
      %v927 = vsel %vm847, %v829, 0
      %v930 = vsel %vm847, %v830, 0
      %v933 = vsel %vm847, %v831, 0
      %v936 = vsel %vm847, %v832, 0
      %v939 = vsel %vm847, %v833, 0
      %v942 = vsel %vm847, %v834, 0
      %944 = vmatpush.bf16.msra.mxu0 0
      %945 = vmatpush.bf16.msra.mxu0 0
      %946 = vmatpush.bf16.msra.mxu0 0
      %947 = vmatpush.bf16.msra.mxu0 0
      %948 = vmatpush.bf16.msra.mxu0 0
      %949 = vmatpush.bf16.msra.mxu0 0
      %950 = vmatpush.bf16.msra.mxu0 %v844
      %951 = vmatpush.bf16.msra.mxu0 %v843
      %952 = vmatmul.bf16.gmra.mxu0 %v849
      %v953 = vpop.f32.mrf.mxu0
      %v954 = vadd.f32 0.0, %v953
      %v955 = vpop.f32.mrf.mxu0
      %v956 = vadd.f32 0.0, %v955
      %957 = vmatmul.bf16.gmra.mxu0 %v852
      %v958 = vpop.f32.mrf.mxu0
      %v959 = vadd.f32 0.0, %v958
      %v960 = vpop.f32.mrf.mxu0
      %v961 = vadd.f32 0.0, %v960
      %962 = vmatmul.bf16.gmra.mxu0 %v855
      %v963 = vpop.f32.mrf.mxu0
      %v964 = vadd.f32 0.0, %v963
      %v965 = vpop.f32.mrf.mxu0
      %v966 = vadd.f32 0.0, %v965
      %967 = vmatmul.bf16.gmra.mxu0 %v858
      %v968 = vpop.f32.mrf.mxu0
      %v969 = vadd.f32 0.0, %v968
      %v970 = vpop.f32.mrf.mxu0
      %v971 = vadd.f32 0.0, %v970
      %972 = vmatmul.bf16.gmra.mxu0 %v861
      %v973 = vpop.f32.mrf.mxu0
      %v974 = vadd.f32 0.0, %v973
      %v975 = vpop.f32.mrf.mxu0
      %v976 = vadd.f32 0.0, %v975
      %977 = vmatmul.bf16.gmra.mxu0 %v864
      %v978 = vpop.f32.mrf.mxu0
      %v979 = vadd.f32 0.0, %v978
      %v980 = vpop.f32.mrf.mxu0
      %v981 = vadd.f32 0.0, %v980
      %982 = vmatmul.bf16.gmra.mxu0 %v867
      %v983 = vpop.f32.mrf.mxu0
      %v984 = vadd.f32 0.0, %v983
      %v985 = vpop.f32.mrf.mxu0
      %v986 = vadd.f32 0.0, %v985
      %987 = vmatmul.bf16.gmra.mxu0 %v870
      %v988 = vpop.f32.mrf.mxu0
      %v989 = vadd.f32 0.0, %v988
      %v990 = vpop.f32.mrf.mxu0
      %v991 = vadd.f32 0.0, %v990
      %992 = vmatmul.bf16.gmra.mxu0 %v873
      %v993 = vpop.f32.mrf.mxu0
      %v994 = vadd.f32 0.0, %v993
      %v995 = vpop.f32.mrf.mxu0
      %v996 = vadd.f32 0.0, %v995
      %997 = vmatmul.bf16.gmra.mxu0 %v876
      %v998 = vpop.f32.mrf.mxu0
      %v999 = vadd.f32 0.0, %v998
      %v1000 = vpop.f32.mrf.mxu0
      %v1001 = vadd.f32 0.0, %v1000
      %1002 = vmatmul.bf16.gmra.mxu0 %v879
      %v1003 = vpop.f32.mrf.mxu0
      %v1004 = vadd.f32 0.0, %v1003
      %v1005 = vpop.f32.mrf.mxu0
      %v1006 = vadd.f32 0.0, %v1005
      %1007 = vmatmul.bf16.gmra.mxu0 %v882
      %v1008 = vpop.f32.mrf.mxu0
      %v1009 = vadd.f32 0.0, %v1008
      %v1010 = vpop.f32.mrf.mxu0
      %v1011 = vadd.f32 0.0, %v1010
      %1012 = vmatmul.bf16.gmra.mxu0 %v885
      %v1013 = vpop.f32.mrf.mxu0
      %v1014 = vadd.f32 0.0, %v1013
      %v1015 = vpop.f32.mrf.mxu0
      %v1016 = vadd.f32 0.0, %v1015
      %1017 = vmatmul.bf16.gmra.mxu0 %v888
      %v1018 = vpop.f32.mrf.mxu0
      %v1019 = vadd.f32 0.0, %v1018
      %v1020 = vpop.f32.mrf.mxu0
      %v1021 = vadd.f32 0.0, %v1020
      %1022 = vmatmul.bf16.gmra.mxu0 %v891
      %v1023 = vpop.f32.mrf.mxu0
      %v1024 = vadd.f32 0.0, %v1023
      %v1025 = vpop.f32.mrf.mxu0
      %v1026 = vadd.f32 0.0, %v1025
      %1027 = vmatmul.bf16.gmra.mxu0 %v894
      %v1028 = vpop.f32.mrf.mxu0
      %v1029 = vadd.f32 0.0, %v1028
      %v1030 = vpop.f32.mrf.mxu0
      %v1031 = vadd.f32 0.0, %v1030
      %1032 = vmatmul.bf16.gmra.mxu0 %v897
      %v1033 = vpop.f32.mrf.mxu0
      %v1034 = vadd.f32 0.0, %v1033
      %v1035 = vpop.f32.mrf.mxu0
      %v1036 = vadd.f32 0.0, %v1035
      %1037 = vmatmul.bf16.gmra.mxu0 %v900
      %v1038 = vpop.f32.mrf.mxu0
      %v1039 = vadd.f32 0.0, %v1038
      %v1040 = vpop.f32.mrf.mxu0
      %v1041 = vadd.f32 0.0, %v1040
      %1042 = vmatmul.bf16.gmra.mxu0 %v903
      %v1043 = vpop.f32.mrf.mxu0
      %v1044 = vadd.f32 0.0, %v1043
      %v1045 = vpop.f32.mrf.mxu0
      %v1046 = vadd.f32 0.0, %v1045
      %1047 = vmatmul.bf16.gmra.mxu0 %v906
      %v1048 = vpop.f32.mrf.mxu0
      %v1049 = vadd.f32 0.0, %v1048
      %v1050 = vpop.f32.mrf.mxu0
      %v1051 = vadd.f32 0.0, %v1050
      %1052 = vmatmul.bf16.gmra.mxu0 %v909
      %v1053 = vpop.f32.mrf.mxu0
      %v1054 = vadd.f32 0.0, %v1053
      %v1055 = vpop.f32.mrf.mxu0
      %v1056 = vadd.f32 0.0, %v1055
      %1057 = vmatmul.bf16.gmra.mxu0 %v912
      %v1058 = vpop.f32.mrf.mxu0
      %v1059 = vadd.f32 0.0, %v1058
      %v1060 = vpop.f32.mrf.mxu0
      %v1061 = vadd.f32 0.0, %v1060
      %1062 = vmatmul.bf16.gmra.mxu0 %v915
      %v1063 = vpop.f32.mrf.mxu0
      %v1064 = vadd.f32 0.0, %v1063
      %v1065 = vpop.f32.mrf.mxu0
      %v1066 = vadd.f32 0.0, %v1065
      %1067 = vmatmul.bf16.gmra.mxu0 %v918
      %v1068 = vpop.f32.mrf.mxu0
      %v1069 = vadd.f32 0.0, %v1068
      %v1070 = vpop.f32.mrf.mxu0
      %v1071 = vadd.f32 0.0, %v1070
      %1072 = vmatmul.bf16.gmra.mxu0 %v921
      %v1073 = vpop.f32.mrf.mxu0
      %v1074 = vadd.f32 0.0, %v1073
      %v1075 = vpop.f32.mrf.mxu0
      %v1076 = vadd.f32 0.0, %v1075
      %1077 = vmatmul.bf16.gmra.mxu0 %v924
      %v1078 = vpop.f32.mrf.mxu0
      %v1079 = vadd.f32 0.0, %v1078
      %v1080 = vpop.f32.mrf.mxu0
      %v1081 = vadd.f32 0.0, %v1080
      %1082 = vmatmul.bf16.gmra.mxu0 %v927
      %v1083 = vpop.f32.mrf.mxu0
      %v1084 = vadd.f32 0.0, %v1083
      %v1085 = vpop.f32.mrf.mxu0
      %v1086 = vadd.f32 0.0, %v1085
      %1087 = vmatmul.bf16.gmra.mxu0 %v930
      %v1088 = vpop.f32.mrf.mxu0
      %v1089 = vadd.f32 0.0, %v1088
      %v1090 = vpop.f32.mrf.mxu0
      %v1091 = vadd.f32 0.0, %v1090
      %1092 = vmatmul.bf16.gmra.mxu0 %v933
      %v1093 = vpop.f32.mrf.mxu0
      %v1094 = vadd.f32 0.0, %v1093
      %v1095 = vpop.f32.mrf.mxu0
      %v1096 = vadd.f32 0.0, %v1095
      %1097 = vmatmul.bf16.gmra.mxu0 %v936
      %v1098 = vpop.f32.mrf.mxu0
      %v1099 = vadd.f32 0.0, %v1098
      %v1100 = vpop.f32.mrf.mxu0
      %v1101 = vadd.f32 0.0, %v1100
      %1102 = vmatmul.bf16.gmra.mxu0 %v939
      %v1103 = vpop.f32.mrf.mxu0
      %v1104 = vadd.f32 0.0, %v1103
      %v1105 = vpop.f32.mrf.mxu0
      %v1106 = vadd.f32 0.0, %v1105
      %1107 = vmatmul.bf16.gmra.mxu0 %v942
      %v1108 = vpop.f32.mrf.mxu0
      %v1109 = vadd.f32 0.0, %v1108
      %v1110 = vpop.f32.mrf.mxu0
      %v1111 = vadd.f32 0.0, %v1110
      %1112 = vdwg.mxu0
      %v1113 = vmax.f32 %v954, 0.0
      %v1114 = vmax.f32 %v956, 0.0
      %v1115 = vmax.f32 %v959, 0.0
      %v1116 = vmax.f32 %v961, 0.0
      %v1117 = vmax.f32 %v964, 0.0
      %v1118 = vmax.f32 %v966, 0.0
      %v1119 = vmax.f32 %v969, 0.0
      %v1120 = vmax.f32 %v971, 0.0
      %v1121 = vmax.f32 %v974, 0.0
      %v1122 = vmax.f32 %v976, 0.0
      %v1123 = vmax.f32 %v979, 0.0
      %v1124 = vmax.f32 %v981, 0.0
      %v1125 = vmax.f32 %v984, 0.0
      %v1126 = vmax.f32 %v986, 0.0
      %v1127 = vmax.f32 %v989, 0.0
      %v1128 = vmax.f32 %v991, 0.0
      %v1129 = vmax.f32 %v994, 0.0
      %v1130 = vmax.f32 %v996, 0.0
      %v1131 = vmax.f32 %v999, 0.0
      %v1132 = vmax.f32 %v1001, 0.0
      %v1133 = vmax.f32 %v1004, 0.0
      %v1134 = vmax.f32 %v1006, 0.0
      %v1135 = vmax.f32 %v1009, 0.0
      %v1136 = vmax.f32 %v1011, 0.0
      %v1137 = vmax.f32 %v1014, 0.0
      %v1138 = vmax.f32 %v1016, 0.0
      %v1139 = vmax.f32 %v1019, 0.0
      %v1140 = vmax.f32 %v1021, 0.0
      %v1141 = vmax.f32 %v1024, 0.0
      %v1142 = vmax.f32 %v1026, 0.0
      %v1143 = vmax.f32 %v1029, 0.0
      %v1144 = vmax.f32 %v1031, 0.0
      %v1145 = vmax.f32 %v1034, 0.0
      %v1146 = vmax.f32 %v1036, 0.0
      %v1147 = vmax.f32 %v1039, 0.0
      %v1148 = vmax.f32 %v1041, 0.0
      %v1149 = vmax.f32 %v1044, 0.0
      %v1150 = vmax.f32 %v1046, 0.0
      %v1151 = vmax.f32 %v1049, 0.0
      %v1152 = vmax.f32 %v1051, 0.0
      %v1153 = vmax.f32 %v1054, 0.0
      %v1154 = vmax.f32 %v1056, 0.0
      %v1155 = vmax.f32 %v1059, 0.0
      %v1156 = vmax.f32 %v1061, 0.0
      %v1157 = vmax.f32 %v1064, 0.0
      %v1158 = vmax.f32 %v1066, 0.0
      %v1159 = vmax.f32 %v1069, 0.0
      %v1160 = vmax.f32 %v1071, 0.0
      %v1161 = vmax.f32 %v1074, 0.0
      %v1162 = vmax.f32 %v1076, 0.0
      %v1163 = vmax.f32 %v1079, 0.0
      %v1164 = vmax.f32 %v1081, 0.0
      %v1165 = vmax.f32 %v1084, 0.0
      %v1166 = vmax.f32 %v1086, 0.0
      %v1167 = vmax.f32 %v1089, 0.0
      %v1168 = vmax.f32 %v1091, 0.0
      %v1169 = vmax.f32 %v1094, 0.0
      %v1170 = vmax.f32 %v1096, 0.0
      %v1171 = vmax.f32 %v1099, 0.0
      %v1172 = vmax.f32 %v1101, 0.0
      %v1173 = vmax.f32 %v1104, 0.0
      %v1174 = vmax.f32 %v1106, 0.0
      %v1175 = vmax.f32 %v1109, 0.0
      %v1176 = vmax.f32 %v1111, 0.0
      %v1177 = vpack.c.bf16 %v1114, %v1113
      %v1178 = vpack.c.bf16 %v1116, %v1115
      %v1179 = vpack.c.bf16 %v1118, %v1117
      %v1180 = vpack.c.bf16 %v1120, %v1119
      %v1181 = vpack.c.bf16 %v1122, %v1121
      %v1182 = vpack.c.bf16 %v1124, %v1123
      %v1183 = vpack.c.bf16 %v1126, %v1125
      %v1184 = vpack.c.bf16 %v1128, %v1127
      %v1185 = vpack.c.bf16 %v1130, %v1129
      %v1186 = vpack.c.bf16 %v1132, %v1131
      %v1187 = vpack.c.bf16 %v1134, %v1133
      %v1188 = vpack.c.bf16 %v1136, %v1135
      %v1189 = vpack.c.bf16 %v1138, %v1137
      %v1190 = vpack.c.bf16 %v1140, %v1139
      %v1191 = vpack.c.bf16 %v1142, %v1141
      %v1192 = vpack.c.bf16 %v1144, %v1143
      %v1193 = vpack.c.bf16 %v1146, %v1145
      %v1194 = vpack.c.bf16 %v1148, %v1147
      %v1195 = vpack.c.bf16 %v1150, %v1149
      %v1196 = vpack.c.bf16 %v1152, %v1151
      %v1197 = vpack.c.bf16 %v1154, %v1153
      %v1198 = vpack.c.bf16 %v1156, %v1155
      %v1199 = vpack.c.bf16 %v1158, %v1157
      %v1200 = vpack.c.bf16 %v1160, %v1159
      %v1201 = vpack.c.bf16 %v1162, %v1161
      %v1202 = vpack.c.bf16 %v1164, %v1163
      %v1203 = vpack.c.bf16 %v1166, %v1165
      %v1204 = vpack.c.bf16 %v1168, %v1167
      %v1205 = vpack.c.bf16 %v1170, %v1169
      %v1206 = vpack.c.bf16 %v1172, %v1171
      %v1207 = vpack.c.bf16 %v1174, %v1173
      %v1208 = vpack.c.bf16 %v1176, %v1175
      %v1209 = vld [vmem:[%s2] sm:$0xf]
      %v1210 = vld [vmem:[%s2 + $0x4] sm:$0xf]
      %v1211 = vld [vmem:[%s2 + $0x8] sm:$0xf]
      %v1212 = vld [vmem:[%s2 + $0xc] sm:$0xf]
      %v1213 = vld [vmem:[%s2 + $0x10] sm:$0xf]
      %v1214 = vld [vmem:[%s2 + $0x14] sm:$0xf]
      %v1215 = vld [vmem:[%s2 + $0x18] sm:$0xf]
      %v1216 = vld [vmem:[%s2 + $0x1c] sm:$0xf]
      %v1225 = vunpack.c.l.b16 %v1209
      %v1226 = vunpack.c.l.b16 %v1210
      %v1227 = vunpack.c.l.b16 %v1211
      %v1228 = vunpack.c.l.b16 %v1212
      %v1229 = vunpack.c.l.b16 %v1213
      %v1230 = vunpack.c.l.b16 %v1214
      %v1231 = vunpack.c.l.b16 %v1215
      %v1232 = vunpack.c.l.b16 %v1216
      %v1233 = vpack.c.b16 %v1226, %v1225
      %v1234 = vpack.c.b16 %v1228, %v1227
      %v1235 = vpack.c.b16 %v1230, %v1229
      %v1236 = vpack.c.b16 %v1232, %v1231
      %vm1241 = vcmask 523264
      %v1243 = vsel %vm1241, %v1177, 0
      %v1246 = vsel %vm1241, %v1178, 0
      %v1249 = vsel %vm1241, %v1179, 0
      %v1252 = vsel %vm1241, %v1180, 0
      %v1255 = vsel %vm1241, %v1181, 0
      %v1258 = vsel %vm1241, %v1182, 0
      %v1261 = vsel %vm1241, %v1183, 0
      %v1264 = vsel %vm1241, %v1184, 0
      %v1267 = vsel %vm1241, %v1185, 0
      %v1270 = vsel %vm1241, %v1186, 0
      %v1273 = vsel %vm1241, %v1187, 0
      %v1276 = vsel %vm1241, %v1188, 0
      %v1279 = vsel %vm1241, %v1189, 0
      %v1282 = vsel %vm1241, %v1190, 0
      %v1285 = vsel %vm1241, %v1191, 0
      %v1288 = vsel %vm1241, %v1192, 0
      %v1291 = vsel %vm1241, %v1193, 0
      %v1294 = vsel %vm1241, %v1194, 0
      %v1297 = vsel %vm1241, %v1195, 0
      %v1300 = vsel %vm1241, %v1196, 0
      %v1303 = vsel %vm1241, %v1197, 0
      %v1306 = vsel %vm1241, %v1198, 0
      %v1309 = vsel %vm1241, %v1199, 0
      %v1312 = vsel %vm1241, %v1200, 0
      %v1315 = vsel %vm1241, %v1201, 0
      %v1318 = vsel %vm1241, %v1202, 0
      %v1321 = vsel %vm1241, %v1203, 0
      %v1324 = vsel %vm1241, %v1204, 0
      %v1327 = vsel %vm1241, %v1205, 0
      %v1330 = vsel %vm1241, %v1206, 0
      %v1333 = vsel %vm1241, %v1207, 0
      %v1336 = vsel %vm1241, %v1208, 0
      %1338 = vmatpush.bf16.msra.mxu0 0
      %1339 = vmatpush.bf16.msra.mxu0 0
      %1340 = vmatpush.bf16.msra.mxu0 0
      %1341 = vmatpush.bf16.msra.mxu0 0
      %1342 = vmatpush.bf16.msra.mxu0 %v1236
      %1343 = vmatpush.bf16.msra.mxu0 %v1235
      %1344 = vmatpush.bf16.msra.mxu0 %v1234
      %1345 = vmatpush.bf16.msra.mxu0 %v1233
      %1346 = vmatmul.bf16.gmra.mxu0 %v1243
      %v1347 = vpop.f32.mrf.mxu0
      %v1348 = vadd.f32 0.0, %v1347
      %v1349 = vpop.f32.mrf.mxu0
      %v1350 = vadd.f32 0.0, %v1349
      %1351 = vmatmul.bf16.gmra.mxu0 %v1246
      %v1352 = vpop.f32.mrf.mxu0
      %v1353 = vadd.f32 0.0, %v1352
      %v1354 = vpop.f32.mrf.mxu0
      %v1355 = vadd.f32 0.0, %v1354
      %1356 = vmatmul.bf16.gmra.mxu0 %v1249
      %v1357 = vpop.f32.mrf.mxu0
      %v1358 = vadd.f32 0.0, %v1357
      %v1359 = vpop.f32.mrf.mxu0
      %v1360 = vadd.f32 0.0, %v1359
      %1361 = vmatmul.bf16.gmra.mxu0 %v1252
      %v1362 = vpop.f32.mrf.mxu0
      %v1363 = vadd.f32 0.0, %v1362
      %v1364 = vpop.f32.mrf.mxu0
      %v1365 = vadd.f32 0.0, %v1364
      %1366 = vmatmul.bf16.gmra.mxu0 %v1255
      %v1367 = vpop.f32.mrf.mxu0
      %v1368 = vadd.f32 0.0, %v1367
      %v1369 = vpop.f32.mrf.mxu0
      %v1370 = vadd.f32 0.0, %v1369
      %1371 = vmatmul.bf16.gmra.mxu0 %v1258
      %v1372 = vpop.f32.mrf.mxu0
      %v1373 = vadd.f32 0.0, %v1372
      %v1374 = vpop.f32.mrf.mxu0
      %v1375 = vadd.f32 0.0, %v1374
      %1376 = vmatmul.bf16.gmra.mxu0 %v1261
      %v1377 = vpop.f32.mrf.mxu0
      %v1378 = vadd.f32 0.0, %v1377
      %v1379 = vpop.f32.mrf.mxu0
      %v1380 = vadd.f32 0.0, %v1379
      %1381 = vmatmul.bf16.gmra.mxu0 %v1264
      %v1382 = vpop.f32.mrf.mxu0
      %v1383 = vadd.f32 0.0, %v1382
      %v1384 = vpop.f32.mrf.mxu0
      %v1385 = vadd.f32 0.0, %v1384
      %1386 = vmatmul.bf16.gmra.mxu0 %v1267
      %v1387 = vpop.f32.mrf.mxu0
      %v1388 = vadd.f32 0.0, %v1387
      %v1389 = vpop.f32.mrf.mxu0
      %v1390 = vadd.f32 0.0, %v1389
      %1391 = vmatmul.bf16.gmra.mxu0 %v1270
      %v1392 = vpop.f32.mrf.mxu0
      %v1393 = vadd.f32 0.0, %v1392
      %v1394 = vpop.f32.mrf.mxu0
      %v1395 = vadd.f32 0.0, %v1394
      %1396 = vmatmul.bf16.gmra.mxu0 %v1273
      %v1397 = vpop.f32.mrf.mxu0
      %v1398 = vadd.f32 0.0, %v1397
      %v1399 = vpop.f32.mrf.mxu0
      %v1400 = vadd.f32 0.0, %v1399
      %1401 = vmatmul.bf16.gmra.mxu0 %v1276
      %v1402 = vpop.f32.mrf.mxu0
      %v1403 = vadd.f32 0.0, %v1402
      %v1404 = vpop.f32.mrf.mxu0
      %v1405 = vadd.f32 0.0, %v1404
      %1406 = vmatmul.bf16.gmra.mxu0 %v1279
      %v1407 = vpop.f32.mrf.mxu0
      %v1408 = vadd.f32 0.0, %v1407
      %v1409 = vpop.f32.mrf.mxu0
      %v1410 = vadd.f32 0.0, %v1409
      %1411 = vmatmul.bf16.gmra.mxu0 %v1282
      %v1412 = vpop.f32.mrf.mxu0
      %v1413 = vadd.f32 0.0, %v1412
      %v1414 = vpop.f32.mrf.mxu0
      %v1415 = vadd.f32 0.0, %v1414
      %1416 = vmatmul.bf16.gmra.mxu0 %v1285
      %v1417 = vpop.f32.mrf.mxu0
      %v1418 = vadd.f32 0.0, %v1417
      %v1419 = vpop.f32.mrf.mxu0
      %v1420 = vadd.f32 0.0, %v1419
      %1421 = vmatmul.bf16.gmra.mxu0 %v1288
      %v1422 = vpop.f32.mrf.mxu0
      %v1423 = vadd.f32 0.0, %v1422
      %v1424 = vpop.f32.mrf.mxu0
      %v1425 = vadd.f32 0.0, %v1424
      %1426 = vmatmul.bf16.gmra.mxu0 %v1291
      %v1427 = vpop.f32.mrf.mxu0
      %v1428 = vadd.f32 0.0, %v1427
      %v1429 = vpop.f32.mrf.mxu0
      %v1430 = vadd.f32 0.0, %v1429
      %1431 = vmatmul.bf16.gmra.mxu0 %v1294
      %v1432 = vpop.f32.mrf.mxu0
      %v1433 = vadd.f32 0.0, %v1432
      %v1434 = vpop.f32.mrf.mxu0
      %v1435 = vadd.f32 0.0, %v1434
      %1436 = vmatmul.bf16.gmra.mxu0 %v1297
      %v1437 = vpop.f32.mrf.mxu0
      %v1438 = vadd.f32 0.0, %v1437
      %v1439 = vpop.f32.mrf.mxu0
      %v1440 = vadd.f32 0.0, %v1439
      %1441 = vmatmul.bf16.gmra.mxu0 %v1300
      %v1442 = vpop.f32.mrf.mxu0
      %v1443 = vadd.f32 0.0, %v1442
      %v1444 = vpop.f32.mrf.mxu0
      %v1445 = vadd.f32 0.0, %v1444
      %1446 = vmatmul.bf16.gmra.mxu0 %v1303
      %v1447 = vpop.f32.mrf.mxu0
      %v1448 = vadd.f32 0.0, %v1447
      %v1449 = vpop.f32.mrf.mxu0
      %v1450 = vadd.f32 0.0, %v1449
      %1451 = vmatmul.bf16.gmra.mxu0 %v1306
      %v1452 = vpop.f32.mrf.mxu0
      %v1453 = vadd.f32 0.0, %v1452
      %v1454 = vpop.f32.mrf.mxu0
      %v1455 = vadd.f32 0.0, %v1454
      %1456 = vmatmul.bf16.gmra.mxu0 %v1309
      %v1457 = vpop.f32.mrf.mxu0
      %v1458 = vadd.f32 0.0, %v1457
      %v1459 = vpop.f32.mrf.mxu0
      %v1460 = vadd.f32 0.0, %v1459
      %1461 = vmatmul.bf16.gmra.mxu0 %v1312
      %v1462 = vpop.f32.mrf.mxu0
      %v1463 = vadd.f32 0.0, %v1462
      %v1464 = vpop.f32.mrf.mxu0
      %v1465 = vadd.f32 0.0, %v1464
      %1466 = vmatmul.bf16.gmra.mxu0 %v1315
      %v1467 = vpop.f32.mrf.mxu0
      %v1468 = vadd.f32 0.0, %v1467
      %v1469 = vpop.f32.mrf.mxu0
      %v1470 = vadd.f32 0.0, %v1469
      %1471 = vmatmul.bf16.gmra.mxu0 %v1318
      %v1472 = vpop.f32.mrf.mxu0
      %v1473 = vadd.f32 0.0, %v1472
      %v1474 = vpop.f32.mrf.mxu0
      %v1475 = vadd.f32 0.0, %v1474
      %1476 = vmatmul.bf16.gmra.mxu0 %v1321
      %v1477 = vpop.f32.mrf.mxu0
      %v1478 = vadd.f32 0.0, %v1477
      %v1479 = vpop.f32.mrf.mxu0
      %v1480 = vadd.f32 0.0, %v1479
      %1481 = vmatmul.bf16.gmra.mxu0 %v1324
      %v1482 = vpop.f32.mrf.mxu0
      %v1483 = vadd.f32 0.0, %v1482
      %v1484 = vpop.f32.mrf.mxu0
      %v1485 = vadd.f32 0.0, %v1484
      %1486 = vmatmul.bf16.gmra.mxu0 %v1327
      %v1487 = vpop.f32.mrf.mxu0
      %v1488 = vadd.f32 0.0, %v1487
      %v1489 = vpop.f32.mrf.mxu0
      %v1490 = vadd.f32 0.0, %v1489
      %1491 = vmatmul.bf16.gmra.mxu0 %v1330
      %v1492 = vpop.f32.mrf.mxu0
      %v1493 = vadd.f32 0.0, %v1492
      %v1494 = vpop.f32.mrf.mxu0
      %v1495 = vadd.f32 0.0, %v1494
      %1496 = vmatmul.bf16.gmra.mxu0 %v1333
      %v1497 = vpop.f32.mrf.mxu0
      %v1498 = vadd.f32 0.0, %v1497
      %v1499 = vpop.f32.mrf.mxu0
      %v1500 = vadd.f32 0.0, %v1499
      %1501 = vmatmul.bf16.gmra.mxu0 %v1336
      %v1502 = vpop.f32.mrf.mxu0
      %v1503 = vadd.f32 0.0, %v1502
      %v1504 = vpop.f32.mrf.mxu0
      %v1505 = vadd.f32 0.0, %v1504
      %1506 = vdwg.mxu0
      %v1507 = vpack.c.bf16 %v1350, %v1348
      %v1508 = vpack.c.bf16 %v1355, %v1353
      %v1509 = vpack.c.bf16 %v1360, %v1358
      %v1510 = vpack.c.bf16 %v1365, %v1363
      %v1511 = vpack.c.bf16 %v1370, %v1368
      %v1512 = vpack.c.bf16 %v1375, %v1373
      %v1513 = vpack.c.bf16 %v1380, %v1378
      %v1514 = vpack.c.bf16 %v1385, %v1383
      %v1515 = vpack.c.bf16 %v1390, %v1388
      %v1516 = vpack.c.bf16 %v1395, %v1393
      %v1517 = vpack.c.bf16 %v1400, %v1398
      %v1518 = vpack.c.bf16 %v1405, %v1403
      %v1519 = vpack.c.bf16 %v1410, %v1408
      %v1520 = vpack.c.bf16 %v1415, %v1413
      %v1521 = vpack.c.bf16 %v1420, %v1418
      %v1522 = vpack.c.bf16 %v1425, %v1423
      %v1523 = vpack.c.bf16 %v1430, %v1428
      %v1524 = vpack.c.bf16 %v1435, %v1433
      %v1525 = vpack.c.bf16 %v1440, %v1438
      %v1526 = vpack.c.bf16 %v1445, %v1443
      %v1527 = vpack.c.bf16 %v1450, %v1448
      %v1528 = vpack.c.bf16 %v1455, %v1453
      %v1529 = vpack.c.bf16 %v1460, %v1458
      %v1530 = vpack.c.bf16 %v1465, %v1463
      %v1531 = vpack.c.bf16 %v1470, %v1468
      %v1532 = vpack.c.bf16 %v1475, %v1473
      %v1533 = vpack.c.bf16 %v1480, %v1478
      %v1534 = vpack.c.bf16 %v1485, %v1483
      %v1535 = vpack.c.bf16 %v1490, %v1488
      %v1536 = vpack.c.bf16 %v1495, %v1493
      %v1537 = vpack.c.bf16 %v1500, %v1498
      %v1538 = vpack.c.bf16 %v1505, %v1503
      %v1539 = vld [vmem:[%s3] sm:$0xf]
      %v1540 = vld [vmem:[%s3 + $0x4] sm:$0xf]
      %v1541 = vld [vmem:[%s4] sm:$0xf]
      %v1542 = vld [vmem:[%s4 + $0x4] sm:$0xf]
      %v1543 = vld [vmem:[%s4 + $0x8] sm:$0xf]
      %v1544 = vld [vmem:[%s4 + $0xc] sm:$0xf]
      %v1545 = vld [vmem:[%s4 + $0x10] sm:$0xf]
      %v1546 = vld [vmem:[%s4 + $0x14] sm:$0xf]
      %v1547 = vld [vmem:[%s4 + $0x18] sm:$0xf]
      %v1548 = vld [vmem:[%s4 + $0x1c] sm:$0xf]
      %1549 = vrot.lane.b32.xlu0 %v803, 96
      %v1550 = vpop.permute.xlu0 %1549
      %1551 = vrot.lane.b32.xlu0 %v804, 96
      %v1552 = vpop.permute.xlu0 %1551
      %1553 = vrot.lane.b32.xlu0 %v805, 96
      %v1554 = vpop.permute.xlu0 %1553
      %1555 = vrot.lane.b32.xlu0 %v806, 96
      %v1556 = vpop.permute.xlu0 %1555
      %1557 = vrot.lane.b32.xlu0 %v807, 96
      %v1558 = vpop.permute.xlu0 %1557
      %1559 = vrot.lane.b32.xlu0 %v808, 96
      %v1560 = vpop.permute.xlu0 %1559
      %1561 = vrot.lane.b32.xlu0 %v809, 96
      %v1562 = vpop.permute.xlu0 %1561
      %1563 = vrot.lane.b32.xlu0 %v810, 96
      %v1564 = vpop.permute.xlu0 %1563
      %1565 = vrot.lane.b32.xlu0 %v811, 96
      %v1566 = vpop.permute.xlu0 %1565
      %1567 = vrot.lane.b32.xlu0 %v812, 96
      %v1568 = vpop.permute.xlu0 %1567
      %1569 = vrot.lane.b32.xlu0 %v813, 96
      %v1570 = vpop.permute.xlu0 %1569
      %1571 = vrot.lane.b32.xlu0 %v814, 96
      %v1572 = vpop.permute.xlu0 %1571
      %1573 = vrot.lane.b32.xlu0 %v815, 96
      %v1574 = vpop.permute.xlu0 %1573
      %1575 = vrot.lane.b32.xlu0 %v816, 96
      %v1576 = vpop.permute.xlu0 %1575
      %1577 = vrot.lane.b32.xlu0 %v817, 96
      %v1578 = vpop.permute.xlu0 %1577
      %1579 = vrot.lane.b32.xlu0 %v818, 96
      %v1580 = vpop.permute.xlu0 %1579
      %1581 = vrot.lane.b32.xlu0 %v819, 96
      %v1582 = vpop.permute.xlu0 %1581
      %1583 = vrot.lane.b32.xlu0 %v820, 96
      %v1584 = vpop.permute.xlu0 %1583
      %1585 = vrot.lane.b32.xlu0 %v821, 96
      %v1586 = vpop.permute.xlu0 %1585
      %1587 = vrot.lane.b32.xlu0 %v822, 96
      %v1588 = vpop.permute.xlu0 %1587
      %1589 = vrot.lane.b32.xlu0 %v823, 96
      %v1590 = vpop.permute.xlu0 %1589
      %1591 = vrot.lane.b32.xlu0 %v824, 96
      %v1592 = vpop.permute.xlu0 %1591
      %1593 = vrot.lane.b32.xlu0 %v825, 96
      %v1594 = vpop.permute.xlu0 %1593
      %1595 = vrot.lane.b32.xlu0 %v826, 96
      %v1596 = vpop.permute.xlu0 %1595
      %1597 = vrot.lane.b32.xlu0 %v827, 96
      %v1598 = vpop.permute.xlu0 %1597
      %1599 = vrot.lane.b32.xlu0 %v828, 96
      %v1600 = vpop.permute.xlu0 %1599
      %1601 = vrot.lane.b32.xlu0 %v829, 96
      %v1602 = vpop.permute.xlu0 %1601
      %1603 = vrot.lane.b32.xlu0 %v830, 96
      %v1604 = vpop.permute.xlu0 %1603
      %1605 = vrot.lane.b32.xlu0 %v831, 96
      %v1606 = vpop.permute.xlu0 %1605
      %1607 = vrot.lane.b32.xlu0 %v832, 96
      %v1608 = vpop.permute.xlu0 %1607
      %1609 = vrot.lane.b32.xlu0 %v833, 96
      %v1610 = vpop.permute.xlu0 %1609
      %1611 = vrot.lane.b32.xlu0 %v834, 96
      %v1612 = vpop.permute.xlu0 %1611
      %v1621 = vunpack.c.l.b16 %v1541
      %v1622 = vunpack.c.l.b16 %v1542
      %v1623 = vunpack.c.l.b16 %v1543
      %v1624 = vunpack.c.l.b16 %v1544
      %v1625 = vunpack.c.l.b16 %v1545
      %v1626 = vunpack.c.l.b16 %v1546
      %v1627 = vunpack.c.l.b16 %v1547
      %v1628 = vunpack.c.l.b16 %v1548
      %v1629 = vpack.c.b16 %v1622, %v1621
      %v1630 = vpack.c.b16 %v1624, %v1623
      %v1631 = vpack.c.b16 %v1626, %v1625
      %v1632 = vpack.c.b16 %v1628, %v1627
      %v1638 = vsel %vm1241, %v1550, 0
      %v1641 = vsel %vm1241, %v1552, 0
      %v1644 = vsel %vm1241, %v1554, 0
      %v1647 = vsel %vm1241, %v1556, 0
      %v1650 = vsel %vm1241, %v1558, 0
      %v1653 = vsel %vm1241, %v1560, 0
      %v1656 = vsel %vm1241, %v1562, 0
      %v1659 = vsel %vm1241, %v1564, 0
      %v1662 = vsel %vm1241, %v1566, 0
      %v1665 = vsel %vm1241, %v1568, 0
      %v1668 = vsel %vm1241, %v1570, 0
      %v1671 = vsel %vm1241, %v1572, 0
      %v1674 = vsel %vm1241, %v1574, 0
      %v1677 = vsel %vm1241, %v1576, 0
      %v1680 = vsel %vm1241, %v1578, 0
      %v1683 = vsel %vm1241, %v1580, 0
      %v1686 = vsel %vm1241, %v1582, 0
      %v1689 = vsel %vm1241, %v1584, 0
      %v1692 = vsel %vm1241, %v1586, 0
      %v1695 = vsel %vm1241, %v1588, 0
      %v1698 = vsel %vm1241, %v1590, 0
      %v1701 = vsel %vm1241, %v1592, 0
      %v1704 = vsel %vm1241, %v1594, 0
      %v1707 = vsel %vm1241, %v1596, 0
      %v1710 = vsel %vm1241, %v1598, 0
      %v1713 = vsel %vm1241, %v1600, 0
      %v1716 = vsel %vm1241, %v1602, 0
      %v1719 = vsel %vm1241, %v1604, 0
      %v1722 = vsel %vm1241, %v1606, 0
      %v1725 = vsel %vm1241, %v1608, 0
      %v1728 = vsel %vm1241, %v1610, 0
      %v1731 = vsel %vm1241, %v1612, 0
      %1733 = vmatpush.bf16.msra.mxu0 0
      %1734 = vmatpush.bf16.msra.mxu0 0
      %1735 = vmatpush.bf16.msra.mxu0 0
      %1736 = vmatpush.bf16.msra.mxu0 0
      %1737 = vmatpush.bf16.msra.mxu0 %v1632
      %1738 = vmatpush.bf16.msra.mxu0 %v1631
      %1739 = vmatpush.bf16.msra.mxu0 %v1630
      %1740 = vmatpush.bf16.msra.mxu0 %v1629
      %1741 = vmatmul.bf16.gmra.mxu0 %v1638
      %v1742 = vpop.f32.mrf.mxu0
      %v1743 = vadd.f32 0.0, %v1742
      %v1744 = vpop.f32.mrf.mxu0
      %v1745 = vadd.f32 0.0, %v1744
      %1746 = vmatmul.bf16.gmra.mxu0 %v1641
      %v1747 = vpop.f32.mrf.mxu0
      %v1748 = vadd.f32 0.0, %v1747
      %v1749 = vpop.f32.mrf.mxu0
      %v1750 = vadd.f32 0.0, %v1749
      %1751 = vmatmul.bf16.gmra.mxu0 %v1644
      %v1752 = vpop.f32.mrf.mxu0
      %v1753 = vadd.f32 0.0, %v1752
      %v1754 = vpop.f32.mrf.mxu0
      %v1755 = vadd.f32 0.0, %v1754
      %1756 = vmatmul.bf16.gmra.mxu0 %v1647
      %v1757 = vpop.f32.mrf.mxu0
      %v1758 = vadd.f32 0.0, %v1757
      %v1759 = vpop.f32.mrf.mxu0
      %v1760 = vadd.f32 0.0, %v1759
      %1761 = vmatmul.bf16.gmra.mxu0 %v1650
      %v1762 = vpop.f32.mrf.mxu0
      %v1763 = vadd.f32 0.0, %v1762
      %v1764 = vpop.f32.mrf.mxu0
      %v1765 = vadd.f32 0.0, %v1764
      %1766 = vmatmul.bf16.gmra.mxu0 %v1653
      %v1767 = vpop.f32.mrf.mxu0
      %v1768 = vadd.f32 0.0, %v1767
      %v1769 = vpop.f32.mrf.mxu0
      %v1770 = vadd.f32 0.0, %v1769
      %1771 = vmatmul.bf16.gmra.mxu0 %v1656
      %v1772 = vpop.f32.mrf.mxu0
      %v1773 = vadd.f32 0.0, %v1772
      %v1774 = vpop.f32.mrf.mxu0
      %v1775 = vadd.f32 0.0, %v1774
      %1776 = vmatmul.bf16.gmra.mxu0 %v1659
      %v1777 = vpop.f32.mrf.mxu0
      %v1778 = vadd.f32 0.0, %v1777
      %v1779 = vpop.f32.mrf.mxu0
      %v1780 = vadd.f32 0.0, %v1779
      %1781 = vmatmul.bf16.gmra.mxu0 %v1662
      %v1782 = vpop.f32.mrf.mxu0
      %v1783 = vadd.f32 0.0, %v1782
      %v1784 = vpop.f32.mrf.mxu0
      %v1785 = vadd.f32 0.0, %v1784
      %1786 = vmatmul.bf16.gmra.mxu0 %v1665
      %v1787 = vpop.f32.mrf.mxu0
      %v1788 = vadd.f32 0.0, %v1787
      %v1789 = vpop.f32.mrf.mxu0
      %v1790 = vadd.f32 0.0, %v1789
      %1791 = vmatmul.bf16.gmra.mxu0 %v1668
      %v1792 = vpop.f32.mrf.mxu0
      %v1793 = vadd.f32 0.0, %v1792
      %v1794 = vpop.f32.mrf.mxu0
      %v1795 = vadd.f32 0.0, %v1794
      %1796 = vmatmul.bf16.gmra.mxu0 %v1671
      %v1797 = vpop.f32.mrf.mxu0
      %v1798 = vadd.f32 0.0, %v1797
      %v1799 = vpop.f32.mrf.mxu0
      %v1800 = vadd.f32 0.0, %v1799
      %1801 = vmatmul.bf16.gmra.mxu0 %v1674
      %v1802 = vpop.f32.mrf.mxu0
      %v1803 = vadd.f32 0.0, %v1802
      %v1804 = vpop.f32.mrf.mxu0
      %v1805 = vadd.f32 0.0, %v1804
      %1806 = vmatmul.bf16.gmra.mxu0 %v1677
      %v1807 = vpop.f32.mrf.mxu0
      %v1808 = vadd.f32 0.0, %v1807
      %v1809 = vpop.f32.mrf.mxu0
      %v1810 = vadd.f32 0.0, %v1809
      %1811 = vmatmul.bf16.gmra.mxu0 %v1680
      %v1812 = vpop.f32.mrf.mxu0
      %v1813 = vadd.f32 0.0, %v1812
      %v1814 = vpop.f32.mrf.mxu0
      %v1815 = vadd.f32 0.0, %v1814
      %1816 = vmatmul.bf16.gmra.mxu0 %v1683
      %v1817 = vpop.f32.mrf.mxu0
      %v1818 = vadd.f32 0.0, %v1817
      %v1819 = vpop.f32.mrf.mxu0
      %v1820 = vadd.f32 0.0, %v1819
      %1821 = vmatmul.bf16.gmra.mxu0 %v1686
      %v1822 = vpop.f32.mrf.mxu0
      %v1823 = vadd.f32 0.0, %v1822
      %v1824 = vpop.f32.mrf.mxu0
      %v1825 = vadd.f32 0.0, %v1824
      %1826 = vmatmul.bf16.gmra.mxu0 %v1689
      %v1827 = vpop.f32.mrf.mxu0
      %v1828 = vadd.f32 0.0, %v1827
      %v1829 = vpop.f32.mrf.mxu0
      %v1830 = vadd.f32 0.0, %v1829
      %1831 = vmatmul.bf16.gmra.mxu0 %v1692
      %v1832 = vpop.f32.mrf.mxu0
      %v1833 = vadd.f32 0.0, %v1832
      %v1834 = vpop.f32.mrf.mxu0
      %v1835 = vadd.f32 0.0, %v1834
      %1836 = vmatmul.bf16.gmra.mxu0 %v1695
      %v1837 = vpop.f32.mrf.mxu0
      %v1838 = vadd.f32 0.0, %v1837
      %v1839 = vpop.f32.mrf.mxu0
      %v1840 = vadd.f32 0.0, %v1839
      %1841 = vmatmul.bf16.gmra.mxu0 %v1698
      %v1842 = vpop.f32.mrf.mxu0
      %v1843 = vadd.f32 0.0, %v1842
      %v1844 = vpop.f32.mrf.mxu0
      %v1845 = vadd.f32 0.0, %v1844
      %1846 = vmatmul.bf16.gmra.mxu0 %v1701
      %v1847 = vpop.f32.mrf.mxu0
      %v1848 = vadd.f32 0.0, %v1847
      %v1849 = vpop.f32.mrf.mxu0
      %v1850 = vadd.f32 0.0, %v1849
      %1851 = vmatmul.bf16.gmra.mxu0 %v1704
      %v1852 = vpop.f32.mrf.mxu0
      %v1853 = vadd.f32 0.0, %v1852
      %v1854 = vpop.f32.mrf.mxu0
      %v1855 = vadd.f32 0.0, %v1854
      %1856 = vmatmul.bf16.gmra.mxu0 %v1707
      %v1857 = vpop.f32.mrf.mxu0
      %v1858 = vadd.f32 0.0, %v1857
      %v1859 = vpop.f32.mrf.mxu0
      %v1860 = vadd.f32 0.0, %v1859
      %1861 = vmatmul.bf16.gmra.mxu0 %v1710
      %v1862 = vpop.f32.mrf.mxu0
      %v1863 = vadd.f32 0.0, %v1862
      %v1864 = vpop.f32.mrf.mxu0
      %v1865 = vadd.f32 0.0, %v1864
      %1866 = vmatmul.bf16.gmra.mxu0 %v1713
      %v1867 = vpop.f32.mrf.mxu0
      %v1868 = vadd.f32 0.0, %v1867
      %v1869 = vpop.f32.mrf.mxu0
      %v1870 = vadd.f32 0.0, %v1869
      %1871 = vmatmul.bf16.gmra.mxu0 %v1716
      %v1872 = vpop.f32.mrf.mxu0
      %v1873 = vadd.f32 0.0, %v1872
      %v1874 = vpop.f32.mrf.mxu0
      %v1875 = vadd.f32 0.0, %v1874
      %1876 = vmatmul.bf16.gmra.mxu0 %v1719
      %v1877 = vpop.f32.mrf.mxu0
      %v1878 = vadd.f32 0.0, %v1877
      %v1879 = vpop.f32.mrf.mxu0
      %v1880 = vadd.f32 0.0, %v1879
      %1881 = vmatmul.bf16.gmra.mxu0 %v1722
      %v1882 = vpop.f32.mrf.mxu0
      %v1883 = vadd.f32 0.0, %v1882
      %v1884 = vpop.f32.mrf.mxu0
      %v1885 = vadd.f32 0.0, %v1884
      %1886 = vmatmul.bf16.gmra.mxu0 %v1725
      %v1887 = vpop.f32.mrf.mxu0
      %v1888 = vadd.f32 0.0, %v1887
      %v1889 = vpop.f32.mrf.mxu0
      %v1890 = vadd.f32 0.0, %v1889
      %1891 = vmatmul.bf16.gmra.mxu0 %v1728
      %v1892 = vpop.f32.mrf.mxu0
      %v1893 = vadd.f32 0.0, %v1892
      %v1894 = vpop.f32.mrf.mxu0
      %v1895 = vadd.f32 0.0, %v1894
      %1896 = vmatmul.bf16.gmra.mxu0 %v1731
      %v1897 = vpop.f32.mrf.mxu0
      %v1898 = vadd.f32 0.0, %v1897
      %v1899 = vpop.f32.mrf.mxu0
      %v1900 = vadd.f32 0.0, %v1899
      %1901 = vdwg.mxu0
      %v1904 = vunpack.c.l.b16 %v1539
      %v1905 = vunpack.c.l.b16 %v1540
      %v1906 = vpack.c.b16 %v1905, %v1904
      %vm1908 = vcmask 130048
      %v1910 = vsel %vm1908, %v1507, 0
      %v1913 = vsel %vm1908, %v1508, 0
      %v1916 = vsel %vm1908, %v1509, 0
      %v1919 = vsel %vm1908, %v1510, 0
      %v1922 = vsel %vm1908, %v1511, 0
      %v1925 = vsel %vm1908, %v1512, 0
      %v1928 = vsel %vm1908, %v1513, 0
      %v1931 = vsel %vm1908, %v1514, 0
      %v1934 = vsel %vm1908, %v1515, 0
      %v1937 = vsel %vm1908, %v1516, 0
      %v1940 = vsel %vm1908, %v1517, 0
      %v1943 = vsel %vm1908, %v1518, 0
      %v1946 = vsel %vm1908, %v1519, 0
      %v1949 = vsel %vm1908, %v1520, 0
      %v1952 = vsel %vm1908, %v1521, 0
      %v1955 = vsel %vm1908, %v1522, 0
      %v1958 = vsel %vm1908, %v1523, 0
      %v1961 = vsel %vm1908, %v1524, 0
      %v1964 = vsel %vm1908, %v1525, 0
      %v1967 = vsel %vm1908, %v1526, 0
      %v1970 = vsel %vm1908, %v1527, 0
      %v1973 = vsel %vm1908, %v1528, 0
      %v1976 = vsel %vm1908, %v1529, 0
      %v1979 = vsel %vm1908, %v1530, 0
      %v1982 = vsel %vm1908, %v1531, 0
      %v1985 = vsel %vm1908, %v1532, 0
      %v1988 = vsel %vm1908, %v1533, 0
      %v1991 = vsel %vm1908, %v1534, 0
      %v1994 = vsel %vm1908, %v1535, 0
      %v1997 = vsel %vm1908, %v1536, 0
      %v2000 = vsel %vm1908, %v1537, 0
      %v2003 = vsel %vm1908, %v1538, 0
      %2005 = vmatpush.bf16.msra.mxu0 0
      %2006 = vmatpush.bf16.msra.mxu0 0
      %2007 = vmatpush.bf16.msra.mxu0 0
      %2008 = vmatpush.bf16.msra.mxu0 0
      %2009 = vmatpush.bf16.msra.mxu0 0
      %2010 = vmatpush.bf16.msra.mxu0 0
      %2011 = vmatpush.bf16.msra.mxu0 0
      %2012 = vmatpush.bf16.msra.mxu0 %v1906
      %2013 = vmatmul.bf16.gmra.mxu0 %v1910
      %v2014 = vpop.f32.mrf.mxu0
      %v2015 = vadd.f32 %v1743, %v2014
      %v2016 = vpop.f32.mrf.mxu0
      %v2017 = vadd.f32 %v1745, %v2016
      %2018 = vmatmul.bf16.gmra.mxu0 %v1913
      %v2019 = vpop.f32.mrf.mxu0
      %v2020 = vadd.f32 %v1748, %v2019
      %v2021 = vpop.f32.mrf.mxu0
      %v2022 = vadd.f32 %v1750, %v2021
      %2023 = vmatmul.bf16.gmra.mxu0 %v1916
      %v2024 = vpop.f32.mrf.mxu0
      %v2025 = vadd.f32 %v1753, %v2024
      %v2026 = vpop.f32.mrf.mxu0
      %v2027 = vadd.f32 %v1755, %v2026
      %2028 = vmatmul.bf16.gmra.mxu0 %v1919
      %v2029 = vpop.f32.mrf.mxu0
      %v2030 = vadd.f32 %v1758, %v2029
      %v2031 = vpop.f32.mrf.mxu0
      %v2032 = vadd.f32 %v1760, %v2031
      %2033 = vmatmul.bf16.gmra.mxu0 %v1922
      %v2034 = vpop.f32.mrf.mxu0
      %v2035 = vadd.f32 %v1763, %v2034
      %v2036 = vpop.f32.mrf.mxu0
      %v2037 = vadd.f32 %v1765, %v2036
      %2038 = vmatmul.bf16.gmra.mxu0 %v1925
      %v2039 = vpop.f32.mrf.mxu0
      %v2040 = vadd.f32 %v1768, %v2039
      %v2041 = vpop.f32.mrf.mxu0
      %v2042 = vadd.f32 %v1770, %v2041
      %2043 = vmatmul.bf16.gmra.mxu0 %v1928
      %v2044 = vpop.f32.mrf.mxu0
      %v2045 = vadd.f32 %v1773, %v2044
      %v2046 = vpop.f32.mrf.mxu0
      %v2047 = vadd.f32 %v1775, %v2046
      %2048 = vmatmul.bf16.gmra.mxu0 %v1931
      %v2049 = vpop.f32.mrf.mxu0
      %v2050 = vadd.f32 %v1778, %v2049
      %v2051 = vpop.f32.mrf.mxu0
      %v2052 = vadd.f32 %v1780, %v2051
      %2053 = vmatmul.bf16.gmra.mxu0 %v1934
      %v2054 = vpop.f32.mrf.mxu0
      %v2055 = vadd.f32 %v1783, %v2054
      %v2056 = vpop.f32.mrf.mxu0
      %v2057 = vadd.f32 %v1785, %v2056
      %2058 = vmatmul.bf16.gmra.mxu0 %v1937
      %v2059 = vpop.f32.mrf.mxu0
      %v2060 = vadd.f32 %v1788, %v2059
      %v2061 = vpop.f32.mrf.mxu0
      %v2062 = vadd.f32 %v1790, %v2061
      %2063 = vmatmul.bf16.gmra.mxu0 %v1940
      %v2064 = vpop.f32.mrf.mxu0
      %v2065 = vadd.f32 %v1793, %v2064
      %v2066 = vpop.f32.mrf.mxu0
      %v2067 = vadd.f32 %v1795, %v2066
      %2068 = vmatmul.bf16.gmra.mxu0 %v1943
      %v2069 = vpop.f32.mrf.mxu0
      %v2070 = vadd.f32 %v1798, %v2069
      %v2071 = vpop.f32.mrf.mxu0
      %v2072 = vadd.f32 %v1800, %v2071
      %2073 = vmatmul.bf16.gmra.mxu0 %v1946
      %v2074 = vpop.f32.mrf.mxu0
      %v2075 = vadd.f32 %v1803, %v2074
      %v2076 = vpop.f32.mrf.mxu0
      %v2077 = vadd.f32 %v1805, %v2076
      %2078 = vmatmul.bf16.gmra.mxu0 %v1949
      %v2079 = vpop.f32.mrf.mxu0
      %v2080 = vadd.f32 %v1808, %v2079
      %v2081 = vpop.f32.mrf.mxu0
      %v2082 = vadd.f32 %v1810, %v2081
      %2083 = vmatmul.bf16.gmra.mxu0 %v1952
      %v2084 = vpop.f32.mrf.mxu0
      %v2085 = vadd.f32 %v1813, %v2084
      %v2086 = vpop.f32.mrf.mxu0
      %v2087 = vadd.f32 %v1815, %v2086
      %2088 = vmatmul.bf16.gmra.mxu0 %v1955
      %v2089 = vpop.f32.mrf.mxu0
      %v2090 = vadd.f32 %v1818, %v2089
      %v2091 = vpop.f32.mrf.mxu0
      %v2092 = vadd.f32 %v1820, %v2091
      %2093 = vmatmul.bf16.gmra.mxu0 %v1958
      %v2094 = vpop.f32.mrf.mxu0
      %v2095 = vadd.f32 %v1823, %v2094
      %v2096 = vpop.f32.mrf.mxu0
      %v2097 = vadd.f32 %v1825, %v2096
      %2098 = vmatmul.bf16.gmra.mxu0 %v1961
      %v2099 = vpop.f32.mrf.mxu0
      %v2100 = vadd.f32 %v1828, %v2099
      %v2101 = vpop.f32.mrf.mxu0
      %v2102 = vadd.f32 %v1830, %v2101
      %2103 = vmatmul.bf16.gmra.mxu0 %v1964
      %v2104 = vpop.f32.mrf.mxu0
      %v2105 = vadd.f32 %v1833, %v2104
      %v2106 = vpop.f32.mrf.mxu0
      %v2107 = vadd.f32 %v1835, %v2106
      %2108 = vmatmul.bf16.gmra.mxu0 %v1967
      %v2109 = vpop.f32.mrf.mxu0
      %v2110 = vadd.f32 %v1838, %v2109
      %v2111 = vpop.f32.mrf.mxu0
      %v2112 = vadd.f32 %v1840, %v2111
      %2113 = vmatmul.bf16.gmra.mxu0 %v1970
      %v2114 = vpop.f32.mrf.mxu0
      %v2115 = vadd.f32 %v1843, %v2114
      %v2116 = vpop.f32.mrf.mxu0
      %v2117 = vadd.f32 %v1845, %v2116
      %2118 = vmatmul.bf16.gmra.mxu0 %v1973
      %v2119 = vpop.f32.mrf.mxu0
      %v2120 = vadd.f32 %v1848, %v2119
      %v2121 = vpop.f32.mrf.mxu0
      %v2122 = vadd.f32 %v1850, %v2121
      %2123 = vmatmul.bf16.gmra.mxu0 %v1976
      %v2124 = vpop.f32.mrf.mxu0
      %v2125 = vadd.f32 %v1853, %v2124
      %v2126 = vpop.f32.mrf.mxu0
      %v2127 = vadd.f32 %v1855, %v2126
      %2128 = vmatmul.bf16.gmra.mxu0 %v1979
      %v2129 = vpop.f32.mrf.mxu0
      %v2130 = vadd.f32 %v1858, %v2129
      %v2131 = vpop.f32.mrf.mxu0
      %v2132 = vadd.f32 %v1860, %v2131
      %2133 = vmatmul.bf16.gmra.mxu0 %v1982
      %v2134 = vpop.f32.mrf.mxu0
      %v2135 = vadd.f32 %v1863, %v2134
      %v2136 = vpop.f32.mrf.mxu0
      %v2137 = vadd.f32 %v1865, %v2136
      %2138 = vmatmul.bf16.gmra.mxu0 %v1985
      %v2139 = vpop.f32.mrf.mxu0
      %v2140 = vadd.f32 %v1868, %v2139
      %v2141 = vpop.f32.mrf.mxu0
      %v2142 = vadd.f32 %v1870, %v2141
      %2143 = vmatmul.bf16.gmra.mxu0 %v1988
      %v2144 = vpop.f32.mrf.mxu0
      %v2145 = vadd.f32 %v1873, %v2144
      %v2146 = vpop.f32.mrf.mxu0
      %v2147 = vadd.f32 %v1875, %v2146
      %2148 = vmatmul.bf16.gmra.mxu0 %v1991
      %v2149 = vpop.f32.mrf.mxu0
      %v2150 = vadd.f32 %v1878, %v2149
      %v2151 = vpop.f32.mrf.mxu0
      %v2152 = vadd.f32 %v1880, %v2151
      %2153 = vmatmul.bf16.gmra.mxu0 %v1994
      %v2154 = vpop.f32.mrf.mxu0
      %v2155 = vadd.f32 %v1883, %v2154
      %v2156 = vpop.f32.mrf.mxu0
      %v2157 = vadd.f32 %v1885, %v2156
      %2158 = vmatmul.bf16.gmra.mxu0 %v1997
      %v2159 = vpop.f32.mrf.mxu0
      %v2160 = vadd.f32 %v1888, %v2159
      %v2161 = vpop.f32.mrf.mxu0
      %v2162 = vadd.f32 %v1890, %v2161
      %2163 = vmatmul.bf16.gmra.mxu0 %v2000
      %v2164 = vpop.f32.mrf.mxu0
      %v2165 = vadd.f32 %v1893, %v2164
      %v2166 = vpop.f32.mrf.mxu0
      %v2167 = vadd.f32 %v1895, %v2166
      %2168 = vmatmul.bf16.gmra.mxu0 %v2003
      %v2169 = vpop.f32.mrf.mxu0
      %v2170 = vadd.f32 %v1898, %v2169
      %v2171 = vpop.f32.mrf.mxu0
      %v2172 = vadd.f32 %v1900, %v2171
      %2173 = vdwg.mxu0
      %v2174 = vld [vmem:[%s5] sm:$0x1]
      %v2176 = vperm.slane %v2174, 0
      %v2178 = vadd.f32 %v2015, %v2176
      %v2179 = vadd.f32 %v2017, %v2176
      %v2180 = vadd.f32 %v2020, %v2176
      %v2181 = vadd.f32 %v2022, %v2176
      %v2182 = vadd.f32 %v2025, %v2176
      %v2183 = vadd.f32 %v2027, %v2176
      %v2184 = vadd.f32 %v2030, %v2176
      %v2185 = vadd.f32 %v2032, %v2176
      %v2186 = vadd.f32 %v2035, %v2176
      %v2187 = vadd.f32 %v2037, %v2176
      %v2188 = vadd.f32 %v2040, %v2176
      %v2189 = vadd.f32 %v2042, %v2176
      %v2190 = vadd.f32 %v2045, %v2176
      %v2191 = vadd.f32 %v2047, %v2176
      %v2192 = vadd.f32 %v2050, %v2176
      %v2193 = vadd.f32 %v2052, %v2176
      %v2194 = vadd.f32 %v2055, %v2176
      %v2195 = vadd.f32 %v2057, %v2176
      %v2196 = vadd.f32 %v2060, %v2176
      %v2197 = vadd.f32 %v2062, %v2176
      %v2198 = vadd.f32 %v2065, %v2176
      %v2199 = vadd.f32 %v2067, %v2176
      %v2200 = vadd.f32 %v2070, %v2176
      %v2201 = vadd.f32 %v2072, %v2176
      %v2202 = vadd.f32 %v2075, %v2176
      %v2203 = vadd.f32 %v2077, %v2176
      %v2204 = vadd.f32 %v2080, %v2176
      %v2205 = vadd.f32 %v2082, %v2176
      %v2206 = vadd.f32 %v2085, %v2176
      %v2207 = vadd.f32 %v2087, %v2176
      %v2208 = vadd.f32 %v2090, %v2176
      %v2209 = vadd.f32 %v2092, %v2176
      %v2210 = vadd.f32 %v2095, %v2176
      %v2211 = vadd.f32 %v2097, %v2176
      %v2212 = vadd.f32 %v2100, %v2176
      %v2213 = vadd.f32 %v2102, %v2176
      %v2214 = vadd.f32 %v2105, %v2176
      %v2215 = vadd.f32 %v2107, %v2176
      %v2216 = vadd.f32 %v2110, %v2176
      %v2217 = vadd.f32 %v2112, %v2176
      %v2218 = vadd.f32 %v2115, %v2176
      %v2219 = vadd.f32 %v2117, %v2176
      %v2220 = vadd.f32 %v2120, %v2176
      %v2221 = vadd.f32 %v2122, %v2176
      %v2222 = vadd.f32 %v2125, %v2176
      %v2223 = vadd.f32 %v2127, %v2176
      %v2224 = vadd.f32 %v2130, %v2176
      %v2225 = vadd.f32 %v2132, %v2176
      %v2226 = vadd.f32 %v2135, %v2176
      %v2227 = vadd.f32 %v2137, %v2176
      %v2228 = vadd.f32 %v2140, %v2176
      %v2229 = vadd.f32 %v2142, %v2176
      %v2230 = vadd.f32 %v2145, %v2176
      %v2231 = vadd.f32 %v2147, %v2176
      %v2232 = vadd.f32 %v2150, %v2176
      %v2233 = vadd.f32 %v2152, %v2176
      %v2234 = vadd.f32 %v2155, %v2176
      %v2235 = vadd.f32 %v2157, %v2176
      %v2236 = vadd.f32 %v2160, %v2176
      %v2237 = vadd.f32 %v2162, %v2176
      %v2238 = vadd.f32 %v2165, %v2176
      %v2239 = vadd.f32 %v2167, %v2176
      %v2240 = vadd.f32 %v2170, %v2176
      %v2241 = vadd.f32 %v2172, %v2176
      %v2242 = vmax.f32 %v2178, 0.0
      %v2243 = vmax.f32 %v2179, 0.0
      %v2244 = vmax.f32 %v2180, 0.0
      %v2245 = vmax.f32 %v2181, 0.0
      %v2246 = vmax.f32 %v2182, 0.0
      %v2247 = vmax.f32 %v2183, 0.0
      %v2248 = vmax.f32 %v2184, 0.0
      %v2249 = vmax.f32 %v2185, 0.0
      %v2250 = vmax.f32 %v2186, 0.0
      %v2251 = vmax.f32 %v2187, 0.0
      %v2252 = vmax.f32 %v2188, 0.0
      %v2253 = vmax.f32 %v2189, 0.0
      %v2254 = vmax.f32 %v2190, 0.0
      %v2255 = vmax.f32 %v2191, 0.0
      %v2256 = vmax.f32 %v2192, 0.0
      %v2257 = vmax.f32 %v2193, 0.0
      %v2258 = vmax.f32 %v2194, 0.0
      %v2259 = vmax.f32 %v2195, 0.0
      %v2260 = vmax.f32 %v2196, 0.0
      %v2261 = vmax.f32 %v2197, 0.0
      %v2262 = vmax.f32 %v2198, 0.0
      %v2263 = vmax.f32 %v2199, 0.0
      %v2264 = vmax.f32 %v2200, 0.0
      %v2265 = vmax.f32 %v2201, 0.0
      %v2266 = vmax.f32 %v2202, 0.0
      %v2267 = vmax.f32 %v2203, 0.0
      %v2268 = vmax.f32 %v2204, 0.0
      %v2269 = vmax.f32 %v2205, 0.0
      %v2270 = vmax.f32 %v2206, 0.0
      %v2271 = vmax.f32 %v2207, 0.0
      %v2272 = vmax.f32 %v2208, 0.0
      %v2273 = vmax.f32 %v2209, 0.0
      %v2274 = vmax.f32 %v2210, 0.0
      %v2275 = vmax.f32 %v2211, 0.0
      %v2276 = vmax.f32 %v2212, 0.0
      %v2277 = vmax.f32 %v2213, 0.0
      %v2278 = vmax.f32 %v2214, 0.0
      %v2279 = vmax.f32 %v2215, 0.0
      %v2280 = vmax.f32 %v2216, 0.0
      %v2281 = vmax.f32 %v2217, 0.0
      %v2282 = vmax.f32 %v2218, 0.0
      %v2283 = vmax.f32 %v2219, 0.0
      %v2284 = vmax.f32 %v2220, 0.0
      %v2285 = vmax.f32 %v2221, 0.0
      %v2286 = vmax.f32 %v2222, 0.0
      %v2287 = vmax.f32 %v2223, 0.0
      %v2288 = vmax.f32 %v2224, 0.0
      %v2289 = vmax.f32 %v2225, 0.0
      %v2290 = vmax.f32 %v2226, 0.0
      %v2291 = vmax.f32 %v2227, 0.0
      %v2292 = vmax.f32 %v2228, 0.0
      %v2293 = vmax.f32 %v2229, 0.0
      %v2294 = vmax.f32 %v2230, 0.0
      %v2295 = vmax.f32 %v2231, 0.0
      %v2296 = vmax.f32 %v2232, 0.0
      %v2297 = vmax.f32 %v2233, 0.0
      %v2298 = vmax.f32 %v2234, 0.0
      %v2299 = vmax.f32 %v2235, 0.0
      %v2300 = vmax.f32 %v2236, 0.0
      %v2301 = vmax.f32 %v2237, 0.0
      %v2302 = vmax.f32 %v2238, 0.0
      %v2303 = vmax.f32 %v2239, 0.0
      %v2304 = vmax.f32 %v2240, 0.0
      %v2305 = vmax.f32 %v2241, 0.0
      %v2306 = vpack.c.bf16 %v2243, %v2242
      %v2307 = vpack.c.bf16 %v2245, %v2244
      %v2308 = vpack.c.bf16 %v2247, %v2246
      %v2309 = vpack.c.bf16 %v2249, %v2248
      %v2310 = vpack.c.bf16 %v2251, %v2250
      %v2311 = vpack.c.bf16 %v2253, %v2252
      %v2312 = vpack.c.bf16 %v2255, %v2254
      %v2313 = vpack.c.bf16 %v2257, %v2256
      %v2314 = vpack.c.bf16 %v2259, %v2258
      %v2315 = vpack.c.bf16 %v2261, %v2260
      %v2316 = vpack.c.bf16 %v2263, %v2262
      %v2317 = vpack.c.bf16 %v2265, %v2264
      %v2318 = vpack.c.bf16 %v2267, %v2266
      %v2319 = vpack.c.bf16 %v2269, %v2268
      %v2320 = vpack.c.bf16 %v2271, %v2270
      %v2321 = vpack.c.bf16 %v2273, %v2272
      %v2322 = vpack.c.bf16 %v2275, %v2274
      %v2323 = vpack.c.bf16 %v2277, %v2276
      %v2324 = vpack.c.bf16 %v2279, %v2278
      %v2325 = vpack.c.bf16 %v2281, %v2280
      %v2326 = vpack.c.bf16 %v2283, %v2282
      %v2327 = vpack.c.bf16 %v2285, %v2284
      %v2328 = vpack.c.bf16 %v2287, %v2286
      %v2329 = vpack.c.bf16 %v2289, %v2288
      %v2330 = vpack.c.bf16 %v2291, %v2290
      %v2331 = vpack.c.bf16 %v2293, %v2292
      %v2332 = vpack.c.bf16 %v2295, %v2294
      %v2333 = vpack.c.bf16 %v2297, %v2296
      %v2334 = vpack.c.bf16 %v2299, %v2298
      %v2335 = vpack.c.bf16 %v2301, %v2300
      %v2336 = vpack.c.bf16 %v2303, %v2302
      %v2337 = vpack.c.bf16 %v2305, %v2304
      %v2338 = vld [vmem:[%s6] sm:$0xf]
      %v2339 = vld [vmem:[%s6 + $0x4] sm:$0xf]
      %v2340 = vld [vmem:[%s6 + $0x8] sm:$0xf]
      %v2341 = vld [vmem:[%s6 + $0xc] sm:$0xf]
      %v2342 = vld [vmem:[%s6 + $0x10] sm:$0xf]
      %v2343 = vld [vmem:[%s6 + $0x14] sm:$0xf]
      %v2344 = vld [vmem:[%s6 + $0x18] sm:$0xf]
      %v2345 = vld [vmem:[%s6 + $0x1c] sm:$0xf]
      %v2346 = vld [vmem:[%s7] sm:$0x1]
      %v2348 = vperm.slane %v2346, 0
      %v2358 = vunpack.c.l.b16 %v2338
      %v2359 = vunpack.c.l.b16 %v2339
      %v2360 = vunpack.c.l.b16 %v2340
      %v2361 = vunpack.c.l.b16 %v2341
      %v2362 = vunpack.c.l.b16 %v2342
      %v2363 = vunpack.c.l.b16 %v2343
      %v2364 = vunpack.c.l.b16 %v2344
      %v2365 = vunpack.c.l.b16 %v2345
      %v2366 = vpack.c.b16 %v2359, %v2358
      %v2367 = vpack.c.b16 %v2361, %v2360
      %v2368 = vpack.c.b16 %v2363, %v2362
      %v2369 = vpack.c.b16 %v2365, %v2364
      %v2375 = vsel %vm1241, %v2306, 0
      %v2378 = vsel %vm1241, %v2307, 0
      %v2381 = vsel %vm1241, %v2308, 0
      %v2384 = vsel %vm1241, %v2309, 0
      %v2387 = vsel %vm1241, %v2310, 0
      %v2390 = vsel %vm1241, %v2311, 0
      %v2393 = vsel %vm1241, %v2312, 0
      %v2396 = vsel %vm1241, %v2313, 0
      %v2399 = vsel %vm1241, %v2314, 0
      %v2402 = vsel %vm1241, %v2315, 0
      %v2405 = vsel %vm1241, %v2316, 0
      %v2408 = vsel %vm1241, %v2317, 0
      %v2411 = vsel %vm1241, %v2318, 0
      %v2414 = vsel %vm1241, %v2319, 0
      %v2417 = vsel %vm1241, %v2320, 0
      %v2420 = vsel %vm1241, %v2321, 0
      %v2423 = vsel %vm1241, %v2322, 0
      %v2426 = vsel %vm1241, %v2323, 0
      %v2429 = vsel %vm1241, %v2324, 0
      %v2432 = vsel %vm1241, %v2325, 0
      %v2435 = vsel %vm1241, %v2326, 0
      %v2438 = vsel %vm1241, %v2327, 0
      %v2441 = vsel %vm1241, %v2328, 0
      %v2444 = vsel %vm1241, %v2329, 0
      %v2447 = vsel %vm1241, %v2330, 0
      %v2450 = vsel %vm1241, %v2331, 0
      %v2453 = vsel %vm1241, %v2332, 0
      %v2456 = vsel %vm1241, %v2333, 0
      %v2459 = vsel %vm1241, %v2334, 0
      %v2462 = vsel %vm1241, %v2335, 0
      %v2465 = vsel %vm1241, %v2336, 0
      %v2468 = vsel %vm1241, %v2337, 0
      %2470 = vmatpush.bf16.msra.mxu0 0
      %2471 = vmatpush.bf16.msra.mxu0 0
      %2472 = vmatpush.bf16.msra.mxu0 0
      %2473 = vmatpush.bf16.msra.mxu0 0
      %2474 = vmatpush.bf16.msra.mxu0 %v2369
      %2475 = vmatpush.bf16.msra.mxu0 %v2368
      %2476 = vmatpush.bf16.msra.mxu0 %v2367
      %2477 = vmatpush.bf16.msra.mxu0 %v2366
      %2478 = vmatmul.bf16.gmra.mxu0 %v2375
      %v2479 = vpop.f32.mrf.mxu0
      %v2480 = vadd.f32 %v2348, %v2479
      %v2481 = vpop.f32.mrf.mxu0
      %v2482 = vadd.f32 %v2348, %v2481
      %2483 = vmatmul.bf16.gmra.mxu0 %v2378
      %v2484 = vpop.f32.mrf.mxu0
      %v2485 = vadd.f32 %v2348, %v2484
      %v2486 = vpop.f32.mrf.mxu0
      %v2487 = vadd.f32 %v2348, %v2486
      %2488 = vmatmul.bf16.gmra.mxu0 %v2381
      %v2489 = vpop.f32.mrf.mxu0
      %v2490 = vadd.f32 %v2348, %v2489
      %v2491 = vpop.f32.mrf.mxu0
      %v2492 = vadd.f32 %v2348, %v2491
      %2493 = vmatmul.bf16.gmra.mxu0 %v2384
      %v2494 = vpop.f32.mrf.mxu0
      %v2495 = vadd.f32 %v2348, %v2494
      %v2496 = vpop.f32.mrf.mxu0
      %v2497 = vadd.f32 %v2348, %v2496
      %2498 = vmatmul.bf16.gmra.mxu0 %v2387
      %v2499 = vpop.f32.mrf.mxu0
      %v2500 = vadd.f32 %v2348, %v2499
      %v2501 = vpop.f32.mrf.mxu0
      %v2502 = vadd.f32 %v2348, %v2501
      %2503 = vmatmul.bf16.gmra.mxu0 %v2390
      %v2504 = vpop.f32.mrf.mxu0
      %v2505 = vadd.f32 %v2348, %v2504
      %v2506 = vpop.f32.mrf.mxu0
      %v2507 = vadd.f32 %v2348, %v2506
      %2508 = vmatmul.bf16.gmra.mxu0 %v2393
      %v2509 = vpop.f32.mrf.mxu0
      %v2510 = vadd.f32 %v2348, %v2509
      %v2511 = vpop.f32.mrf.mxu0
      %v2512 = vadd.f32 %v2348, %v2511
      %2513 = vmatmul.bf16.gmra.mxu0 %v2396
      %v2514 = vpop.f32.mrf.mxu0
      %v2515 = vadd.f32 %v2348, %v2514
      %v2516 = vpop.f32.mrf.mxu0
      %v2517 = vadd.f32 %v2348, %v2516
      %2518 = vmatmul.bf16.gmra.mxu0 %v2399
      %v2519 = vpop.f32.mrf.mxu0
      %v2520 = vadd.f32 %v2348, %v2519
      %v2521 = vpop.f32.mrf.mxu0
      %v2522 = vadd.f32 %v2348, %v2521
      %2523 = vmatmul.bf16.gmra.mxu0 %v2402
      %v2524 = vpop.f32.mrf.mxu0
      %v2525 = vadd.f32 %v2348, %v2524
      %v2526 = vpop.f32.mrf.mxu0
      %v2527 = vadd.f32 %v2348, %v2526
      %2528 = vmatmul.bf16.gmra.mxu0 %v2405
      %v2529 = vpop.f32.mrf.mxu0
      %v2530 = vadd.f32 %v2348, %v2529
      %v2531 = vpop.f32.mrf.mxu0
      %v2532 = vadd.f32 %v2348, %v2531
      %2533 = vmatmul.bf16.gmra.mxu0 %v2408
      %v2534 = vpop.f32.mrf.mxu0
      %v2535 = vadd.f32 %v2348, %v2534
      %v2536 = vpop.f32.mrf.mxu0
      %v2537 = vadd.f32 %v2348, %v2536
      %2538 = vmatmul.bf16.gmra.mxu0 %v2411
      %v2539 = vpop.f32.mrf.mxu0
      %v2540 = vadd.f32 %v2348, %v2539
      %v2541 = vpop.f32.mrf.mxu0
      %v2542 = vadd.f32 %v2348, %v2541
      %2543 = vmatmul.bf16.gmra.mxu0 %v2414
      %v2544 = vpop.f32.mrf.mxu0
      %v2545 = vadd.f32 %v2348, %v2544
      %v2546 = vpop.f32.mrf.mxu0
      %v2547 = vadd.f32 %v2348, %v2546
      %2548 = vmatmul.bf16.gmra.mxu0 %v2417
      %v2549 = vpop.f32.mrf.mxu0
      %v2550 = vadd.f32 %v2348, %v2549
      %v2551 = vpop.f32.mrf.mxu0
      %v2552 = vadd.f32 %v2348, %v2551
      %2553 = vmatmul.bf16.gmra.mxu0 %v2420
      %v2554 = vpop.f32.mrf.mxu0
      %v2555 = vadd.f32 %v2348, %v2554
      %v2556 = vpop.f32.mrf.mxu0
      %v2557 = vadd.f32 %v2348, %v2556
      %2558 = vmatmul.bf16.gmra.mxu0 %v2423
      %v2559 = vpop.f32.mrf.mxu0
      %v2560 = vadd.f32 %v2348, %v2559
      %v2561 = vpop.f32.mrf.mxu0
      %v2562 = vadd.f32 %v2348, %v2561
      %2563 = vmatmul.bf16.gmra.mxu0 %v2426
      %v2564 = vpop.f32.mrf.mxu0
      %v2565 = vadd.f32 %v2348, %v2564
      %v2566 = vpop.f32.mrf.mxu0
      %v2567 = vadd.f32 %v2348, %v2566
      %2568 = vmatmul.bf16.gmra.mxu0 %v2429
      %v2569 = vpop.f32.mrf.mxu0
      %v2570 = vadd.f32 %v2348, %v2569
      %v2571 = vpop.f32.mrf.mxu0
      %v2572 = vadd.f32 %v2348, %v2571
      %2573 = vmatmul.bf16.gmra.mxu0 %v2432
      %v2574 = vpop.f32.mrf.mxu0
      %v2575 = vadd.f32 %v2348, %v2574
      %v2576 = vpop.f32.mrf.mxu0
      %v2577 = vadd.f32 %v2348, %v2576
      %2578 = vmatmul.bf16.gmra.mxu0 %v2435
      %v2579 = vpop.f32.mrf.mxu0
      %v2580 = vadd.f32 %v2348, %v2579
      %v2581 = vpop.f32.mrf.mxu0
      %v2582 = vadd.f32 %v2348, %v2581
      %2583 = vmatmul.bf16.gmra.mxu0 %v2438
      %v2584 = vpop.f32.mrf.mxu0
      %v2585 = vadd.f32 %v2348, %v2584
      %v2586 = vpop.f32.mrf.mxu0
      %v2587 = vadd.f32 %v2348, %v2586
      %2588 = vmatmul.bf16.gmra.mxu0 %v2441
      %v2589 = vpop.f32.mrf.mxu0
      %v2590 = vadd.f32 %v2348, %v2589
      %v2591 = vpop.f32.mrf.mxu0
      %v2592 = vadd.f32 %v2348, %v2591
      %2593 = vmatmul.bf16.gmra.mxu0 %v2444
      %v2594 = vpop.f32.mrf.mxu0
      %v2595 = vadd.f32 %v2348, %v2594
      %v2596 = vpop.f32.mrf.mxu0
      %v2597 = vadd.f32 %v2348, %v2596
      %2598 = vmatmul.bf16.gmra.mxu0 %v2447
      %v2599 = vpop.f32.mrf.mxu0
      %v2600 = vadd.f32 %v2348, %v2599
      %v2601 = vpop.f32.mrf.mxu0
      %v2602 = vadd.f32 %v2348, %v2601
      %2603 = vmatmul.bf16.gmra.mxu0 %v2450
      %v2604 = vpop.f32.mrf.mxu0
      %v2605 = vadd.f32 %v2348, %v2604
      %v2606 = vpop.f32.mrf.mxu0
      %v2607 = vadd.f32 %v2348, %v2606
      %2608 = vmatmul.bf16.gmra.mxu0 %v2453
      %v2609 = vpop.f32.mrf.mxu0
      %v2610 = vadd.f32 %v2348, %v2609
      %v2611 = vpop.f32.mrf.mxu0
      %v2612 = vadd.f32 %v2348, %v2611
      %2613 = vmatmul.bf16.gmra.mxu0 %v2456
      %v2614 = vpop.f32.mrf.mxu0
      %v2615 = vadd.f32 %v2348, %v2614
      %v2616 = vpop.f32.mrf.mxu0
      %v2617 = vadd.f32 %v2348, %v2616
      %2618 = vmatmul.bf16.gmra.mxu0 %v2459
      %v2619 = vpop.f32.mrf.mxu0
      %v2620 = vadd.f32 %v2348, %v2619
      %v2621 = vpop.f32.mrf.mxu0
      %v2622 = vadd.f32 %v2348, %v2621
      %2623 = vmatmul.bf16.gmra.mxu0 %v2462
      %v2624 = vpop.f32.mrf.mxu0
      %v2625 = vadd.f32 %v2348, %v2624
      %v2626 = vpop.f32.mrf.mxu0
      %v2627 = vadd.f32 %v2348, %v2626
      %2628 = vmatmul.bf16.gmra.mxu0 %v2465
      %v2629 = vpop.f32.mrf.mxu0
      %v2630 = vadd.f32 %v2348, %v2629
      %v2631 = vpop.f32.mrf.mxu0
      %v2632 = vadd.f32 %v2348, %v2631
      %2633 = vmatmul.bf16.gmra.mxu0 %v2468
      %v2634 = vpop.f32.mrf.mxu0
      %v2635 = vadd.f32 %v2348, %v2634
      %v2636 = vpop.f32.mrf.mxu0
      %v2637 = vadd.f32 %v2348, %v2636
      %2638 = vdwg.mxu0
      %v2639 = vmul.f32 %v2480, 0.5
      %v2640 = vmul.f32 %v2482, 0.5
      %v2641 = vmul.f32 %v2485, 0.5
      %v2642 = vmul.f32 %v2487, 0.5
      %v2643 = vmul.f32 %v2490, 0.5
      %v2644 = vmul.f32 %v2492, 0.5
      %v2645 = vmul.f32 %v2495, 0.5
      %v2646 = vmul.f32 %v2497, 0.5
      %v2647 = vmul.f32 %v2500, 0.5
      %v2648 = vmul.f32 %v2502, 0.5
      %v2649 = vmul.f32 %v2505, 0.5
      %v2650 = vmul.f32 %v2507, 0.5
      %v2651 = vmul.f32 %v2510, 0.5
      %v2652 = vmul.f32 %v2512, 0.5
      %v2653 = vmul.f32 %v2515, 0.5
      %v2654 = vmul.f32 %v2517, 0.5
      %v2655 = vmul.f32 %v2520, 0.5
      %v2656 = vmul.f32 %v2522, 0.5
      %v2657 = vmul.f32 %v2525, 0.5
      %v2658 = vmul.f32 %v2527, 0.5
      %v2659 = vmul.f32 %v2530, 0.5
      %v2660 = vmul.f32 %v2532, 0.5
      %v2661 = vmul.f32 %v2535, 0.5
      %v2662 = vmul.f32 %v2537, 0.5
      %v2663 = vmul.f32 %v2540, 0.5
      %v2664 = vmul.f32 %v2542, 0.5
      %v2665 = vmul.f32 %v2545, 0.5
      %v2666 = vmul.f32 %v2547, 0.5
      %v2667 = vmul.f32 %v2550, 0.5
      %v2668 = vmul.f32 %v2552, 0.5
      %v2669 = vmul.f32 %v2555, 0.5
      %v2670 = vmul.f32 %v2557, 0.5
      %v2671 = vmul.f32 %v2560, 0.5
      %v2672 = vmul.f32 %v2562, 0.5
      %v2673 = vmul.f32 %v2565, 0.5
      %v2674 = vmul.f32 %v2567, 0.5
      %v2675 = vmul.f32 %v2570, 0.5
      %v2676 = vmul.f32 %v2572, 0.5
      %v2677 = vmul.f32 %v2575, 0.5
      %v2678 = vmul.f32 %v2577, 0.5
      %v2679 = vmul.f32 %v2580, 0.5
      %v2680 = vmul.f32 %v2582, 0.5
      %v2681 = vmul.f32 %v2585, 0.5
      %v2682 = vmul.f32 %v2587, 0.5
      %v2683 = vmul.f32 %v2590, 0.5
      %v2684 = vmul.f32 %v2592, 0.5
      %v2685 = vmul.f32 %v2595, 0.5
      %v2686 = vmul.f32 %v2597, 0.5
      %v2687 = vmul.f32 %v2600, 0.5
      %v2688 = vmul.f32 %v2602, 0.5
      %v2689 = vmul.f32 %v2605, 0.5
      %v2690 = vmul.f32 %v2607, 0.5
      %v2691 = vmul.f32 %v2610, 0.5
      %v2692 = vmul.f32 %v2612, 0.5
      %v2693 = vmul.f32 %v2615, 0.5
      %v2694 = vmul.f32 %v2617, 0.5
      %v2695 = vmul.f32 %v2620, 0.5
      %v2696 = vmul.f32 %v2622, 0.5
      %v2697 = vmul.f32 %v2625, 0.5
      %v2698 = vmul.f32 %v2627, 0.5
      %v2699 = vmul.f32 %v2630, 0.5
      %v2700 = vmul.f32 %v2632, 0.5
      %v2701 = vmul.f32 %v2635, 0.5
      %v2702 = vmul.f32 %v2637, 0.5
      %v2703 = vtanh.pop %v2639
      %v2704 = vtanh.pop %v2640
      %v2705 = vtanh.pop %v2641
      %v2706 = vtanh.pop %v2642
      %v2707 = vtanh.pop %v2643
      %v2708 = vtanh.pop %v2644
      %v2709 = vtanh.pop %v2645
      %v2710 = vtanh.pop %v2646
      %v2711 = vtanh.pop %v2647
      %v2712 = vtanh.pop %v2648
      %v2713 = vtanh.pop %v2649
      %v2714 = vtanh.pop %v2650
      %v2715 = vtanh.pop %v2651
      %v2716 = vtanh.pop %v2652
      %v2717 = vtanh.pop %v2653
      %v2718 = vtanh.pop %v2654
      %v2719 = vtanh.pop %v2655
      %v2720 = vtanh.pop %v2656
      %v2721 = vtanh.pop %v2657
      %v2722 = vtanh.pop %v2658
      %v2723 = vtanh.pop %v2659
      %v2724 = vtanh.pop %v2660
      %v2725 = vtanh.pop %v2661
      %v2726 = vtanh.pop %v2662
      %v2727 = vtanh.pop %v2663
      %v2728 = vtanh.pop %v2664
      %v2729 = vtanh.pop %v2665
      %v2730 = vtanh.pop %v2666
      %v2731 = vtanh.pop %v2667
      %v2732 = vtanh.pop %v2668
      %v2733 = vtanh.pop %v2669
      %v2734 = vtanh.pop %v2670
      %v2735 = vtanh.pop %v2671
      %v2736 = vtanh.pop %v2672
      %v2737 = vtanh.pop %v2673
      %v2738 = vtanh.pop %v2674
      %v2739 = vtanh.pop %v2675
      %v2740 = vtanh.pop %v2676
      %v2741 = vtanh.pop %v2677
      %v2742 = vtanh.pop %v2678
      %v2743 = vtanh.pop %v2679
      %v2744 = vtanh.pop %v2680
      %v2745 = vtanh.pop %v2681
      %v2746 = vtanh.pop %v2682
      %v2747 = vtanh.pop %v2683
      %v2748 = vtanh.pop %v2684
      %v2749 = vtanh.pop %v2685
      %v2750 = vtanh.pop %v2686
      %v2751 = vtanh.pop %v2687
      %v2752 = vtanh.pop %v2688
      %v2753 = vtanh.pop %v2689
      %v2754 = vtanh.pop %v2690
      %v2755 = vtanh.pop %v2691
      %v2756 = vtanh.pop %v2692
      %v2757 = vtanh.pop %v2693
      %v2758 = vtanh.pop %v2694
      %v2759 = vtanh.pop %v2695
      %v2760 = vtanh.pop %v2696
      %v2761 = vtanh.pop %v2697
      %v2762 = vtanh.pop %v2698
      %v2763 = vtanh.pop %v2699
      %v2764 = vtanh.pop %v2700
      %v2765 = vtanh.pop %v2701
      %v2766 = vtanh.pop %v2702
      %v2767 = vmul.f32 %v2703, 0.5
      %v2768 = vmul.f32 %v2704, 0.5
      %v2769 = vmul.f32 %v2705, 0.5
      %v2770 = vmul.f32 %v2706, 0.5
      %v2771 = vmul.f32 %v2707, 0.5
      %v2772 = vmul.f32 %v2708, 0.5
      %v2773 = vmul.f32 %v2709, 0.5
      %v2774 = vmul.f32 %v2710, 0.5
      %v2775 = vmul.f32 %v2711, 0.5
      %v2776 = vmul.f32 %v2712, 0.5
      %v2777 = vmul.f32 %v2713, 0.5
      %v2778 = vmul.f32 %v2714, 0.5
      %v2779 = vmul.f32 %v2715, 0.5
      %v2780 = vmul.f32 %v2716, 0.5
      %v2781 = vmul.f32 %v2717, 0.5
      %v2782 = vmul.f32 %v2718, 0.5
      %v2783 = vmul.f32 %v2719, 0.5
      %v2784 = vmul.f32 %v2720, 0.5
      %v2785 = vmul.f32 %v2721, 0.5
      %v2786 = vmul.f32 %v2722, 0.5
      %v2787 = vmul.f32 %v2723, 0.5
      %v2788 = vmul.f32 %v2724, 0.5
      %v2789 = vmul.f32 %v2725, 0.5
      %v2790 = vmul.f32 %v2726, 0.5
      %v2791 = vmul.f32 %v2727, 0.5
      %v2792 = vmul.f32 %v2728, 0.5
      %v2793 = vmul.f32 %v2729, 0.5
      %v2794 = vmul.f32 %v2730, 0.5
      %v2795 = vmul.f32 %v2731, 0.5
      %v2796 = vmul.f32 %v2732, 0.5
      %v2797 = vmul.f32 %v2733, 0.5
      %v2798 = vmul.f32 %v2734, 0.5
      %v2799 = vmul.f32 %v2735, 0.5
      %v2800 = vmul.f32 %v2736, 0.5
      %v2801 = vmul.f32 %v2737, 0.5
      %v2802 = vmul.f32 %v2738, 0.5
      %v2803 = vmul.f32 %v2739, 0.5
      %v2804 = vmul.f32 %v2740, 0.5
      %v2805 = vmul.f32 %v2741, 0.5
      %v2806 = vmul.f32 %v2742, 0.5
      %v2807 = vmul.f32 %v2743, 0.5
      %v2808 = vmul.f32 %v2744, 0.5
      %v2809 = vmul.f32 %v2745, 0.5
      %v2810 = vmul.f32 %v2746, 0.5
      %v2811 = vmul.f32 %v2747, 0.5
      %v2812 = vmul.f32 %v2748, 0.5
      %v2813 = vmul.f32 %v2749, 0.5
      %v2814 = vmul.f32 %v2750, 0.5
      %v2815 = vmul.f32 %v2751, 0.5
      %v2816 = vmul.f32 %v2752, 0.5
      %v2817 = vmul.f32 %v2753, 0.5
      %v2818 = vmul.f32 %v2754, 0.5
      %v2819 = vmul.f32 %v2755, 0.5
      %v2820 = vmul.f32 %v2756, 0.5
      %v2821 = vmul.f32 %v2757, 0.5
      %v2822 = vmul.f32 %v2758, 0.5
      %v2823 = vmul.f32 %v2759, 0.5
      %v2824 = vmul.f32 %v2760, 0.5
      %v2825 = vmul.f32 %v2761, 0.5
      %v2826 = vmul.f32 %v2762, 0.5
      %v2827 = vmul.f32 %v2763, 0.5
      %v2828 = vmul.f32 %v2764, 0.5
      %v2829 = vmul.f32 %v2765, 0.5
      %v2830 = vmul.f32 %v2766, 0.5
      %v2831 = vadd.f32 %v2767, 0.5
      %v2832 = vadd.f32 %v2768, 0.5
      %v2833 = vadd.f32 %v2769, 0.5
      %v2834 = vadd.f32 %v2770, 0.5
      %v2835 = vadd.f32 %v2771, 0.5
      %v2836 = vadd.f32 %v2772, 0.5
      %v2837 = vadd.f32 %v2773, 0.5
      %v2838 = vadd.f32 %v2774, 0.5
      %v2839 = vadd.f32 %v2775, 0.5
      %v2840 = vadd.f32 %v2776, 0.5
      %v2841 = vadd.f32 %v2777, 0.5
      %v2842 = vadd.f32 %v2778, 0.5
      %v2843 = vadd.f32 %v2779, 0.5
      %v2844 = vadd.f32 %v2780, 0.5
      %v2845 = vadd.f32 %v2781, 0.5
      %v2846 = vadd.f32 %v2782, 0.5
      %v2847 = vadd.f32 %v2783, 0.5
      %v2848 = vadd.f32 %v2784, 0.5
      %v2849 = vadd.f32 %v2785, 0.5
      %v2850 = vadd.f32 %v2786, 0.5
      %v2851 = vadd.f32 %v2787, 0.5
      %v2852 = vadd.f32 %v2788, 0.5
      %v2853 = vadd.f32 %v2789, 0.5
      %v2854 = vadd.f32 %v2790, 0.5
      %v2855 = vadd.f32 %v2791, 0.5
      %v2856 = vadd.f32 %v2792, 0.5
      %v2857 = vadd.f32 %v2793, 0.5
      %v2858 = vadd.f32 %v2794, 0.5
      %v2859 = vadd.f32 %v2795, 0.5
      %v2860 = vadd.f32 %v2796, 0.5
      %v2861 = vadd.f32 %v2797, 0.5
      %v2862 = vadd.f32 %v2798, 0.5
      %v2863 = vadd.f32 %v2799, 0.5
      %v2864 = vadd.f32 %v2800, 0.5
      %v2865 = vadd.f32 %v2801, 0.5
      %v2866 = vadd.f32 %v2802, 0.5
      %v2867 = vadd.f32 %v2803, 0.5
      %v2868 = vadd.f32 %v2804, 0.5
      %v2869 = vadd.f32 %v2805, 0.5
      %v2870 = vadd.f32 %v2806, 0.5
      %v2871 = vadd.f32 %v2807, 0.5
      %v2872 = vadd.f32 %v2808, 0.5
      %v2873 = vadd.f32 %v2809, 0.5
      %v2874 = vadd.f32 %v2810, 0.5
      %v2875 = vadd.f32 %v2811, 0.5
      %v2876 = vadd.f32 %v2812, 0.5
      %v2877 = vadd.f32 %v2813, 0.5
      %v2878 = vadd.f32 %v2814, 0.5
      %v2879 = vadd.f32 %v2815, 0.5
      %v2880 = vadd.f32 %v2816, 0.5
      %v2881 = vadd.f32 %v2817, 0.5
      %v2882 = vadd.f32 %v2818, 0.5
      %v2883 = vadd.f32 %v2819, 0.5
      %v2884 = vadd.f32 %v2820, 0.5
      %v2885 = vadd.f32 %v2821, 0.5
      %v2886 = vadd.f32 %v2822, 0.5
      %v2887 = vadd.f32 %v2823, 0.5
      %v2888 = vadd.f32 %v2824, 0.5
      %v2889 = vadd.f32 %v2825, 0.5
      %v2890 = vadd.f32 %v2826, 0.5
      %v2891 = vadd.f32 %v2827, 0.5
      %v2892 = vadd.f32 %v2828, 0.5
      %v2893 = vadd.f32 %v2829, 0.5
      %v2894 = vadd.f32 %v2830, 0.5
      %v2895 = vld [vmem:[%s8] sm:$0xf]
      %v2896 = vld [vmem:[%s8 + $0x4] sm:$0xf]
      %v2897 = vld [vmem:[%s9] sm:$0xf]
      %v2898 = vld [vmem:[%s9 + $0x4] sm:$0xf]
      %2899 = vrot.lane.b32.xlu0 %v803, 32
      %v2900 = vpop.permute.xlu0 %2899
      %2901 = vrot.lane.b32.xlu0 %v804, 32
      %v2902 = vpop.permute.xlu0 %2901
      %2903 = vrot.lane.b32.xlu0 %v805, 32
      %v2904 = vpop.permute.xlu0 %2903
      %2905 = vrot.lane.b32.xlu0 %v806, 32
      %v2906 = vpop.permute.xlu0 %2905
      %2907 = vrot.lane.b32.xlu0 %v807, 32
      %v2908 = vpop.permute.xlu0 %2907
      %2909 = vrot.lane.b32.xlu0 %v808, 32
      %v2910 = vpop.permute.xlu0 %2909
      %2911 = vrot.lane.b32.xlu0 %v809, 32
      %v2912 = vpop.permute.xlu0 %2911
      %2913 = vrot.lane.b32.xlu0 %v810, 32
      %v2914 = vpop.permute.xlu0 %2913
      %2915 = vrot.lane.b32.xlu0 %v811, 32
      %v2916 = vpop.permute.xlu0 %2915
      %2917 = vrot.lane.b32.xlu0 %v812, 32
      %v2918 = vpop.permute.xlu0 %2917
      %2919 = vrot.lane.b32.xlu0 %v813, 32
      %v2920 = vpop.permute.xlu0 %2919
      %2921 = vrot.lane.b32.xlu0 %v814, 32
      %v2922 = vpop.permute.xlu0 %2921
      %2923 = vrot.lane.b32.xlu0 %v815, 32
      %v2924 = vpop.permute.xlu0 %2923
      %2925 = vrot.lane.b32.xlu0 %v816, 32
      %v2926 = vpop.permute.xlu0 %2925
      %2927 = vrot.lane.b32.xlu0 %v817, 32
      %v2928 = vpop.permute.xlu0 %2927
      %2929 = vrot.lane.b32.xlu0 %v818, 32
      %v2930 = vpop.permute.xlu0 %2929
      %2931 = vrot.lane.b32.xlu0 %v819, 32
      %v2932 = vpop.permute.xlu0 %2931
      %2933 = vrot.lane.b32.xlu0 %v820, 32
      %v2934 = vpop.permute.xlu0 %2933
      %2935 = vrot.lane.b32.xlu0 %v821, 32
      %v2936 = vpop.permute.xlu0 %2935
      %2937 = vrot.lane.b32.xlu0 %v822, 32
      %v2938 = vpop.permute.xlu0 %2937
      %2939 = vrot.lane.b32.xlu0 %v823, 32
      %v2940 = vpop.permute.xlu0 %2939
      %2941 = vrot.lane.b32.xlu0 %v824, 32
      %v2942 = vpop.permute.xlu0 %2941
      %2943 = vrot.lane.b32.xlu0 %v825, 32
      %v2944 = vpop.permute.xlu0 %2943
      %2945 = vrot.lane.b32.xlu0 %v826, 32
      %v2946 = vpop.permute.xlu0 %2945
      %2947 = vrot.lane.b32.xlu0 %v827, 32
      %v2948 = vpop.permute.xlu0 %2947
      %2949 = vrot.lane.b32.xlu0 %v828, 32
      %v2950 = vpop.permute.xlu0 %2949
      %2951 = vrot.lane.b32.xlu0 %v829, 32
      %v2952 = vpop.permute.xlu0 %2951
      %2953 = vrot.lane.b32.xlu0 %v830, 32
      %v2954 = vpop.permute.xlu0 %2953
      %2955 = vrot.lane.b32.xlu0 %v831, 32
      %v2956 = vpop.permute.xlu0 %2955
      %2957 = vrot.lane.b32.xlu0 %v832, 32
      %v2958 = vpop.permute.xlu0 %2957
      %2959 = vrot.lane.b32.xlu0 %v833, 32
      %v2960 = vpop.permute.xlu0 %2959
      %2961 = vrot.lane.b32.xlu0 %v834, 32
      %v2962 = vpop.permute.xlu0 %2961
      %v2965 = vunpack.c.l.b16 %v2897
      %v2966 = vunpack.c.l.b16 %v2898
      %v2967 = vpack.c.b16 %v2966, %v2965
      %v2970 = vsel %vm1908, %v2900, 0
      %v2973 = vsel %vm1908, %v2902, 0
      %v2976 = vsel %vm1908, %v2904, 0
      %v2979 = vsel %vm1908, %v2906, 0
      %v2982 = vsel %vm1908, %v2908, 0
      %v2985 = vsel %vm1908, %v2910, 0
      %v2988 = vsel %vm1908, %v2912, 0
      %v2991 = vsel %vm1908, %v2914, 0
      %v2994 = vsel %vm1908, %v2916, 0
      %v2997 = vsel %vm1908, %v2918, 0
      %v3000 = vsel %vm1908, %v2920, 0
      %v3003 = vsel %vm1908, %v2922, 0
      %v3006 = vsel %vm1908, %v2924, 0
      %v3009 = vsel %vm1908, %v2926, 0
      %v3012 = vsel %vm1908, %v2928, 0
      %v3015 = vsel %vm1908, %v2930, 0
      %v3018 = vsel %vm1908, %v2932, 0
      %v3021 = vsel %vm1908, %v2934, 0
      %v3024 = vsel %vm1908, %v2936, 0
      %v3027 = vsel %vm1908, %v2938, 0
      %v3030 = vsel %vm1908, %v2940, 0
      %v3033 = vsel %vm1908, %v2942, 0
      %v3036 = vsel %vm1908, %v2944, 0
      %v3039 = vsel %vm1908, %v2946, 0
      %v3042 = vsel %vm1908, %v2948, 0
      %v3045 = vsel %vm1908, %v2950, 0
      %v3048 = vsel %vm1908, %v2952, 0
      %v3051 = vsel %vm1908, %v2954, 0
      %v3054 = vsel %vm1908, %v2956, 0
      %v3057 = vsel %vm1908, %v2958, 0
      %v3060 = vsel %vm1908, %v2960, 0
      %v3063 = vsel %vm1908, %v2962, 0
      %3065 = vmatpush.bf16.msra.mxu0 0
      %3066 = vmatpush.bf16.msra.mxu0 0
      %3067 = vmatpush.bf16.msra.mxu0 0
      %3068 = vmatpush.bf16.msra.mxu0 0
      %3069 = vmatpush.bf16.msra.mxu0 0
      %3070 = vmatpush.bf16.msra.mxu0 0
      %3071 = vmatpush.bf16.msra.mxu0 0
      %3072 = vmatpush.bf16.msra.mxu0 %v2967
      %3073 = vmatmul.bf16.gmra.mxu0 %v2970
      %v3074 = vpop.f32.mrf.mxu0
      %v3075 = vadd.f32 0.0, %v3074
      %v3076 = vpop.f32.mrf.mxu0
      %v3077 = vadd.f32 0.0, %v3076
      %3078 = vmatmul.bf16.gmra.mxu0 %v2973
      %v3079 = vpop.f32.mrf.mxu0
      %v3080 = vadd.f32 0.0, %v3079
      %v3081 = vpop.f32.mrf.mxu0
      %v3082 = vadd.f32 0.0, %v3081
      %3083 = vmatmul.bf16.gmra.mxu0 %v2976
      %v3084 = vpop.f32.mrf.mxu0
      %v3085 = vadd.f32 0.0, %v3084
      %v3086 = vpop.f32.mrf.mxu0
      %v3087 = vadd.f32 0.0, %v3086
      %3088 = vmatmul.bf16.gmra.mxu0 %v2979
      %v3089 = vpop.f32.mrf.mxu0
      %v3090 = vadd.f32 0.0, %v3089
      %v3091 = vpop.f32.mrf.mxu0
      %v3092 = vadd.f32 0.0, %v3091
      %3093 = vmatmul.bf16.gmra.mxu0 %v2982
      %v3094 = vpop.f32.mrf.mxu0
      %v3095 = vadd.f32 0.0, %v3094
      %v3096 = vpop.f32.mrf.mxu0
      %v3097 = vadd.f32 0.0, %v3096
      %3098 = vmatmul.bf16.gmra.mxu0 %v2985
      %v3099 = vpop.f32.mrf.mxu0
      %v3100 = vadd.f32 0.0, %v3099
      %v3101 = vpop.f32.mrf.mxu0
      %v3102 = vadd.f32 0.0, %v3101
      %3103 = vmatmul.bf16.gmra.mxu0 %v2988
      %v3104 = vpop.f32.mrf.mxu0
      %v3105 = vadd.f32 0.0, %v3104
      %v3106 = vpop.f32.mrf.mxu0
      %v3107 = vadd.f32 0.0, %v3106
      %3108 = vmatmul.bf16.gmra.mxu0 %v2991
      %v3109 = vpop.f32.mrf.mxu0
      %v3110 = vadd.f32 0.0, %v3109
      %v3111 = vpop.f32.mrf.mxu0
      %v3112 = vadd.f32 0.0, %v3111
      %3113 = vmatmul.bf16.gmra.mxu0 %v2994
      %v3114 = vpop.f32.mrf.mxu0
      %v3115 = vadd.f32 0.0, %v3114
      %v3116 = vpop.f32.mrf.mxu0
      %v3117 = vadd.f32 0.0, %v3116
      %3118 = vmatmul.bf16.gmra.mxu0 %v2997
      %v3119 = vpop.f32.mrf.mxu0
      %v3120 = vadd.f32 0.0, %v3119
      %v3121 = vpop.f32.mrf.mxu0
      %v3122 = vadd.f32 0.0, %v3121
      %3123 = vmatmul.bf16.gmra.mxu0 %v3000
      %v3124 = vpop.f32.mrf.mxu0
      %v3125 = vadd.f32 0.0, %v3124
      %v3126 = vpop.f32.mrf.mxu0
      %v3127 = vadd.f32 0.0, %v3126
      %3128 = vmatmul.bf16.gmra.mxu0 %v3003
      %v3129 = vpop.f32.mrf.mxu0
      %v3130 = vadd.f32 0.0, %v3129
      %v3131 = vpop.f32.mrf.mxu0
      %v3132 = vadd.f32 0.0, %v3131
      %3133 = vmatmul.bf16.gmra.mxu0 %v3006
      %v3134 = vpop.f32.mrf.mxu0
      %v3135 = vadd.f32 0.0, %v3134
      %v3136 = vpop.f32.mrf.mxu0
      %v3137 = vadd.f32 0.0, %v3136
      %3138 = vmatmul.bf16.gmra.mxu0 %v3009
      %v3139 = vpop.f32.mrf.mxu0
      %v3140 = vadd.f32 0.0, %v3139
      %v3141 = vpop.f32.mrf.mxu0
      %v3142 = vadd.f32 0.0, %v3141
      %3143 = vmatmul.bf16.gmra.mxu0 %v3012
      %v3144 = vpop.f32.mrf.mxu0
      %v3145 = vadd.f32 0.0, %v3144
      %v3146 = vpop.f32.mrf.mxu0
      %v3147 = vadd.f32 0.0, %v3146
      %3148 = vmatmul.bf16.gmra.mxu0 %v3015
      %v3149 = vpop.f32.mrf.mxu0
      %v3150 = vadd.f32 0.0, %v3149
      %v3151 = vpop.f32.mrf.mxu0
      %v3152 = vadd.f32 0.0, %v3151
      %3153 = vmatmul.bf16.gmra.mxu0 %v3018
      %v3154 = vpop.f32.mrf.mxu0
      %v3155 = vadd.f32 0.0, %v3154
      %v3156 = vpop.f32.mrf.mxu0
      %v3157 = vadd.f32 0.0, %v3156
      %3158 = vmatmul.bf16.gmra.mxu0 %v3021
      %v3159 = vpop.f32.mrf.mxu0
      %v3160 = vadd.f32 0.0, %v3159
      %v3161 = vpop.f32.mrf.mxu0
      %v3162 = vadd.f32 0.0, %v3161
      %3163 = vmatmul.bf16.gmra.mxu0 %v3024
      %v3164 = vpop.f32.mrf.mxu0
      %v3165 = vadd.f32 0.0, %v3164
      %v3166 = vpop.f32.mrf.mxu0
      %v3167 = vadd.f32 0.0, %v3166
      %3168 = vmatmul.bf16.gmra.mxu0 %v3027
      %v3169 = vpop.f32.mrf.mxu0
      %v3170 = vadd.f32 0.0, %v3169
      %v3171 = vpop.f32.mrf.mxu0
      %v3172 = vadd.f32 0.0, %v3171
      %3173 = vmatmul.bf16.gmra.mxu0 %v3030
      %v3174 = vpop.f32.mrf.mxu0
      %v3175 = vadd.f32 0.0, %v3174
      %v3176 = vpop.f32.mrf.mxu0
      %v3177 = vadd.f32 0.0, %v3176
      %3178 = vmatmul.bf16.gmra.mxu0 %v3033
      %v3179 = vpop.f32.mrf.mxu0
      %v3180 = vadd.f32 0.0, %v3179
      %v3181 = vpop.f32.mrf.mxu0
      %v3182 = vadd.f32 0.0, %v3181
      %3183 = vmatmul.bf16.gmra.mxu0 %v3036
      %v3184 = vpop.f32.mrf.mxu0
      %v3185 = vadd.f32 0.0, %v3184
      %v3186 = vpop.f32.mrf.mxu0
      %v3187 = vadd.f32 0.0, %v3186
      %3188 = vmatmul.bf16.gmra.mxu0 %v3039
      %v3189 = vpop.f32.mrf.mxu0
      %v3190 = vadd.f32 0.0, %v3189
      %v3191 = vpop.f32.mrf.mxu0
      %v3192 = vadd.f32 0.0, %v3191
      %3193 = vmatmul.bf16.gmra.mxu0 %v3042
      %v3194 = vpop.f32.mrf.mxu0
      %v3195 = vadd.f32 0.0, %v3194
      %v3196 = vpop.f32.mrf.mxu0
      %v3197 = vadd.f32 0.0, %v3196
      %3198 = vmatmul.bf16.gmra.mxu0 %v3045
      %v3199 = vpop.f32.mrf.mxu0
      %v3200 = vadd.f32 0.0, %v3199
      %v3201 = vpop.f32.mrf.mxu0
      %v3202 = vadd.f32 0.0, %v3201
      %3203 = vmatmul.bf16.gmra.mxu0 %v3048
      %v3204 = vpop.f32.mrf.mxu0
      %v3205 = vadd.f32 0.0, %v3204
      %v3206 = vpop.f32.mrf.mxu0
      %v3207 = vadd.f32 0.0, %v3206
      %3208 = vmatmul.bf16.gmra.mxu0 %v3051
      %v3209 = vpop.f32.mrf.mxu0
      %v3210 = vadd.f32 0.0, %v3209
      %v3211 = vpop.f32.mrf.mxu0
      %v3212 = vadd.f32 0.0, %v3211
      %3213 = vmatmul.bf16.gmra.mxu0 %v3054
      %v3214 = vpop.f32.mrf.mxu0
      %v3215 = vadd.f32 0.0, %v3214
      %v3216 = vpop.f32.mrf.mxu0
      %v3217 = vadd.f32 0.0, %v3216
      %3218 = vmatmul.bf16.gmra.mxu0 %v3057
      %v3219 = vpop.f32.mrf.mxu0
      %v3220 = vadd.f32 0.0, %v3219
      %v3221 = vpop.f32.mrf.mxu0
      %v3222 = vadd.f32 0.0, %v3221
      %3223 = vmatmul.bf16.gmra.mxu0 %v3060
      %v3224 = vpop.f32.mrf.mxu0
      %v3225 = vadd.f32 0.0, %v3224
      %v3226 = vpop.f32.mrf.mxu0
      %v3227 = vadd.f32 0.0, %v3226
      %3228 = vmatmul.bf16.gmra.mxu0 %v3063
      %v3229 = vpop.f32.mrf.mxu0
      %v3230 = vadd.f32 0.0, %v3229
      %v3231 = vpop.f32.mrf.mxu0
      %v3232 = vadd.f32 0.0, %v3231
      %3233 = vdwg.mxu0
      %v3236 = vunpack.c.l.b16 %v2895
      %v3237 = vunpack.c.l.b16 %v2896
      %v3238 = vpack.c.b16 %v3237, %v3236
      %3240 = vmatpush.bf16.msra.mxu0 0
      %3241 = vmatpush.bf16.msra.mxu0 0
      %3242 = vmatpush.bf16.msra.mxu0 0
      %3243 = vmatpush.bf16.msra.mxu0 0
      %3244 = vmatpush.bf16.msra.mxu0 0
      %3245 = vmatpush.bf16.msra.mxu0 0
      %3246 = vmatpush.bf16.msra.mxu0 0
      %3247 = vmatpush.bf16.msra.mxu0 %v3238
      %3248 = vmatmul.bf16.gmra.mxu0 %v1910
      %v3249 = vpop.f32.mrf.mxu0
      %v3250 = vadd.f32 %v3075, %v3249
      %v3251 = vpop.f32.mrf.mxu0
      %v3252 = vadd.f32 %v3077, %v3251
      %3253 = vmatmul.bf16.gmra.mxu0 %v1913
      %v3254 = vpop.f32.mrf.mxu0
      %v3255 = vadd.f32 %v3080, %v3254
      %v3256 = vpop.f32.mrf.mxu0
      %v3257 = vadd.f32 %v3082, %v3256
      %3258 = vmatmul.bf16.gmra.mxu0 %v1916
      %v3259 = vpop.f32.mrf.mxu0
      %v3260 = vadd.f32 %v3085, %v3259
      %v3261 = vpop.f32.mrf.mxu0
      %v3262 = vadd.f32 %v3087, %v3261
      %3263 = vmatmul.bf16.gmra.mxu0 %v1919
      %v3264 = vpop.f32.mrf.mxu0
      %v3265 = vadd.f32 %v3090, %v3264
      %v3266 = vpop.f32.mrf.mxu0
      %v3267 = vadd.f32 %v3092, %v3266
      %3268 = vmatmul.bf16.gmra.mxu0 %v1922
      %v3269 = vpop.f32.mrf.mxu0
      %v3270 = vadd.f32 %v3095, %v3269
      %v3271 = vpop.f32.mrf.mxu0
      %v3272 = vadd.f32 %v3097, %v3271
      %3273 = vmatmul.bf16.gmra.mxu0 %v1925
      %v3274 = vpop.f32.mrf.mxu0
      %v3275 = vadd.f32 %v3100, %v3274
      %v3276 = vpop.f32.mrf.mxu0
      %v3277 = vadd.f32 %v3102, %v3276
      %3278 = vmatmul.bf16.gmra.mxu0 %v1928
      %v3279 = vpop.f32.mrf.mxu0
      %v3280 = vadd.f32 %v3105, %v3279
      %v3281 = vpop.f32.mrf.mxu0
      %v3282 = vadd.f32 %v3107, %v3281
      %3283 = vmatmul.bf16.gmra.mxu0 %v1931
      %v3284 = vpop.f32.mrf.mxu0
      %v3285 = vadd.f32 %v3110, %v3284
      %v3286 = vpop.f32.mrf.mxu0
      %v3287 = vadd.f32 %v3112, %v3286
      %3288 = vmatmul.bf16.gmra.mxu0 %v1934
      %v3289 = vpop.f32.mrf.mxu0
      %v3290 = vadd.f32 %v3115, %v3289
      %v3291 = vpop.f32.mrf.mxu0
      %v3292 = vadd.f32 %v3117, %v3291
      %3293 = vmatmul.bf16.gmra.mxu0 %v1937
      %v3294 = vpop.f32.mrf.mxu0
      %v3295 = vadd.f32 %v3120, %v3294
      %v3296 = vpop.f32.mrf.mxu0
      %v3297 = vadd.f32 %v3122, %v3296
      %3298 = vmatmul.bf16.gmra.mxu0 %v1940
      %v3299 = vpop.f32.mrf.mxu0
      %v3300 = vadd.f32 %v3125, %v3299
      %v3301 = vpop.f32.mrf.mxu0
      %v3302 = vadd.f32 %v3127, %v3301
      %3303 = vmatmul.bf16.gmra.mxu0 %v1943
      %v3304 = vpop.f32.mrf.mxu0
      %v3305 = vadd.f32 %v3130, %v3304
      %v3306 = vpop.f32.mrf.mxu0
      %v3307 = vadd.f32 %v3132, %v3306
      %3308 = vmatmul.bf16.gmra.mxu0 %v1946
      %v3309 = vpop.f32.mrf.mxu0
      %v3310 = vadd.f32 %v3135, %v3309
      %v3311 = vpop.f32.mrf.mxu0
      %v3312 = vadd.f32 %v3137, %v3311
      %3313 = vmatmul.bf16.gmra.mxu0 %v1949
      %v3314 = vpop.f32.mrf.mxu0
      %v3315 = vadd.f32 %v3140, %v3314
      %v3316 = vpop.f32.mrf.mxu0
      %v3317 = vadd.f32 %v3142, %v3316
      %3318 = vmatmul.bf16.gmra.mxu0 %v1952
      %v3319 = vpop.f32.mrf.mxu0
      %v3320 = vadd.f32 %v3145, %v3319
      %v3321 = vpop.f32.mrf.mxu0
      %v3322 = vadd.f32 %v3147, %v3321
      %3323 = vmatmul.bf16.gmra.mxu0 %v1955
      %v3324 = vpop.f32.mrf.mxu0
      %v3325 = vadd.f32 %v3150, %v3324
      %v3326 = vpop.f32.mrf.mxu0
      %v3327 = vadd.f32 %v3152, %v3326
      %3328 = vmatmul.bf16.gmra.mxu0 %v1958
      %v3329 = vpop.f32.mrf.mxu0
      %v3330 = vadd.f32 %v3155, %v3329
      %v3331 = vpop.f32.mrf.mxu0
      %v3332 = vadd.f32 %v3157, %v3331
      %3333 = vmatmul.bf16.gmra.mxu0 %v1961
      %v3334 = vpop.f32.mrf.mxu0
      %v3335 = vadd.f32 %v3160, %v3334
      %v3336 = vpop.f32.mrf.mxu0
      %v3337 = vadd.f32 %v3162, %v3336
      %3338 = vmatmul.bf16.gmra.mxu0 %v1964
      %v3339 = vpop.f32.mrf.mxu0
      %v3340 = vadd.f32 %v3165, %v3339
      %v3341 = vpop.f32.mrf.mxu0
      %v3342 = vadd.f32 %v3167, %v3341
      %3343 = vmatmul.bf16.gmra.mxu0 %v1967
      %v3344 = vpop.f32.mrf.mxu0
      %v3345 = vadd.f32 %v3170, %v3344
      %v3346 = vpop.f32.mrf.mxu0
      %v3347 = vadd.f32 %v3172, %v3346
      %3348 = vmatmul.bf16.gmra.mxu0 %v1970
      %v3349 = vpop.f32.mrf.mxu0
      %v3350 = vadd.f32 %v3175, %v3349
      %v3351 = vpop.f32.mrf.mxu0
      %v3352 = vadd.f32 %v3177, %v3351
      %3353 = vmatmul.bf16.gmra.mxu0 %v1973
      %v3354 = vpop.f32.mrf.mxu0
      %v3355 = vadd.f32 %v3180, %v3354
      %v3356 = vpop.f32.mrf.mxu0
      %v3357 = vadd.f32 %v3182, %v3356
      %3358 = vmatmul.bf16.gmra.mxu0 %v1976
      %v3359 = vpop.f32.mrf.mxu0
      %v3360 = vadd.f32 %v3185, %v3359
      %v3361 = vpop.f32.mrf.mxu0
      %v3362 = vadd.f32 %v3187, %v3361
      %3363 = vmatmul.bf16.gmra.mxu0 %v1979
      %v3364 = vpop.f32.mrf.mxu0
      %v3365 = vadd.f32 %v3190, %v3364
      %v3366 = vpop.f32.mrf.mxu0
      %v3367 = vadd.f32 %v3192, %v3366
      %3368 = vmatmul.bf16.gmra.mxu0 %v1982
      %v3369 = vpop.f32.mrf.mxu0
      %v3370 = vadd.f32 %v3195, %v3369
      %v3371 = vpop.f32.mrf.mxu0
      %v3372 = vadd.f32 %v3197, %v3371
      %3373 = vmatmul.bf16.gmra.mxu0 %v1985
      %v3374 = vpop.f32.mrf.mxu0
      %v3375 = vadd.f32 %v3200, %v3374
      %v3376 = vpop.f32.mrf.mxu0
      %v3377 = vadd.f32 %v3202, %v3376
      %3378 = vmatmul.bf16.gmra.mxu0 %v1988
      %v3379 = vpop.f32.mrf.mxu0
      %v3380 = vadd.f32 %v3205, %v3379
      %v3381 = vpop.f32.mrf.mxu0
      %v3382 = vadd.f32 %v3207, %v3381
      %3383 = vmatmul.bf16.gmra.mxu0 %v1991
      %v3384 = vpop.f32.mrf.mxu0
      %v3385 = vadd.f32 %v3210, %v3384
      %v3386 = vpop.f32.mrf.mxu0
      %v3387 = vadd.f32 %v3212, %v3386
      %3388 = vmatmul.bf16.gmra.mxu0 %v1994
      %v3389 = vpop.f32.mrf.mxu0
      %v3390 = vadd.f32 %v3215, %v3389
      %v3391 = vpop.f32.mrf.mxu0
      %v3392 = vadd.f32 %v3217, %v3391
      %3393 = vmatmul.bf16.gmra.mxu0 %v1997
      %v3394 = vpop.f32.mrf.mxu0
      %v3395 = vadd.f32 %v3220, %v3394
      %v3396 = vpop.f32.mrf.mxu0
      %v3397 = vadd.f32 %v3222, %v3396
      %3398 = vmatmul.bf16.gmra.mxu0 %v2000
      %v3399 = vpop.f32.mrf.mxu0
      %v3400 = vadd.f32 %v3225, %v3399
      %v3401 = vpop.f32.mrf.mxu0
      %v3402 = vadd.f32 %v3227, %v3401
      %3403 = vmatmul.bf16.gmra.mxu0 %v2003
      %v3404 = vpop.f32.mrf.mxu0
      %v3405 = vadd.f32 %v3230, %v3404
      %v3406 = vpop.f32.mrf.mxu0
      %v3407 = vadd.f32 %v3232, %v3406
      %3408 = vdwg.mxu0
      %v3409 = vld [vmem:[%s10] sm:$0x1]
      %v3411 = vperm.slane %v3409, 0
      %v3413 = vadd.f32 %v3250, %v3411
      %v3414 = vadd.f32 %v3252, %v3411
      %v3415 = vadd.f32 %v3255, %v3411
      %v3416 = vadd.f32 %v3257, %v3411
      %v3417 = vadd.f32 %v3260, %v3411
      %v3418 = vadd.f32 %v3262, %v3411
      %v3419 = vadd.f32 %v3265, %v3411
      %v3420 = vadd.f32 %v3267, %v3411
      %v3421 = vadd.f32 %v3270, %v3411
      %v3422 = vadd.f32 %v3272, %v3411
      %v3423 = vadd.f32 %v3275, %v3411
      %v3424 = vadd.f32 %v3277, %v3411
      %v3425 = vadd.f32 %v3280, %v3411
      %v3426 = vadd.f32 %v3282, %v3411
      %v3427 = vadd.f32 %v3285, %v3411
      %v3428 = vadd.f32 %v3287, %v3411
      %v3429 = vadd.f32 %v3290, %v3411
      %v3430 = vadd.f32 %v3292, %v3411
      %v3431 = vadd.f32 %v3295, %v3411
      %v3432 = vadd.f32 %v3297, %v3411
      %v3433 = vadd.f32 %v3300, %v3411
      %v3434 = vadd.f32 %v3302, %v3411
      %v3435 = vadd.f32 %v3305, %v3411
      %v3436 = vadd.f32 %v3307, %v3411
      %v3437 = vadd.f32 %v3310, %v3411
      %v3438 = vadd.f32 %v3312, %v3411
      %v3439 = vadd.f32 %v3315, %v3411
      %v3440 = vadd.f32 %v3317, %v3411
      %v3441 = vadd.f32 %v3320, %v3411
      %v3442 = vadd.f32 %v3322, %v3411
      %v3443 = vadd.f32 %v3325, %v3411
      %v3444 = vadd.f32 %v3327, %v3411
      %v3445 = vadd.f32 %v3330, %v3411
      %v3446 = vadd.f32 %v3332, %v3411
      %v3447 = vadd.f32 %v3335, %v3411
      %v3448 = vadd.f32 %v3337, %v3411
      %v3449 = vadd.f32 %v3340, %v3411
      %v3450 = vadd.f32 %v3342, %v3411
      %v3451 = vadd.f32 %v3345, %v3411
      %v3452 = vadd.f32 %v3347, %v3411
      %v3453 = vadd.f32 %v3350, %v3411
      %v3454 = vadd.f32 %v3352, %v3411
      %v3455 = vadd.f32 %v3355, %v3411
      %v3456 = vadd.f32 %v3357, %v3411
      %v3457 = vadd.f32 %v3360, %v3411
      %v3458 = vadd.f32 %v3362, %v3411
      %v3459 = vadd.f32 %v3365, %v3411
      %v3460 = vadd.f32 %v3367, %v3411
      %v3461 = vadd.f32 %v3370, %v3411
      %v3462 = vadd.f32 %v3372, %v3411
      %v3463 = vadd.f32 %v3375, %v3411
      %v3464 = vadd.f32 %v3377, %v3411
      %v3465 = vadd.f32 %v3380, %v3411
      %v3466 = vadd.f32 %v3382, %v3411
      %v3467 = vadd.f32 %v3385, %v3411
      %v3468 = vadd.f32 %v3387, %v3411
      %v3469 = vadd.f32 %v3390, %v3411
      %v3470 = vadd.f32 %v3392, %v3411
      %v3471 = vadd.f32 %v3395, %v3411
      %v3472 = vadd.f32 %v3397, %v3411
      %v3473 = vadd.f32 %v3400, %v3411
      %v3474 = vadd.f32 %v3402, %v3411
      %v3475 = vadd.f32 %v3405, %v3411
      %v3476 = vadd.f32 %v3407, %v3411
      %v3477 = vmax.f32 %v3413, 0.0
      %v3478 = vmax.f32 %v3414, 0.0
      %v3479 = vmax.f32 %v3415, 0.0
      %v3480 = vmax.f32 %v3416, 0.0
      %v3481 = vmax.f32 %v3417, 0.0
      %v3482 = vmax.f32 %v3418, 0.0
      %v3483 = vmax.f32 %v3419, 0.0
      %v3484 = vmax.f32 %v3420, 0.0
      %v3485 = vmax.f32 %v3421, 0.0
      %v3486 = vmax.f32 %v3422, 0.0
      %v3487 = vmax.f32 %v3423, 0.0
      %v3488 = vmax.f32 %v3424, 0.0
      %v3489 = vmax.f32 %v3425, 0.0
      %v3490 = vmax.f32 %v3426, 0.0
      %v3491 = vmax.f32 %v3427, 0.0
      %v3492 = vmax.f32 %v3428, 0.0
      %v3493 = vmax.f32 %v3429, 0.0
      %v3494 = vmax.f32 %v3430, 0.0
      %v3495 = vmax.f32 %v3431, 0.0
      %v3496 = vmax.f32 %v3432, 0.0
      %v3497 = vmax.f32 %v3433, 0.0
      %v3498 = vmax.f32 %v3434, 0.0
      %v3499 = vmax.f32 %v3435, 0.0
      %v3500 = vmax.f32 %v3436, 0.0
      %v3501 = vmax.f32 %v3437, 0.0
      %v3502 = vmax.f32 %v3438, 0.0
      %v3503 = vmax.f32 %v3439, 0.0
      %v3504 = vmax.f32 %v3440, 0.0
      %v3505 = vmax.f32 %v3441, 0.0
      %v3506 = vmax.f32 %v3442, 0.0
      %v3507 = vmax.f32 %v3443, 0.0
      %v3508 = vmax.f32 %v3444, 0.0
      %v3509 = vmax.f32 %v3445, 0.0
      %v3510 = vmax.f32 %v3446, 0.0
      %v3511 = vmax.f32 %v3447, 0.0
      %v3512 = vmax.f32 %v3448, 0.0
      %v3513 = vmax.f32 %v3449, 0.0
      %v3514 = vmax.f32 %v3450, 0.0
      %v3515 = vmax.f32 %v3451, 0.0
      %v3516 = vmax.f32 %v3452, 0.0
      %v3517 = vmax.f32 %v3453, 0.0
      %v3518 = vmax.f32 %v3454, 0.0
      %v3519 = vmax.f32 %v3455, 0.0
      %v3520 = vmax.f32 %v3456, 0.0
      %v3521 = vmax.f32 %v3457, 0.0
      %v3522 = vmax.f32 %v3458, 0.0
      %v3523 = vmax.f32 %v3459, 0.0
      %v3524 = vmax.f32 %v3460, 0.0
      %v3525 = vmax.f32 %v3461, 0.0
      %v3526 = vmax.f32 %v3462, 0.0
      %v3527 = vmax.f32 %v3463, 0.0
      %v3528 = vmax.f32 %v3464, 0.0
      %v3529 = vmax.f32 %v3465, 0.0
      %v3530 = vmax.f32 %v3466, 0.0
      %v3531 = vmax.f32 %v3467, 0.0
      %v3532 = vmax.f32 %v3468, 0.0
      %v3533 = vmax.f32 %v3469, 0.0
      %v3534 = vmax.f32 %v3470, 0.0
      %v3535 = vmax.f32 %v3471, 0.0
      %v3536 = vmax.f32 %v3472, 0.0
      %v3537 = vmax.f32 %v3473, 0.0
      %v3538 = vmax.f32 %v3474, 0.0
      %v3539 = vmax.f32 %v3475, 0.0
      %v3540 = vmax.f32 %v3476, 0.0
      %v3541 = vpack.c.bf16 %v3478, %v3477
      %v3542 = vpack.c.bf16 %v3480, %v3479
      %v3543 = vpack.c.bf16 %v3482, %v3481
      %v3544 = vpack.c.bf16 %v3484, %v3483
      %v3545 = vpack.c.bf16 %v3486, %v3485
      %v3546 = vpack.c.bf16 %v3488, %v3487
      %v3547 = vpack.c.bf16 %v3490, %v3489
      %v3548 = vpack.c.bf16 %v3492, %v3491
      %v3549 = vpack.c.bf16 %v3494, %v3493
      %v3550 = vpack.c.bf16 %v3496, %v3495
      %v3551 = vpack.c.bf16 %v3498, %v3497
      %v3552 = vpack.c.bf16 %v3500, %v3499
      %v3553 = vpack.c.bf16 %v3502, %v3501
      %v3554 = vpack.c.bf16 %v3504, %v3503
      %v3555 = vpack.c.bf16 %v3506, %v3505
      %v3556 = vpack.c.bf16 %v3508, %v3507
      %v3557 = vpack.c.bf16 %v3510, %v3509
      %v3558 = vpack.c.bf16 %v3512, %v3511
      %v3559 = vpack.c.bf16 %v3514, %v3513
      %v3560 = vpack.c.bf16 %v3516, %v3515
      %v3561 = vpack.c.bf16 %v3518, %v3517
      %v3562 = vpack.c.bf16 %v3520, %v3519
      %v3563 = vpack.c.bf16 %v3522, %v3521
      %v3564 = vpack.c.bf16 %v3524, %v3523
      %v3565 = vpack.c.bf16 %v3526, %v3525
      %v3566 = vpack.c.bf16 %v3528, %v3527
      %v3567 = vpack.c.bf16 %v3530, %v3529
      %v3568 = vpack.c.bf16 %v3532, %v3531
      %v3569 = vpack.c.bf16 %v3534, %v3533
      %v3570 = vpack.c.bf16 %v3536, %v3535
      %v3571 = vpack.c.bf16 %v3538, %v3537
      %v3572 = vpack.c.bf16 %v3540, %v3539
      %v3573 = vld [vmem:[%s11] sm:$0xf]
      %v3574 = vld [vmem:[%s11 + $0x4] sm:$0xf]
      %v3575 = vld [vmem:[%s11 + $0x8] sm:$0xf]
      %v3576 = vld [vmem:[%s11 + $0xc] sm:$0xf]
      %v3577 = vld [vmem:[%s11 + $0x10] sm:$0xf]
      %v3578 = vld [vmem:[%s11 + $0x14] sm:$0xf]
      %v3579 = vld [vmem:[%s11 + $0x18] sm:$0xf]
      %v3580 = vld [vmem:[%s11 + $0x1c] sm:$0xf]
      %v3581 = vld [vmem:[%s12] sm:$0x1]
      %v3583 = vperm.slane %v3581, 0
      %v3593 = vunpack.c.l.b16 %v3573
      %v3594 = vunpack.c.l.b16 %v3574
      %v3595 = vunpack.c.l.b16 %v3575
      %v3596 = vunpack.c.l.b16 %v3576
      %v3597 = vunpack.c.l.b16 %v3577
      %v3598 = vunpack.c.l.b16 %v3578
      %v3599 = vunpack.c.l.b16 %v3579
      %v3600 = vunpack.c.l.b16 %v3580
      %v3601 = vpack.c.b16 %v3594, %v3593
      %v3602 = vpack.c.b16 %v3596, %v3595
      %v3603 = vpack.c.b16 %v3598, %v3597
      %v3604 = vpack.c.b16 %v3600, %v3599
      %v3610 = vsel %vm1241, %v3541, 0
      %v3613 = vsel %vm1241, %v3542, 0
      %v3616 = vsel %vm1241, %v3543, 0
      %v3619 = vsel %vm1241, %v3544, 0
      %v3622 = vsel %vm1241, %v3545, 0
      %v3625 = vsel %vm1241, %v3546, 0
      %v3628 = vsel %vm1241, %v3547, 0
      %v3631 = vsel %vm1241, %v3548, 0
      %v3634 = vsel %vm1241, %v3549, 0
      %v3637 = vsel %vm1241, %v3550, 0
      %v3640 = vsel %vm1241, %v3551, 0
      %v3643 = vsel %vm1241, %v3552, 0
      %v3646 = vsel %vm1241, %v3553, 0
      %v3649 = vsel %vm1241, %v3554, 0
      %v3652 = vsel %vm1241, %v3555, 0
      %v3655 = vsel %vm1241, %v3556, 0
      %v3658 = vsel %vm1241, %v3557, 0
      %v3661 = vsel %vm1241, %v3558, 0
      %v3664 = vsel %vm1241, %v3559, 0
      %v3667 = vsel %vm1241, %v3560, 0
      %v3670 = vsel %vm1241, %v3561, 0
      %v3673 = vsel %vm1241, %v3562, 0
      %v3676 = vsel %vm1241, %v3563, 0
      %v3679 = vsel %vm1241, %v3564, 0
      %v3682 = vsel %vm1241, %v3565, 0
      %v3685 = vsel %vm1241, %v3566, 0
      %v3688 = vsel %vm1241, %v3567, 0
      %v3691 = vsel %vm1241, %v3568, 0
      %v3694 = vsel %vm1241, %v3569, 0
      %v3697 = vsel %vm1241, %v3570, 0
      %v3700 = vsel %vm1241, %v3571, 0
      %v3703 = vsel %vm1241, %v3572, 0
      %3705 = vmatpush.bf16.msra.mxu0 0
      %3706 = vmatpush.bf16.msra.mxu0 0
      %3707 = vmatpush.bf16.msra.mxu0 0
      %3708 = vmatpush.bf16.msra.mxu0 0
      %3709 = vmatpush.bf16.msra.mxu0 %v3604
      %3710 = vmatpush.bf16.msra.mxu0 %v3603
      %3711 = vmatpush.bf16.msra.mxu0 %v3602
      %3712 = vmatpush.bf16.msra.mxu0 %v3601
      %3713 = vmatmul.bf16.gmra.mxu0 %v3610
      %v3714 = vpop.f32.mrf.mxu0
      %v3715 = vadd.f32 %v3583, %v3714
      %v3716 = vpop.f32.mrf.mxu0
      %v3717 = vadd.f32 %v3583, %v3716
      %3718 = vmatmul.bf16.gmra.mxu0 %v3613
      %v3719 = vpop.f32.mrf.mxu0
      %v3720 = vadd.f32 %v3583, %v3719
      %v3721 = vpop.f32.mrf.mxu0
      %v3722 = vadd.f32 %v3583, %v3721
      %3723 = vmatmul.bf16.gmra.mxu0 %v3616
      %v3724 = vpop.f32.mrf.mxu0
      %v3725 = vadd.f32 %v3583, %v3724
      %v3726 = vpop.f32.mrf.mxu0
      %v3727 = vadd.f32 %v3583, %v3726
      %3728 = vmatmul.bf16.gmra.mxu0 %v3619
      %v3729 = vpop.f32.mrf.mxu0
      %v3730 = vadd.f32 %v3583, %v3729
      %v3731 = vpop.f32.mrf.mxu0
      %v3732 = vadd.f32 %v3583, %v3731
      %3733 = vmatmul.bf16.gmra.mxu0 %v3622
      %v3734 = vpop.f32.mrf.mxu0
      %v3735 = vadd.f32 %v3583, %v3734
      %v3736 = vpop.f32.mrf.mxu0
      %v3737 = vadd.f32 %v3583, %v3736
      %3738 = vmatmul.bf16.gmra.mxu0 %v3625
      %v3739 = vpop.f32.mrf.mxu0
      %v3740 = vadd.f32 %v3583, %v3739
      %v3741 = vpop.f32.mrf.mxu0
      %v3742 = vadd.f32 %v3583, %v3741
      %3743 = vmatmul.bf16.gmra.mxu0 %v3628
      %v3744 = vpop.f32.mrf.mxu0
      %v3745 = vadd.f32 %v3583, %v3744
      %v3746 = vpop.f32.mrf.mxu0
      %v3747 = vadd.f32 %v3583, %v3746
      %3748 = vmatmul.bf16.gmra.mxu0 %v3631
      %v3749 = vpop.f32.mrf.mxu0
      %v3750 = vadd.f32 %v3583, %v3749
      %v3751 = vpop.f32.mrf.mxu0
      %v3752 = vadd.f32 %v3583, %v3751
      %3753 = vmatmul.bf16.gmra.mxu0 %v3634
      %v3754 = vpop.f32.mrf.mxu0
      %v3755 = vadd.f32 %v3583, %v3754
      %v3756 = vpop.f32.mrf.mxu0
      %v3757 = vadd.f32 %v3583, %v3756
      %3758 = vmatmul.bf16.gmra.mxu0 %v3637
      %v3759 = vpop.f32.mrf.mxu0
      %v3760 = vadd.f32 %v3583, %v3759
      %v3761 = vpop.f32.mrf.mxu0
      %v3762 = vadd.f32 %v3583, %v3761
      %3763 = vmatmul.bf16.gmra.mxu0 %v3640
      %v3764 = vpop.f32.mrf.mxu0
      %v3765 = vadd.f32 %v3583, %v3764
      %v3766 = vpop.f32.mrf.mxu0
      %v3767 = vadd.f32 %v3583, %v3766
      %3768 = vmatmul.bf16.gmra.mxu0 %v3643
      %v3769 = vpop.f32.mrf.mxu0
      %v3770 = vadd.f32 %v3583, %v3769
      %v3771 = vpop.f32.mrf.mxu0
      %v3772 = vadd.f32 %v3583, %v3771
      %3773 = vmatmul.bf16.gmra.mxu0 %v3646
      %v3774 = vpop.f32.mrf.mxu0
      %v3775 = vadd.f32 %v3583, %v3774
      %v3776 = vpop.f32.mrf.mxu0
      %v3777 = vadd.f32 %v3583, %v3776
      %3778 = vmatmul.bf16.gmra.mxu0 %v3649
      %v3779 = vpop.f32.mrf.mxu0
      %v3780 = vadd.f32 %v3583, %v3779
      %v3781 = vpop.f32.mrf.mxu0
      %v3782 = vadd.f32 %v3583, %v3781
      %3783 = vmatmul.bf16.gmra.mxu0 %v3652
      %v3784 = vpop.f32.mrf.mxu0
      %v3785 = vadd.f32 %v3583, %v3784
      %v3786 = vpop.f32.mrf.mxu0
      %v3787 = vadd.f32 %v3583, %v3786
      %3788 = vmatmul.bf16.gmra.mxu0 %v3655
      %v3789 = vpop.f32.mrf.mxu0
      %v3790 = vadd.f32 %v3583, %v3789
      %v3791 = vpop.f32.mrf.mxu0
      %v3792 = vadd.f32 %v3583, %v3791
      %3793 = vmatmul.bf16.gmra.mxu0 %v3658
      %v3794 = vpop.f32.mrf.mxu0
      %v3795 = vadd.f32 %v3583, %v3794
      %v3796 = vpop.f32.mrf.mxu0
      %v3797 = vadd.f32 %v3583, %v3796
      %3798 = vmatmul.bf16.gmra.mxu0 %v3661
      %v3799 = vpop.f32.mrf.mxu0
      %v3800 = vadd.f32 %v3583, %v3799
      %v3801 = vpop.f32.mrf.mxu0
      %v3802 = vadd.f32 %v3583, %v3801
      %3803 = vmatmul.bf16.gmra.mxu0 %v3664
      %v3804 = vpop.f32.mrf.mxu0
      %v3805 = vadd.f32 %v3583, %v3804
      %v3806 = vpop.f32.mrf.mxu0
      %v3807 = vadd.f32 %v3583, %v3806
      %3808 = vmatmul.bf16.gmra.mxu0 %v3667
      %v3809 = vpop.f32.mrf.mxu0
      %v3810 = vadd.f32 %v3583, %v3809
      %v3811 = vpop.f32.mrf.mxu0
      %v3812 = vadd.f32 %v3583, %v3811
      %3813 = vmatmul.bf16.gmra.mxu0 %v3670
      %v3814 = vpop.f32.mrf.mxu0
      %v3815 = vadd.f32 %v3583, %v3814
      %v3816 = vpop.f32.mrf.mxu0
      %v3817 = vadd.f32 %v3583, %v3816
      %3818 = vmatmul.bf16.gmra.mxu0 %v3673
      %v3819 = vpop.f32.mrf.mxu0
      %v3820 = vadd.f32 %v3583, %v3819
      %v3821 = vpop.f32.mrf.mxu0
      %v3822 = vadd.f32 %v3583, %v3821
      %3823 = vmatmul.bf16.gmra.mxu0 %v3676
      %v3824 = vpop.f32.mrf.mxu0
      %v3825 = vadd.f32 %v3583, %v3824
      %v3826 = vpop.f32.mrf.mxu0
      %v3827 = vadd.f32 %v3583, %v3826
      %3828 = vmatmul.bf16.gmra.mxu0 %v3679
      %v3829 = vpop.f32.mrf.mxu0
      %v3830 = vadd.f32 %v3583, %v3829
      %v3831 = vpop.f32.mrf.mxu0
      %v3832 = vadd.f32 %v3583, %v3831
      %3833 = vmatmul.bf16.gmra.mxu0 %v3682
      %v3834 = vpop.f32.mrf.mxu0
      %v3835 = vadd.f32 %v3583, %v3834
      %v3836 = vpop.f32.mrf.mxu0
      %v3837 = vadd.f32 %v3583, %v3836
      %3838 = vmatmul.bf16.gmra.mxu0 %v3685
      %v3839 = vpop.f32.mrf.mxu0
      %v3840 = vadd.f32 %v3583, %v3839
      %v3841 = vpop.f32.mrf.mxu0
      %v3842 = vadd.f32 %v3583, %v3841
      %3843 = vmatmul.bf16.gmra.mxu0 %v3688
      %v3844 = vpop.f32.mrf.mxu0
      %v3845 = vadd.f32 %v3583, %v3844
      %v3846 = vpop.f32.mrf.mxu0
      %v3847 = vadd.f32 %v3583, %v3846
      %3848 = vmatmul.bf16.gmra.mxu0 %v3691
      %v3849 = vpop.f32.mrf.mxu0
      %v3850 = vadd.f32 %v3583, %v3849
      %v3851 = vpop.f32.mrf.mxu0
      %v3852 = vadd.f32 %v3583, %v3851
      %3853 = vmatmul.bf16.gmra.mxu0 %v3694
      %v3854 = vpop.f32.mrf.mxu0
      %v3855 = vadd.f32 %v3583, %v3854
      %v3856 = vpop.f32.mrf.mxu0
      %v3857 = vadd.f32 %v3583, %v3856
      %3858 = vmatmul.bf16.gmra.mxu0 %v3697
      %v3859 = vpop.f32.mrf.mxu0
      %v3860 = vadd.f32 %v3583, %v3859
      %v3861 = vpop.f32.mrf.mxu0
      %v3862 = vadd.f32 %v3583, %v3861
      %3863 = vmatmul.bf16.gmra.mxu0 %v3700
      %v3864 = vpop.f32.mrf.mxu0
      %v3865 = vadd.f32 %v3583, %v3864
      %v3866 = vpop.f32.mrf.mxu0
      %v3867 = vadd.f32 %v3583, %v3866
      %3868 = vmatmul.bf16.gmra.mxu0 %v3703
      %v3869 = vpop.f32.mrf.mxu0
      %v3870 = vadd.f32 %v3583, %v3869
      %v3871 = vpop.f32.mrf.mxu0
      %v3872 = vadd.f32 %v3583, %v3871
      %3873 = vdwg.mxu0
      %v3874 = vmax.f32 %v3715, 0.0
      %v3875 = vmax.f32 %v3717, 0.0
      %v3876 = vmax.f32 %v3720, 0.0
      %v3877 = vmax.f32 %v3722, 0.0
      %v3878 = vmax.f32 %v3725, 0.0
      %v3879 = vmax.f32 %v3727, 0.0
      %v3880 = vmax.f32 %v3730, 0.0
      %v3881 = vmax.f32 %v3732, 0.0
      %v3882 = vmax.f32 %v3735, 0.0
      %v3883 = vmax.f32 %v3737, 0.0
      %v3884 = vmax.f32 %v3740, 0.0
      %v3885 = vmax.f32 %v3742, 0.0
      %v3886 = vmax.f32 %v3745, 0.0
      %v3887 = vmax.f32 %v3747, 0.0
      %v3888 = vmax.f32 %v3750, 0.0
      %v3889 = vmax.f32 %v3752, 0.0
      %v3890 = vmax.f32 %v3755, 0.0
      %v3891 = vmax.f32 %v3757, 0.0
      %v3892 = vmax.f32 %v3760, 0.0
      %v3893 = vmax.f32 %v3762, 0.0
      %v3894 = vmax.f32 %v3765, 0.0
      %v3895 = vmax.f32 %v3767, 0.0
      %v3896 = vmax.f32 %v3770, 0.0
      %v3897 = vmax.f32 %v3772, 0.0
      %v3898 = vmax.f32 %v3775, 0.0
      %v3899 = vmax.f32 %v3777, 0.0
      %v3900 = vmax.f32 %v3780, 0.0
      %v3901 = vmax.f32 %v3782, 0.0
      %v3902 = vmax.f32 %v3785, 0.0
      %v3903 = vmax.f32 %v3787, 0.0
      %v3904 = vmax.f32 %v3790, 0.0
      %v3905 = vmax.f32 %v3792, 0.0
      %v3906 = vmax.f32 %v3795, 0.0
      %v3907 = vmax.f32 %v3797, 0.0
      %v3908 = vmax.f32 %v3800, 0.0
      %v3909 = vmax.f32 %v3802, 0.0
      %v3910 = vmax.f32 %v3805, 0.0
      %v3911 = vmax.f32 %v3807, 0.0
      %v3912 = vmax.f32 %v3810, 0.0
      %v3913 = vmax.f32 %v3812, 0.0
      %v3914 = vmax.f32 %v3815, 0.0
      %v3915 = vmax.f32 %v3817, 0.0
      %v3916 = vmax.f32 %v3820, 0.0
      %v3917 = vmax.f32 %v3822, 0.0
      %v3918 = vmax.f32 %v3825, 0.0
      %v3919 = vmax.f32 %v3827, 0.0
      %v3920 = vmax.f32 %v3830, 0.0
      %v3921 = vmax.f32 %v3832, 0.0
      %v3922 = vmax.f32 %v3835, 0.0
      %v3923 = vmax.f32 %v3837, 0.0
      %v3924 = vmax.f32 %v3840, 0.0
      %v3925 = vmax.f32 %v3842, 0.0
      %v3926 = vmax.f32 %v3845, 0.0
      %v3927 = vmax.f32 %v3847, 0.0
      %v3928 = vmax.f32 %v3850, 0.0
      %v3929 = vmax.f32 %v3852, 0.0
      %v3930 = vmax.f32 %v3855, 0.0
      %v3931 = vmax.f32 %v3857, 0.0
      %v3932 = vmax.f32 %v3860, 0.0
      %v3933 = vmax.f32 %v3862, 0.0
      %v3934 = vmax.f32 %v3865, 0.0
      %v3935 = vmax.f32 %v3867, 0.0
      %v3936 = vmax.f32 %v3870, 0.0
      %v3937 = vmax.f32 %v3872, 0.0
      %v3938 = vpack.c.bf16 %v3875, %v3874
      %v3939 = vpack.c.bf16 %v3877, %v3876
      %v3940 = vpack.c.bf16 %v3879, %v3878
      %v3941 = vpack.c.bf16 %v3881, %v3880
      %v3942 = vpack.c.bf16 %v3883, %v3882
      %v3943 = vpack.c.bf16 %v3885, %v3884
      %v3944 = vpack.c.bf16 %v3887, %v3886
      %v3945 = vpack.c.bf16 %v3889, %v3888
      %v3946 = vpack.c.bf16 %v3891, %v3890
      %v3947 = vpack.c.bf16 %v3893, %v3892
      %v3948 = vpack.c.bf16 %v3895, %v3894
      %v3949 = vpack.c.bf16 %v3897, %v3896
      %v3950 = vpack.c.bf16 %v3899, %v3898
      %v3951 = vpack.c.bf16 %v3901, %v3900
      %v3952 = vpack.c.bf16 %v3903, %v3902
      %v3953 = vpack.c.bf16 %v3905, %v3904
      %v3954 = vpack.c.bf16 %v3907, %v3906
      %v3955 = vpack.c.bf16 %v3909, %v3908
      %v3956 = vpack.c.bf16 %v3911, %v3910
      %v3957 = vpack.c.bf16 %v3913, %v3912
      %v3958 = vpack.c.bf16 %v3915, %v3914
      %v3959 = vpack.c.bf16 %v3917, %v3916
      %v3960 = vpack.c.bf16 %v3919, %v3918
      %v3961 = vpack.c.bf16 %v3921, %v3920
      %v3962 = vpack.c.bf16 %v3923, %v3922
      %v3963 = vpack.c.bf16 %v3925, %v3924
      %v3964 = vpack.c.bf16 %v3927, %v3926
      %v3965 = vpack.c.bf16 %v3929, %v3928
      %v3966 = vpack.c.bf16 %v3931, %v3930
      %v3967 = vpack.c.bf16 %v3933, %v3932
      %v3968 = vpack.c.bf16 %v3935, %v3934
      %v3969 = vpack.c.bf16 %v3937, %v3936
      %v3970 = vld [vmem:[%s13] sm:$0xf]
      %v3971 = vld [vmem:[%s13 + $0x4] sm:$0xf]
      %v3972 = vld [vmem:[%s13 + $0x8] sm:$0xf]
      %v3973 = vld [vmem:[%s13 + $0xc] sm:$0xf]
      %v3974 = vld [vmem:[%s13 + $0x10] sm:$0xf]
      %v3975 = vld [vmem:[%s13 + $0x14] sm:$0xf]
      %v3976 = vld [vmem:[%s13 + $0x18] sm:$0xf]
      %v3977 = vld [vmem:[%s13 + $0x1c] sm:$0xf]
      %v3978 = vld [vmem:[%s14] sm:$0x1]
      %v3980 = vperm.slane %v3978, 0
      %v3990 = vunpack.c.l.b16 %v3970
      %v3991 = vunpack.c.l.b16 %v3971
      %v3992 = vunpack.c.l.b16 %v3972
      %v3993 = vunpack.c.l.b16 %v3973
      %v3994 = vunpack.c.l.b16 %v3974
      %v3995 = vunpack.c.l.b16 %v3975
      %v3996 = vunpack.c.l.b16 %v3976
      %v3997 = vunpack.c.l.b16 %v3977
      %v3998 = vpack.c.b16 %v3991, %v3990
      %v3999 = vpack.c.b16 %v3993, %v3992
      %v4000 = vpack.c.b16 %v3995, %v3994
      %v4001 = vpack.c.b16 %v3997, %v3996
      %v4007 = vsel %vm1241, %v3938, 0
      %v4010 = vsel %vm1241, %v3939, 0
      %v4013 = vsel %vm1241, %v3940, 0
      %v4016 = vsel %vm1241, %v3941, 0
      %v4019 = vsel %vm1241, %v3942, 0
      %v4022 = vsel %vm1241, %v3943, 0
      %v4025 = vsel %vm1241, %v3944, 0
      %v4028 = vsel %vm1241, %v3945, 0
      %v4031 = vsel %vm1241, %v3946, 0
      %v4034 = vsel %vm1241, %v3947, 0
      %v4037 = vsel %vm1241, %v3948, 0
      %v4040 = vsel %vm1241, %v3949, 0
      %v4043 = vsel %vm1241, %v3950, 0
      %v4046 = vsel %vm1241, %v3951, 0
      %v4049 = vsel %vm1241, %v3952, 0
      %v4052 = vsel %vm1241, %v3953, 0
      %v4055 = vsel %vm1241, %v3954, 0
      %v4058 = vsel %vm1241, %v3955, 0
      %v4061 = vsel %vm1241, %v3956, 0
      %v4064 = vsel %vm1241, %v3957, 0
      %v4067 = vsel %vm1241, %v3958, 0
      %v4070 = vsel %vm1241, %v3959, 0
      %v4073 = vsel %vm1241, %v3960, 0
      %v4076 = vsel %vm1241, %v3961, 0
      %v4079 = vsel %vm1241, %v3962, 0
      %v4082 = vsel %vm1241, %v3963, 0
      %v4085 = vsel %vm1241, %v3964, 0
      %v4088 = vsel %vm1241, %v3965, 0
      %v4091 = vsel %vm1241, %v3966, 0
      %v4094 = vsel %vm1241, %v3967, 0
      %v4097 = vsel %vm1241, %v3968, 0
      %v4100 = vsel %vm1241, %v3969, 0
      %4102 = vmatpush.bf16.msra.mxu0 0
      %4103 = vmatpush.bf16.msra.mxu0 0
      %4104 = vmatpush.bf16.msra.mxu0 0
      %4105 = vmatpush.bf16.msra.mxu0 0
      %4106 = vmatpush.bf16.msra.mxu0 %v4001
      %4107 = vmatpush.bf16.msra.mxu0 %v4000
      %4108 = vmatpush.bf16.msra.mxu0 %v3999
      %4109 = vmatpush.bf16.msra.mxu0 %v3998
      %4110 = vmatmul.bf16.gmra.mxu0 %v4007
      %v4111 = vpop.f32.mrf.mxu0
      %v4112 = vadd.f32 %v3980, %v4111
      %v4113 = vpop.f32.mrf.mxu0
      %v4114 = vadd.f32 %v3980, %v4113
      %4115 = vmatmul.bf16.gmra.mxu0 %v4010
      %v4116 = vpop.f32.mrf.mxu0
      %v4117 = vadd.f32 %v3980, %v4116
      %v4118 = vpop.f32.mrf.mxu0
      %v4119 = vadd.f32 %v3980, %v4118
      %4120 = vmatmul.bf16.gmra.mxu0 %v4013
      %v4121 = vpop.f32.mrf.mxu0
      %v4122 = vadd.f32 %v3980, %v4121
      %v4123 = vpop.f32.mrf.mxu0
      %v4124 = vadd.f32 %v3980, %v4123
      %4125 = vmatmul.bf16.gmra.mxu0 %v4016
      %v4126 = vpop.f32.mrf.mxu0
      %v4127 = vadd.f32 %v3980, %v4126
      %v4128 = vpop.f32.mrf.mxu0
      %v4129 = vadd.f32 %v3980, %v4128
      %4130 = vmatmul.bf16.gmra.mxu0 %v4019
      %v4131 = vpop.f32.mrf.mxu0
      %v4132 = vadd.f32 %v3980, %v4131
      %v4133 = vpop.f32.mrf.mxu0
      %v4134 = vadd.f32 %v3980, %v4133
      %4135 = vmatmul.bf16.gmra.mxu0 %v4022
      %v4136 = vpop.f32.mrf.mxu0
      %v4137 = vadd.f32 %v3980, %v4136
      %v4138 = vpop.f32.mrf.mxu0
      %v4139 = vadd.f32 %v3980, %v4138
      %4140 = vmatmul.bf16.gmra.mxu0 %v4025
      %v4141 = vpop.f32.mrf.mxu0
      %v4142 = vadd.f32 %v3980, %v4141
      %v4143 = vpop.f32.mrf.mxu0
      %v4144 = vadd.f32 %v3980, %v4143
      %4145 = vmatmul.bf16.gmra.mxu0 %v4028
      %v4146 = vpop.f32.mrf.mxu0
      %v4147 = vadd.f32 %v3980, %v4146
      %v4148 = vpop.f32.mrf.mxu0
      %v4149 = vadd.f32 %v3980, %v4148
      %4150 = vmatmul.bf16.gmra.mxu0 %v4031
      %v4151 = vpop.f32.mrf.mxu0
      %v4152 = vadd.f32 %v3980, %v4151
      %v4153 = vpop.f32.mrf.mxu0
      %v4154 = vadd.f32 %v3980, %v4153
      %4155 = vmatmul.bf16.gmra.mxu0 %v4034
      %v4156 = vpop.f32.mrf.mxu0
      %v4157 = vadd.f32 %v3980, %v4156
      %v4158 = vpop.f32.mrf.mxu0
      %v4159 = vadd.f32 %v3980, %v4158
      %4160 = vmatmul.bf16.gmra.mxu0 %v4037
      %v4161 = vpop.f32.mrf.mxu0
      %v4162 = vadd.f32 %v3980, %v4161
      %v4163 = vpop.f32.mrf.mxu0
      %v4164 = vadd.f32 %v3980, %v4163
      %4165 = vmatmul.bf16.gmra.mxu0 %v4040
      %v4166 = vpop.f32.mrf.mxu0
      %v4167 = vadd.f32 %v3980, %v4166
      %v4168 = vpop.f32.mrf.mxu0
      %v4169 = vadd.f32 %v3980, %v4168
      %4170 = vmatmul.bf16.gmra.mxu0 %v4043
      %v4171 = vpop.f32.mrf.mxu0
      %v4172 = vadd.f32 %v3980, %v4171
      %v4173 = vpop.f32.mrf.mxu0
      %v4174 = vadd.f32 %v3980, %v4173
      %4175 = vmatmul.bf16.gmra.mxu0 %v4046
      %v4176 = vpop.f32.mrf.mxu0
      %v4177 = vadd.f32 %v3980, %v4176
      %v4178 = vpop.f32.mrf.mxu0
      %v4179 = vadd.f32 %v3980, %v4178
      %4180 = vmatmul.bf16.gmra.mxu0 %v4049
      %v4181 = vpop.f32.mrf.mxu0
      %v4182 = vadd.f32 %v3980, %v4181
      %v4183 = vpop.f32.mrf.mxu0
      %v4184 = vadd.f32 %v3980, %v4183
      %4185 = vmatmul.bf16.gmra.mxu0 %v4052
      %v4186 = vpop.f32.mrf.mxu0
      %v4187 = vadd.f32 %v3980, %v4186
      %v4188 = vpop.f32.mrf.mxu0
      %v4189 = vadd.f32 %v3980, %v4188
      %4190 = vmatmul.bf16.gmra.mxu0 %v4055
      %v4191 = vpop.f32.mrf.mxu0
      %v4192 = vadd.f32 %v3980, %v4191
      %v4193 = vpop.f32.mrf.mxu0
      %v4194 = vadd.f32 %v3980, %v4193
      %4195 = vmatmul.bf16.gmra.mxu0 %v4058
      %v4196 = vpop.f32.mrf.mxu0
      %v4197 = vadd.f32 %v3980, %v4196
      %v4198 = vpop.f32.mrf.mxu0
      %v4199 = vadd.f32 %v3980, %v4198
      %4200 = vmatmul.bf16.gmra.mxu0 %v4061
      %v4201 = vpop.f32.mrf.mxu0
      %v4202 = vadd.f32 %v3980, %v4201
      %v4203 = vpop.f32.mrf.mxu0
      %v4204 = vadd.f32 %v3980, %v4203
      %4205 = vmatmul.bf16.gmra.mxu0 %v4064
      %v4206 = vpop.f32.mrf.mxu0
      %v4207 = vadd.f32 %v3980, %v4206
      %v4208 = vpop.f32.mrf.mxu0
      %v4209 = vadd.f32 %v3980, %v4208
      %4210 = vmatmul.bf16.gmra.mxu0 %v4067
      %v4211 = vpop.f32.mrf.mxu0
      %v4212 = vadd.f32 %v3980, %v4211
      %v4213 = vpop.f32.mrf.mxu0
      %v4214 = vadd.f32 %v3980, %v4213
      %4215 = vmatmul.bf16.gmra.mxu0 %v4070
      %v4216 = vpop.f32.mrf.mxu0
      %v4217 = vadd.f32 %v3980, %v4216
      %v4218 = vpop.f32.mrf.mxu0
      %v4219 = vadd.f32 %v3980, %v4218
      %4220 = vmatmul.bf16.gmra.mxu0 %v4073
      %v4221 = vpop.f32.mrf.mxu0
      %v4222 = vadd.f32 %v3980, %v4221
      %v4223 = vpop.f32.mrf.mxu0
      %v4224 = vadd.f32 %v3980, %v4223
      %4225 = vmatmul.bf16.gmra.mxu0 %v4076
      %v4226 = vpop.f32.mrf.mxu0
      %v4227 = vadd.f32 %v3980, %v4226
      %v4228 = vpop.f32.mrf.mxu0
      %v4229 = vadd.f32 %v3980, %v4228
      %4230 = vmatmul.bf16.gmra.mxu0 %v4079
      %v4231 = vpop.f32.mrf.mxu0
      %v4232 = vadd.f32 %v3980, %v4231
      %v4233 = vpop.f32.mrf.mxu0
      %v4234 = vadd.f32 %v3980, %v4233
      %4235 = vmatmul.bf16.gmra.mxu0 %v4082
      %v4236 = vpop.f32.mrf.mxu0
      %v4237 = vadd.f32 %v3980, %v4236
      %v4238 = vpop.f32.mrf.mxu0
      %v4239 = vadd.f32 %v3980, %v4238
      %4240 = vmatmul.bf16.gmra.mxu0 %v4085
      %v4241 = vpop.f32.mrf.mxu0
      %v4242 = vadd.f32 %v3980, %v4241
      %v4243 = vpop.f32.mrf.mxu0
      %v4244 = vadd.f32 %v3980, %v4243
      %4245 = vmatmul.bf16.gmra.mxu0 %v4088
      %v4246 = vpop.f32.mrf.mxu0
      %v4247 = vadd.f32 %v3980, %v4246
      %v4248 = vpop.f32.mrf.mxu0
      %v4249 = vadd.f32 %v3980, %v4248
      %4250 = vmatmul.bf16.gmra.mxu0 %v4091
      %v4251 = vpop.f32.mrf.mxu0
      %v4252 = vadd.f32 %v3980, %v4251
      %v4253 = vpop.f32.mrf.mxu0
      %v4254 = vadd.f32 %v3980, %v4253
      %4255 = vmatmul.bf16.gmra.mxu0 %v4094
      %v4256 = vpop.f32.mrf.mxu0
      %v4257 = vadd.f32 %v3980, %v4256
      %v4258 = vpop.f32.mrf.mxu0
      %v4259 = vadd.f32 %v3980, %v4258
      %4260 = vmatmul.bf16.gmra.mxu0 %v4097
      %v4261 = vpop.f32.mrf.mxu0
      %v4262 = vadd.f32 %v3980, %v4261
      %v4263 = vpop.f32.mrf.mxu0
      %v4264 = vadd.f32 %v3980, %v4263
      %4265 = vmatmul.bf16.gmra.mxu0 %v4100
      %v4266 = vpop.f32.mrf.mxu0
      %v4267 = vadd.f32 %v3980, %v4266
      %v4268 = vpop.f32.mrf.mxu0
      %v4269 = vadd.f32 %v3980, %v4268
      %4270 = vdwg.mxu0
      %v4271 = vmax.f32 %v4112, 0.0
      %v4272 = vmax.f32 %v4114, 0.0
      %v4273 = vmax.f32 %v4117, 0.0
      %v4274 = vmax.f32 %v4119, 0.0
      %v4275 = vmax.f32 %v4122, 0.0
      %v4276 = vmax.f32 %v4124, 0.0
      %v4277 = vmax.f32 %v4127, 0.0
      %v4278 = vmax.f32 %v4129, 0.0
      %v4279 = vmax.f32 %v4132, 0.0
      %v4280 = vmax.f32 %v4134, 0.0
      %v4281 = vmax.f32 %v4137, 0.0
      %v4282 = vmax.f32 %v4139, 0.0
      %v4283 = vmax.f32 %v4142, 0.0
      %v4284 = vmax.f32 %v4144, 0.0
      %v4285 = vmax.f32 %v4147, 0.0
      %v4286 = vmax.f32 %v4149, 0.0
      %v4287 = vmax.f32 %v4152, 0.0
      %v4288 = vmax.f32 %v4154, 0.0
      %v4289 = vmax.f32 %v4157, 0.0
      %v4290 = vmax.f32 %v4159, 0.0
      %v4291 = vmax.f32 %v4162, 0.0
      %v4292 = vmax.f32 %v4164, 0.0
      %v4293 = vmax.f32 %v4167, 0.0
      %v4294 = vmax.f32 %v4169, 0.0
      %v4295 = vmax.f32 %v4172, 0.0
      %v4296 = vmax.f32 %v4174, 0.0
      %v4297 = vmax.f32 %v4177, 0.0
      %v4298 = vmax.f32 %v4179, 0.0
      %v4299 = vmax.f32 %v4182, 0.0
      %v4300 = vmax.f32 %v4184, 0.0
      %v4301 = vmax.f32 %v4187, 0.0
      %v4302 = vmax.f32 %v4189, 0.0
      %v4303 = vmax.f32 %v4192, 0.0
      %v4304 = vmax.f32 %v4194, 0.0
      %v4305 = vmax.f32 %v4197, 0.0
      %v4306 = vmax.f32 %v4199, 0.0
      %v4307 = vmax.f32 %v4202, 0.0
      %v4308 = vmax.f32 %v4204, 0.0
      %v4309 = vmax.f32 %v4207, 0.0
      %v4310 = vmax.f32 %v4209, 0.0
      %v4311 = vmax.f32 %v4212, 0.0
      %v4312 = vmax.f32 %v4214, 0.0
      %v4313 = vmax.f32 %v4217, 0.0
      %v4314 = vmax.f32 %v4219, 0.0
      %v4315 = vmax.f32 %v4222, 0.0
      %v4316 = vmax.f32 %v4224, 0.0
      %v4317 = vmax.f32 %v4227, 0.0
      %v4318 = vmax.f32 %v4229, 0.0
      %v4319 = vmax.f32 %v4232, 0.0
      %v4320 = vmax.f32 %v4234, 0.0
      %v4321 = vmax.f32 %v4237, 0.0
      %v4322 = vmax.f32 %v4239, 0.0
      %v4323 = vmax.f32 %v4242, 0.0
      %v4324 = vmax.f32 %v4244, 0.0
      %v4325 = vmax.f32 %v4247, 0.0
      %v4326 = vmax.f32 %v4249, 0.0
      %v4327 = vmax.f32 %v4252, 0.0
      %v4328 = vmax.f32 %v4254, 0.0
      %v4329 = vmax.f32 %v4257, 0.0
      %v4330 = vmax.f32 %v4259, 0.0
      %v4331 = vmax.f32 %v4262, 0.0
      %v4332 = vmax.f32 %v4264, 0.0
      %v4333 = vmax.f32 %v4267, 0.0
      %v4334 = vmax.f32 %v4269, 0.0
      %v4335 = vpack.c.bf16 %v2832, %v2831
      %v4336 = vpack.c.bf16 %v2834, %v2833
      %v4337 = vpack.c.bf16 %v2836, %v2835
      %v4338 = vpack.c.bf16 %v2838, %v2837
      %v4339 = vpack.c.bf16 %v2840, %v2839
      %v4340 = vpack.c.bf16 %v2842, %v2841
      %v4341 = vpack.c.bf16 %v2844, %v2843
      %v4342 = vpack.c.bf16 %v2846, %v2845
      %v4343 = vpack.c.bf16 %v2848, %v2847
      %v4344 = vpack.c.bf16 %v2850, %v2849
      %v4345 = vpack.c.bf16 %v2852, %v2851
      %v4346 = vpack.c.bf16 %v2854, %v2853
      %v4347 = vpack.c.bf16 %v2856, %v2855
      %v4348 = vpack.c.bf16 %v2858, %v2857
      %v4349 = vpack.c.bf16 %v2860, %v2859
      %v4350 = vpack.c.bf16 %v2862, %v2861
      %v4351 = vpack.c.bf16 %v2864, %v2863
      %v4352 = vpack.c.bf16 %v2866, %v2865
      %v4353 = vpack.c.bf16 %v2868, %v2867
      %v4354 = vpack.c.bf16 %v2870, %v2869
      %v4355 = vpack.c.bf16 %v2872, %v2871
      %v4356 = vpack.c.bf16 %v2874, %v2873
      %v4357 = vpack.c.bf16 %v2876, %v2875
      %v4358 = vpack.c.bf16 %v2878, %v2877
      %v4359 = vpack.c.bf16 %v2880, %v2879
      %v4360 = vpack.c.bf16 %v2882, %v2881
      %v4361 = vpack.c.bf16 %v2884, %v2883
      %v4362 = vpack.c.bf16 %v2886, %v2885
      %v4363 = vpack.c.bf16 %v2888, %v2887
      %v4364 = vpack.c.bf16 %v2890, %v2889
      %v4365 = vpack.c.bf16 %v2892, %v2891
      %v4366 = vpack.c.bf16 %v2894, %v2893
      %v4367 = vld [vmem:[%s15] sm:$0xf]
      %v4368 = vld [vmem:[%s15 + $0x4] sm:$0xf]
      %v4369 = vld [vmem:[%s15 + $0x8] sm:$0xf]
      %v4370 = vld [vmem:[%s15 + $0xc] sm:$0xf]
      %v4371 = vld [vmem:[%s15 + $0x10] sm:$0xf]
      %v4372 = vld [vmem:[%s15 + $0x14] sm:$0xf]
      %v4373 = vld [vmem:[%s15 + $0x18] sm:$0xf]
      %v4374 = vld [vmem:[%s15 + $0x1c] sm:$0xf]
      %v4375 = vld [vmem:[%s16] sm:$0xf]
      %v4376 = vld [vmem:[%s16 + $0x4] sm:$0xf]
      %v4379 = vunpack.c.l.b16 %v4375
      %v4380 = vunpack.c.l.b16 %v4376
      %v4381 = vpack.c.b16 %v4380, %v4379
      %4383 = vmatpush.bf16.msra.mxu0 0
      %4384 = vmatpush.bf16.msra.mxu0 0
      %4385 = vmatpush.bf16.msra.mxu0 0
      %4386 = vmatpush.bf16.msra.mxu0 0
      %4387 = vmatpush.bf16.msra.mxu0 0
      %4388 = vmatpush.bf16.msra.mxu0 0
      %4389 = vmatpush.bf16.msra.mxu0 0
      %4390 = vmatpush.bf16.msra.mxu0 %v4381
      %4391 = vmatmul.bf16.gmra.mxu0 %v1910
      %v4392 = vpop.f32.mrf.mxu0
      %v4393 = vadd.f32 0.0, %v4392
      %v4394 = vpop.f32.mrf.mxu0
      %v4395 = vadd.f32 0.0, %v4394
      %4396 = vmatmul.bf16.gmra.mxu0 %v1913
      %v4397 = vpop.f32.mrf.mxu0
      %v4398 = vadd.f32 0.0, %v4397
      %v4399 = vpop.f32.mrf.mxu0
      %v4400 = vadd.f32 0.0, %v4399
      %4401 = vmatmul.bf16.gmra.mxu0 %v1916
      %v4402 = vpop.f32.mrf.mxu0
      %v4403 = vadd.f32 0.0, %v4402
      %v4404 = vpop.f32.mrf.mxu0
      %v4405 = vadd.f32 0.0, %v4404
      %4406 = vmatmul.bf16.gmra.mxu0 %v1919
      %v4407 = vpop.f32.mrf.mxu0
      %v4408 = vadd.f32 0.0, %v4407
      %v4409 = vpop.f32.mrf.mxu0
      %v4410 = vadd.f32 0.0, %v4409
      %4411 = vmatmul.bf16.gmra.mxu0 %v1922
      %v4412 = vpop.f32.mrf.mxu0
      %v4413 = vadd.f32 0.0, %v4412
      %v4414 = vpop.f32.mrf.mxu0
      %v4415 = vadd.f32 0.0, %v4414
      %4416 = vmatmul.bf16.gmra.mxu0 %v1925
      %v4417 = vpop.f32.mrf.mxu0
      %v4418 = vadd.f32 0.0, %v4417
      %v4419 = vpop.f32.mrf.mxu0
      %v4420 = vadd.f32 0.0, %v4419
      %4421 = vmatmul.bf16.gmra.mxu0 %v1928
      %v4422 = vpop.f32.mrf.mxu0
      %v4423 = vadd.f32 0.0, %v4422
      %v4424 = vpop.f32.mrf.mxu0
      %v4425 = vadd.f32 0.0, %v4424
      %4426 = vmatmul.bf16.gmra.mxu0 %v1931
      %v4427 = vpop.f32.mrf.mxu0
      %v4428 = vadd.f32 0.0, %v4427
      %v4429 = vpop.f32.mrf.mxu0
      %v4430 = vadd.f32 0.0, %v4429
      %4431 = vmatmul.bf16.gmra.mxu0 %v1934
      %v4432 = vpop.f32.mrf.mxu0
      %v4433 = vadd.f32 0.0, %v4432
      %v4434 = vpop.f32.mrf.mxu0
      %v4435 = vadd.f32 0.0, %v4434
      %4436 = vmatmul.bf16.gmra.mxu0 %v1937
      %v4437 = vpop.f32.mrf.mxu0
      %v4438 = vadd.f32 0.0, %v4437
      %v4439 = vpop.f32.mrf.mxu0
      %v4440 = vadd.f32 0.0, %v4439
      %4441 = vmatmul.bf16.gmra.mxu0 %v1940
      %v4442 = vpop.f32.mrf.mxu0
      %v4443 = vadd.f32 0.0, %v4442
      %v4444 = vpop.f32.mrf.mxu0
      %v4445 = vadd.f32 0.0, %v4444
      %4446 = vmatmul.bf16.gmra.mxu0 %v1943
      %v4447 = vpop.f32.mrf.mxu0
      %v4448 = vadd.f32 0.0, %v4447
      %v4449 = vpop.f32.mrf.mxu0
      %v4450 = vadd.f32 0.0, %v4449
      %4451 = vmatmul.bf16.gmra.mxu0 %v1946
      %v4452 = vpop.f32.mrf.mxu0
      %v4453 = vadd.f32 0.0, %v4452
      %v4454 = vpop.f32.mrf.mxu0
      %v4455 = vadd.f32 0.0, %v4454
      %4456 = vmatmul.bf16.gmra.mxu0 %v1949
      %v4457 = vpop.f32.mrf.mxu0
      %v4458 = vadd.f32 0.0, %v4457
      %v4459 = vpop.f32.mrf.mxu0
      %v4460 = vadd.f32 0.0, %v4459
      %4461 = vmatmul.bf16.gmra.mxu0 %v1952
      %v4462 = vpop.f32.mrf.mxu0
      %v4463 = vadd.f32 0.0, %v4462
      %v4464 = vpop.f32.mrf.mxu0
      %v4465 = vadd.f32 0.0, %v4464
      %4466 = vmatmul.bf16.gmra.mxu0 %v1955
      %v4467 = vpop.f32.mrf.mxu0
      %v4468 = vadd.f32 0.0, %v4467
      %v4469 = vpop.f32.mrf.mxu0
      %v4470 = vadd.f32 0.0, %v4469
      %4471 = vmatmul.bf16.gmra.mxu0 %v1958
      %v4472 = vpop.f32.mrf.mxu0
      %v4473 = vadd.f32 0.0, %v4472
      %v4474 = vpop.f32.mrf.mxu0
      %v4475 = vadd.f32 0.0, %v4474
      %4476 = vmatmul.bf16.gmra.mxu0 %v1961
      %v4477 = vpop.f32.mrf.mxu0
      %v4478 = vadd.f32 0.0, %v4477
      %v4479 = vpop.f32.mrf.mxu0
      %v4480 = vadd.f32 0.0, %v4479
      %4481 = vmatmul.bf16.gmra.mxu0 %v1964
      %v4482 = vpop.f32.mrf.mxu0
      %v4483 = vadd.f32 0.0, %v4482
      %v4484 = vpop.f32.mrf.mxu0
      %v4485 = vadd.f32 0.0, %v4484
      %4486 = vmatmul.bf16.gmra.mxu0 %v1967
      %v4487 = vpop.f32.mrf.mxu0
      %v4488 = vadd.f32 0.0, %v4487
      %v4489 = vpop.f32.mrf.mxu0
      %v4490 = vadd.f32 0.0, %v4489
      %4491 = vmatmul.bf16.gmra.mxu0 %v1970
      %v4492 = vpop.f32.mrf.mxu0
      %v4493 = vadd.f32 0.0, %v4492
      %v4494 = vpop.f32.mrf.mxu0
      %v4495 = vadd.f32 0.0, %v4494
      %4496 = vmatmul.bf16.gmra.mxu0 %v1973
      %v4497 = vpop.f32.mrf.mxu0
      %v4498 = vadd.f32 0.0, %v4497
      %v4499 = vpop.f32.mrf.mxu0
      %v4500 = vadd.f32 0.0, %v4499
      %4501 = vmatmul.bf16.gmra.mxu0 %v1976
      %v4502 = vpop.f32.mrf.mxu0
      %v4503 = vadd.f32 0.0, %v4502
      %v4504 = vpop.f32.mrf.mxu0
      %v4505 = vadd.f32 0.0, %v4504
      %4506 = vmatmul.bf16.gmra.mxu0 %v1979
      %v4507 = vpop.f32.mrf.mxu0
      %v4508 = vadd.f32 0.0, %v4507
      %v4509 = vpop.f32.mrf.mxu0
      %v4510 = vadd.f32 0.0, %v4509
      %4511 = vmatmul.bf16.gmra.mxu0 %v1982
      %v4512 = vpop.f32.mrf.mxu0
      %v4513 = vadd.f32 0.0, %v4512
      %v4514 = vpop.f32.mrf.mxu0
      %v4515 = vadd.f32 0.0, %v4514
      %4516 = vmatmul.bf16.gmra.mxu0 %v1985
      %v4517 = vpop.f32.mrf.mxu0
      %v4518 = vadd.f32 0.0, %v4517
      %v4519 = vpop.f32.mrf.mxu0
      %v4520 = vadd.f32 0.0, %v4519
      %4521 = vmatmul.bf16.gmra.mxu0 %v1988
      %v4522 = vpop.f32.mrf.mxu0
      %v4523 = vadd.f32 0.0, %v4522
      %v4524 = vpop.f32.mrf.mxu0
      %v4525 = vadd.f32 0.0, %v4524
      %4526 = vmatmul.bf16.gmra.mxu0 %v1991
      %v4527 = vpop.f32.mrf.mxu0
      %v4528 = vadd.f32 0.0, %v4527
      %v4529 = vpop.f32.mrf.mxu0
      %v4530 = vadd.f32 0.0, %v4529
      %4531 = vmatmul.bf16.gmra.mxu0 %v1994
      %v4532 = vpop.f32.mrf.mxu0
      %v4533 = vadd.f32 0.0, %v4532
      %v4534 = vpop.f32.mrf.mxu0
      %v4535 = vadd.f32 0.0, %v4534
      %4536 = vmatmul.bf16.gmra.mxu0 %v1997
      %v4537 = vpop.f32.mrf.mxu0
      %v4538 = vadd.f32 0.0, %v4537
      %v4539 = vpop.f32.mrf.mxu0
      %v4540 = vadd.f32 0.0, %v4539
      %4541 = vmatmul.bf16.gmra.mxu0 %v2000
      %v4542 = vpop.f32.mrf.mxu0
      %v4543 = vadd.f32 0.0, %v4542
      %v4544 = vpop.f32.mrf.mxu0
      %v4545 = vadd.f32 0.0, %v4544
      %4546 = vmatmul.bf16.gmra.mxu0 %v2003
      %v4547 = vpop.f32.mrf.mxu0
      %v4548 = vadd.f32 0.0, %v4547
      %v4549 = vpop.f32.mrf.mxu0
      %v4550 = vadd.f32 0.0, %v4549
      %4551 = vdwg.mxu0
      %v4560 = vunpack.c.l.b16 %v4367
      %v4561 = vunpack.c.l.b16 %v4368
      %v4562 = vunpack.c.l.b16 %v4369
      %v4563 = vunpack.c.l.b16 %v4370
      %v4564 = vunpack.c.l.b16 %v4371
      %v4565 = vunpack.c.l.b16 %v4372
      %v4566 = vunpack.c.l.b16 %v4373
      %v4567 = vunpack.c.l.b16 %v4374
      %v4568 = vpack.c.b16 %v4561, %v4560
      %v4569 = vpack.c.b16 %v4563, %v4562
      %v4570 = vpack.c.b16 %v4565, %v4564
      %v4571 = vpack.c.b16 %v4567, %v4566
      %v4577 = vsel %vm1241, %v4335, 0
      %v4580 = vsel %vm1241, %v4336, 0
      %v4583 = vsel %vm1241, %v4337, 0
      %v4586 = vsel %vm1241, %v4338, 0
      %v4589 = vsel %vm1241, %v4339, 0
      %v4592 = vsel %vm1241, %v4340, 0
      %v4595 = vsel %vm1241, %v4341, 0
      %v4598 = vsel %vm1241, %v4342, 0
      %v4601 = vsel %vm1241, %v4343, 0
      %v4604 = vsel %vm1241, %v4344, 0
      %v4607 = vsel %vm1241, %v4345, 0
      %v4610 = vsel %vm1241, %v4346, 0
      %v4613 = vsel %vm1241, %v4347, 0
      %v4616 = vsel %vm1241, %v4348, 0
      %v4619 = vsel %vm1241, %v4349, 0
      %v4622 = vsel %vm1241, %v4350, 0
      %v4625 = vsel %vm1241, %v4351, 0
      %v4628 = vsel %vm1241, %v4352, 0
      %v4631 = vsel %vm1241, %v4353, 0
      %v4634 = vsel %vm1241, %v4354, 0
      %v4637 = vsel %vm1241, %v4355, 0
      %v4640 = vsel %vm1241, %v4356, 0
      %v4643 = vsel %vm1241, %v4357, 0
      %v4646 = vsel %vm1241, %v4358, 0
      %v4649 = vsel %vm1241, %v4359, 0
      %v4652 = vsel %vm1241, %v4360, 0
      %v4655 = vsel %vm1241, %v4361, 0
      %v4658 = vsel %vm1241, %v4362, 0
      %v4661 = vsel %vm1241, %v4363, 0
      %v4664 = vsel %vm1241, %v4364, 0
      %v4667 = vsel %vm1241, %v4365, 0
      %v4670 = vsel %vm1241, %v4366, 0
      %4672 = vmatpush.bf16.msra.mxu0 0
      %4673 = vmatpush.bf16.msra.mxu0 0
      %4674 = vmatpush.bf16.msra.mxu0 0
      %4675 = vmatpush.bf16.msra.mxu0 0
      %4676 = vmatpush.bf16.msra.mxu0 %v4571
      %4677 = vmatpush.bf16.msra.mxu0 %v4570
      %4678 = vmatpush.bf16.msra.mxu0 %v4569
      %4679 = vmatpush.bf16.msra.mxu0 %v4568
      %4680 = vmatmul.bf16.gmra.mxu0 %v4577
      %v4681 = vpop.f32.mrf.mxu0
      %v4682 = vadd.f32 %v4393, %v4681
      %v4683 = vpop.f32.mrf.mxu0
      %v4684 = vadd.f32 %v4395, %v4683
      %4685 = vmatmul.bf16.gmra.mxu0 %v4580
      %v4686 = vpop.f32.mrf.mxu0
      %v4687 = vadd.f32 %v4398, %v4686
      %v4688 = vpop.f32.mrf.mxu0
      %v4689 = vadd.f32 %v4400, %v4688
      %4690 = vmatmul.bf16.gmra.mxu0 %v4583
      %v4691 = vpop.f32.mrf.mxu0
      %v4692 = vadd.f32 %v4403, %v4691
      %v4693 = vpop.f32.mrf.mxu0
      %v4694 = vadd.f32 %v4405, %v4693
      %4695 = vmatmul.bf16.gmra.mxu0 %v4586
      %v4696 = vpop.f32.mrf.mxu0
      %v4697 = vadd.f32 %v4408, %v4696
      %v4698 = vpop.f32.mrf.mxu0
      %v4699 = vadd.f32 %v4410, %v4698
      %4700 = vmatmul.bf16.gmra.mxu0 %v4589
      %v4701 = vpop.f32.mrf.mxu0
      %v4702 = vadd.f32 %v4413, %v4701
      %v4703 = vpop.f32.mrf.mxu0
      %v4704 = vadd.f32 %v4415, %v4703
      %4705 = vmatmul.bf16.gmra.mxu0 %v4592
      %v4706 = vpop.f32.mrf.mxu0
      %v4707 = vadd.f32 %v4418, %v4706
      %v4708 = vpop.f32.mrf.mxu0
      %v4709 = vadd.f32 %v4420, %v4708
      %4710 = vmatmul.bf16.gmra.mxu0 %v4595
      %v4711 = vpop.f32.mrf.mxu0
      %v4712 = vadd.f32 %v4423, %v4711
      %v4713 = vpop.f32.mrf.mxu0
      %v4714 = vadd.f32 %v4425, %v4713
      %4715 = vmatmul.bf16.gmra.mxu0 %v4598
      %v4716 = vpop.f32.mrf.mxu0
      %v4717 = vadd.f32 %v4428, %v4716
      %v4718 = vpop.f32.mrf.mxu0
      %v4719 = vadd.f32 %v4430, %v4718
      %4720 = vmatmul.bf16.gmra.mxu0 %v4601
      %v4721 = vpop.f32.mrf.mxu0
      %v4722 = vadd.f32 %v4433, %v4721
      %v4723 = vpop.f32.mrf.mxu0
      %v4724 = vadd.f32 %v4435, %v4723
      %4725 = vmatmul.bf16.gmra.mxu0 %v4604
      %v4726 = vpop.f32.mrf.mxu0
      %v4727 = vadd.f32 %v4438, %v4726
      %v4728 = vpop.f32.mrf.mxu0
      %v4729 = vadd.f32 %v4440, %v4728
      %4730 = vmatmul.bf16.gmra.mxu0 %v4607
      %v4731 = vpop.f32.mrf.mxu0
      %v4732 = vadd.f32 %v4443, %v4731
      %v4733 = vpop.f32.mrf.mxu0
      %v4734 = vadd.f32 %v4445, %v4733
      %4735 = vmatmul.bf16.gmra.mxu0 %v4610
      %v4736 = vpop.f32.mrf.mxu0
      %v4737 = vadd.f32 %v4448, %v4736
      %v4738 = vpop.f32.mrf.mxu0
      %v4739 = vadd.f32 %v4450, %v4738
      %4740 = vmatmul.bf16.gmra.mxu0 %v4613
      %v4741 = vpop.f32.mrf.mxu0
      %v4742 = vadd.f32 %v4453, %v4741
      %v4743 = vpop.f32.mrf.mxu0
      %v4744 = vadd.f32 %v4455, %v4743
      %4745 = vmatmul.bf16.gmra.mxu0 %v4616
      %v4746 = vpop.f32.mrf.mxu0
      %v4747 = vadd.f32 %v4458, %v4746
      %v4748 = vpop.f32.mrf.mxu0
      %v4749 = vadd.f32 %v4460, %v4748
      %4750 = vmatmul.bf16.gmra.mxu0 %v4619
      %v4751 = vpop.f32.mrf.mxu0
      %v4752 = vadd.f32 %v4463, %v4751
      %v4753 = vpop.f32.mrf.mxu0
      %v4754 = vadd.f32 %v4465, %v4753
      %4755 = vmatmul.bf16.gmra.mxu0 %v4622
      %v4756 = vpop.f32.mrf.mxu0
      %v4757 = vadd.f32 %v4468, %v4756
      %v4758 = vpop.f32.mrf.mxu0
      %v4759 = vadd.f32 %v4470, %v4758
      %4760 = vmatmul.bf16.gmra.mxu0 %v4625
      %v4761 = vpop.f32.mrf.mxu0
      %v4762 = vadd.f32 %v4473, %v4761
      %v4763 = vpop.f32.mrf.mxu0
      %v4764 = vadd.f32 %v4475, %v4763
      %4765 = vmatmul.bf16.gmra.mxu0 %v4628
      %v4766 = vpop.f32.mrf.mxu0
      %v4767 = vadd.f32 %v4478, %v4766
      %v4768 = vpop.f32.mrf.mxu0
      %v4769 = vadd.f32 %v4480, %v4768
      %4770 = vmatmul.bf16.gmra.mxu0 %v4631
      %v4771 = vpop.f32.mrf.mxu0
      %v4772 = vadd.f32 %v4483, %v4771
      %v4773 = vpop.f32.mrf.mxu0
      %v4774 = vadd.f32 %v4485, %v4773
      %4775 = vmatmul.bf16.gmra.mxu0 %v4634
      %v4776 = vpop.f32.mrf.mxu0
      %v4777 = vadd.f32 %v4488, %v4776
      %v4778 = vpop.f32.mrf.mxu0
      %v4779 = vadd.f32 %v4490, %v4778
      %4780 = vmatmul.bf16.gmra.mxu0 %v4637
      %v4781 = vpop.f32.mrf.mxu0
      %v4782 = vadd.f32 %v4493, %v4781
      %v4783 = vpop.f32.mrf.mxu0
      %v4784 = vadd.f32 %v4495, %v4783
      %4785 = vmatmul.bf16.gmra.mxu0 %v4640
      %v4786 = vpop.f32.mrf.mxu0
      %v4787 = vadd.f32 %v4498, %v4786
      %v4788 = vpop.f32.mrf.mxu0
      %v4789 = vadd.f32 %v4500, %v4788
      %4790 = vmatmul.bf16.gmra.mxu0 %v4643
      %v4791 = vpop.f32.mrf.mxu0
      %v4792 = vadd.f32 %v4503, %v4791
      %v4793 = vpop.f32.mrf.mxu0
      %v4794 = vadd.f32 %v4505, %v4793
      %4795 = vmatmul.bf16.gmra.mxu0 %v4646
      %v4796 = vpop.f32.mrf.mxu0
      %v4797 = vadd.f32 %v4508, %v4796
      %v4798 = vpop.f32.mrf.mxu0
      %v4799 = vadd.f32 %v4510, %v4798
      %4800 = vmatmul.bf16.gmra.mxu0 %v4649
      %v4801 = vpop.f32.mrf.mxu0
      %v4802 = vadd.f32 %v4513, %v4801
      %v4803 = vpop.f32.mrf.mxu0
      %v4804 = vadd.f32 %v4515, %v4803
      %4805 = vmatmul.bf16.gmra.mxu0 %v4652
      %v4806 = vpop.f32.mrf.mxu0
      %v4807 = vadd.f32 %v4518, %v4806
      %v4808 = vpop.f32.mrf.mxu0
      %v4809 = vadd.f32 %v4520, %v4808
      %4810 = vmatmul.bf16.gmra.mxu0 %v4655
      %v4811 = vpop.f32.mrf.mxu0
      %v4812 = vadd.f32 %v4523, %v4811
      %v4813 = vpop.f32.mrf.mxu0
      %v4814 = vadd.f32 %v4525, %v4813
      %4815 = vmatmul.bf16.gmra.mxu0 %v4658
      %v4816 = vpop.f32.mrf.mxu0
      %v4817 = vadd.f32 %v4528, %v4816
      %v4818 = vpop.f32.mrf.mxu0
      %v4819 = vadd.f32 %v4530, %v4818
      %4820 = vmatmul.bf16.gmra.mxu0 %v4661
      %v4821 = vpop.f32.mrf.mxu0
      %v4822 = vadd.f32 %v4533, %v4821
      %v4823 = vpop.f32.mrf.mxu0
      %v4824 = vadd.f32 %v4535, %v4823
      %4825 = vmatmul.bf16.gmra.mxu0 %v4664
      %v4826 = vpop.f32.mrf.mxu0
      %v4827 = vadd.f32 %v4538, %v4826
      %v4828 = vpop.f32.mrf.mxu0
      %v4829 = vadd.f32 %v4540, %v4828
      %4830 = vmatmul.bf16.gmra.mxu0 %v4667
      %v4831 = vpop.f32.mrf.mxu0
      %v4832 = vadd.f32 %v4543, %v4831
      %v4833 = vpop.f32.mrf.mxu0
      %v4834 = vadd.f32 %v4545, %v4833
      %4835 = vmatmul.bf16.gmra.mxu0 %v4670
      %v4836 = vpop.f32.mrf.mxu0
      %v4837 = vadd.f32 %v4548, %v4836
      %v4838 = vpop.f32.mrf.mxu0
      %v4839 = vadd.f32 %v4550, %v4838
      %4840 = vdwg.mxu0
      %v4841 = vpack.c.bf16 %v4272, %v4271
      %v4842 = vpack.c.bf16 %v4274, %v4273
      %v4843 = vpack.c.bf16 %v4276, %v4275
      %v4844 = vpack.c.bf16 %v4278, %v4277
      %v4845 = vpack.c.bf16 %v4280, %v4279
      %v4846 = vpack.c.bf16 %v4282, %v4281
      %v4847 = vpack.c.bf16 %v4284, %v4283
      %v4848 = vpack.c.bf16 %v4286, %v4285
      %v4849 = vpack.c.bf16 %v4288, %v4287
      %v4850 = vpack.c.bf16 %v4290, %v4289
      %v4851 = vpack.c.bf16 %v4292, %v4291
      %v4852 = vpack.c.bf16 %v4294, %v4293
      %v4853 = vpack.c.bf16 %v4296, %v4295
      %v4854 = vpack.c.bf16 %v4298, %v4297
      %v4855 = vpack.c.bf16 %v4300, %v4299
      %v4856 = vpack.c.bf16 %v4302, %v4301
      %v4857 = vpack.c.bf16 %v4304, %v4303
      %v4858 = vpack.c.bf16 %v4306, %v4305
      %v4859 = vpack.c.bf16 %v4308, %v4307
      %v4860 = vpack.c.bf16 %v4310, %v4309
      %v4861 = vpack.c.bf16 %v4312, %v4311
      %v4862 = vpack.c.bf16 %v4314, %v4313
      %v4863 = vpack.c.bf16 %v4316, %v4315
      %v4864 = vpack.c.bf16 %v4318, %v4317
      %v4865 = vpack.c.bf16 %v4320, %v4319
      %v4866 = vpack.c.bf16 %v4322, %v4321
      %v4867 = vpack.c.bf16 %v4324, %v4323
      %v4868 = vpack.c.bf16 %v4326, %v4325
      %v4869 = vpack.c.bf16 %v4328, %v4327
      %v4870 = vpack.c.bf16 %v4330, %v4329
      %v4871 = vpack.c.bf16 %v4332, %v4331
      %v4872 = vpack.c.bf16 %v4334, %v4333
      %v4873 = vld [vmem:[%s17] sm:$0xf]
      %v4874 = vld [vmem:[%s17 + $0x4] sm:$0xf]
      %v4875 = vld [vmem:[%s17 + $0x8] sm:$0xf]
      %v4876 = vld [vmem:[%s17 + $0xc] sm:$0xf]
      %v4877 = vld [vmem:[%s17 + $0x10] sm:$0xf]
      %v4878 = vld [vmem:[%s17 + $0x14] sm:$0xf]
      %v4879 = vld [vmem:[%s17 + $0x18] sm:$0xf]
      %v4880 = vld [vmem:[%s17 + $0x1c] sm:$0xf]
      %v4889 = vunpack.c.l.b16 %v4873
      %v4890 = vunpack.c.l.b16 %v4874
      %v4891 = vunpack.c.l.b16 %v4875
      %v4892 = vunpack.c.l.b16 %v4876
      %v4893 = vunpack.c.l.b16 %v4877
      %v4894 = vunpack.c.l.b16 %v4878
      %v4895 = vunpack.c.l.b16 %v4879
      %v4896 = vunpack.c.l.b16 %v4880
      %v4897 = vpack.c.b16 %v4890, %v4889
      %v4898 = vpack.c.b16 %v4892, %v4891
      %v4899 = vpack.c.b16 %v4894, %v4893
      %v4900 = vpack.c.b16 %v4896, %v4895
      %v4906 = vsel %vm1241, %v4841, 0
      %v4909 = vsel %vm1241, %v4842, 0
      %v4912 = vsel %vm1241, %v4843, 0
      %v4915 = vsel %vm1241, %v4844, 0
      %v4918 = vsel %vm1241, %v4845, 0
      %v4921 = vsel %vm1241, %v4846, 0
      %v4924 = vsel %vm1241, %v4847, 0
      %v4927 = vsel %vm1241, %v4848, 0
      %v4930 = vsel %vm1241, %v4849, 0
      %v4933 = vsel %vm1241, %v4850, 0
      %v4936 = vsel %vm1241, %v4851, 0
      %v4939 = vsel %vm1241, %v4852, 0
      %v4942 = vsel %vm1241, %v4853, 0
      %v4945 = vsel %vm1241, %v4854, 0
      %v4948 = vsel %vm1241, %v4855, 0
      %v4951 = vsel %vm1241, %v4856, 0
      %v4954 = vsel %vm1241, %v4857, 0
      %v4957 = vsel %vm1241, %v4858, 0
      %v4960 = vsel %vm1241, %v4859, 0
      %v4963 = vsel %vm1241, %v4860, 0
      %v4966 = vsel %vm1241, %v4861, 0
      %v4969 = vsel %vm1241, %v4862, 0
      %v4972 = vsel %vm1241, %v4863, 0
      %v4975 = vsel %vm1241, %v4864, 0
      %v4978 = vsel %vm1241, %v4865, 0
      %v4981 = vsel %vm1241, %v4866, 0
      %v4984 = vsel %vm1241, %v4867, 0
      %v4987 = vsel %vm1241, %v4868, 0
      %v4990 = vsel %vm1241, %v4869, 0
      %v4993 = vsel %vm1241, %v4870, 0
      %v4996 = vsel %vm1241, %v4871, 0
      %v4999 = vsel %vm1241, %v4872, 0
      %5001 = vmatpush.bf16.msra.mxu0 0
      %5002 = vmatpush.bf16.msra.mxu0 0
      %5003 = vmatpush.bf16.msra.mxu0 0
      %5004 = vmatpush.bf16.msra.mxu0 0
      %5005 = vmatpush.bf16.msra.mxu0 %v4900
      %5006 = vmatpush.bf16.msra.mxu0 %v4899
      %5007 = vmatpush.bf16.msra.mxu0 %v4898
      %5008 = vmatpush.bf16.msra.mxu0 %v4897
      %5009 = vmatmul.bf16.gmra.mxu0 %v4906
      %v5010 = vpop.f32.mrf.mxu0
      %v5011 = vadd.f32 0.0, %v5010
      %v5012 = vpop.f32.mrf.mxu0
      %v5013 = vadd.f32 0.0, %v5012
      %5014 = vmatmul.bf16.gmra.mxu0 %v4909
      %v5015 = vpop.f32.mrf.mxu0
      %v5016 = vadd.f32 0.0, %v5015
      %v5017 = vpop.f32.mrf.mxu0
      %v5018 = vadd.f32 0.0, %v5017
      %5019 = vmatmul.bf16.gmra.mxu0 %v4912
      %v5020 = vpop.f32.mrf.mxu0
      %v5021 = vadd.f32 0.0, %v5020
      %v5022 = vpop.f32.mrf.mxu0
      %v5023 = vadd.f32 0.0, %v5022
      %5024 = vmatmul.bf16.gmra.mxu0 %v4915
      %v5025 = vpop.f32.mrf.mxu0
      %v5026 = vadd.f32 0.0, %v5025
      %v5027 = vpop.f32.mrf.mxu0
      %v5028 = vadd.f32 0.0, %v5027
      %5029 = vmatmul.bf16.gmra.mxu0 %v4918
      %v5030 = vpop.f32.mrf.mxu0
      %v5031 = vadd.f32 0.0, %v5030
      %v5032 = vpop.f32.mrf.mxu0
      %v5033 = vadd.f32 0.0, %v5032
      %5034 = vmatmul.bf16.gmra.mxu0 %v4921
      %v5035 = vpop.f32.mrf.mxu0
      %v5036 = vadd.f32 0.0, %v5035
      %v5037 = vpop.f32.mrf.mxu0
      %v5038 = vadd.f32 0.0, %v5037
      %5039 = vmatmul.bf16.gmra.mxu0 %v4924
      %v5040 = vpop.f32.mrf.mxu0
      %v5041 = vadd.f32 0.0, %v5040
      %v5042 = vpop.f32.mrf.mxu0
      %v5043 = vadd.f32 0.0, %v5042
      %5044 = vmatmul.bf16.gmra.mxu0 %v4927
      %v5045 = vpop.f32.mrf.mxu0
      %v5046 = vadd.f32 0.0, %v5045
      %v5047 = vpop.f32.mrf.mxu0
      %v5048 = vadd.f32 0.0, %v5047
      %5049 = vmatmul.bf16.gmra.mxu0 %v4930
      %v5050 = vpop.f32.mrf.mxu0
      %v5051 = vadd.f32 0.0, %v5050
      %v5052 = vpop.f32.mrf.mxu0
      %v5053 = vadd.f32 0.0, %v5052
      %5054 = vmatmul.bf16.gmra.mxu0 %v4933
      %v5055 = vpop.f32.mrf.mxu0
      %v5056 = vadd.f32 0.0, %v5055
      %v5057 = vpop.f32.mrf.mxu0
      %v5058 = vadd.f32 0.0, %v5057
      %5059 = vmatmul.bf16.gmra.mxu0 %v4936
      %v5060 = vpop.f32.mrf.mxu0
      %v5061 = vadd.f32 0.0, %v5060
      %v5062 = vpop.f32.mrf.mxu0
      %v5063 = vadd.f32 0.0, %v5062
      %5064 = vmatmul.bf16.gmra.mxu0 %v4939
      %v5065 = vpop.f32.mrf.mxu0
      %v5066 = vadd.f32 0.0, %v5065
      %v5067 = vpop.f32.mrf.mxu0
      %v5068 = vadd.f32 0.0, %v5067
      %5069 = vmatmul.bf16.gmra.mxu0 %v4942
      %v5070 = vpop.f32.mrf.mxu0
      %v5071 = vadd.f32 0.0, %v5070
      %v5072 = vpop.f32.mrf.mxu0
      %v5073 = vadd.f32 0.0, %v5072
      %5074 = vmatmul.bf16.gmra.mxu0 %v4945
      %v5075 = vpop.f32.mrf.mxu0
      %v5076 = vadd.f32 0.0, %v5075
      %v5077 = vpop.f32.mrf.mxu0
      %v5078 = vadd.f32 0.0, %v5077
      %5079 = vmatmul.bf16.gmra.mxu0 %v4948
      %v5080 = vpop.f32.mrf.mxu0
      %v5081 = vadd.f32 0.0, %v5080
      %v5082 = vpop.f32.mrf.mxu0
      %v5083 = vadd.f32 0.0, %v5082
      %5084 = vmatmul.bf16.gmra.mxu0 %v4951
      %v5085 = vpop.f32.mrf.mxu0
      %v5086 = vadd.f32 0.0, %v5085
      %v5087 = vpop.f32.mrf.mxu0
      %v5088 = vadd.f32 0.0, %v5087
      %5089 = vmatmul.bf16.gmra.mxu0 %v4954
      %v5090 = vpop.f32.mrf.mxu0
      %v5091 = vadd.f32 0.0, %v5090
      %v5092 = vpop.f32.mrf.mxu0
      %v5093 = vadd.f32 0.0, %v5092
      %5094 = vmatmul.bf16.gmra.mxu0 %v4957
      %v5095 = vpop.f32.mrf.mxu0
      %v5096 = vadd.f32 0.0, %v5095
      %v5097 = vpop.f32.mrf.mxu0
      %v5098 = vadd.f32 0.0, %v5097
      %5099 = vmatmul.bf16.gmra.mxu0 %v4960
      %v5100 = vpop.f32.mrf.mxu0
      %v5101 = vadd.f32 0.0, %v5100
      %v5102 = vpop.f32.mrf.mxu0
      %v5103 = vadd.f32 0.0, %v5102
      %5104 = vmatmul.bf16.gmra.mxu0 %v4963
      %v5105 = vpop.f32.mrf.mxu0
      %v5106 = vadd.f32 0.0, %v5105
      %v5107 = vpop.f32.mrf.mxu0
      %v5108 = vadd.f32 0.0, %v5107
      %5109 = vmatmul.bf16.gmra.mxu0 %v4966
      %v5110 = vpop.f32.mrf.mxu0
      %v5111 = vadd.f32 0.0, %v5110
      %v5112 = vpop.f32.mrf.mxu0
      %v5113 = vadd.f32 0.0, %v5112
      %5114 = vmatmul.bf16.gmra.mxu0 %v4969
      %v5115 = vpop.f32.mrf.mxu0
      %v5116 = vadd.f32 0.0, %v5115
      %v5117 = vpop.f32.mrf.mxu0
      %v5118 = vadd.f32 0.0, %v5117
      %5119 = vmatmul.bf16.gmra.mxu0 %v4972
      %v5120 = vpop.f32.mrf.mxu0
      %v5121 = vadd.f32 0.0, %v5120
      %v5122 = vpop.f32.mrf.mxu0
      %v5123 = vadd.f32 0.0, %v5122
      %5124 = vmatmul.bf16.gmra.mxu0 %v4975
      %v5125 = vpop.f32.mrf.mxu0
      %v5126 = vadd.f32 0.0, %v5125
      %v5127 = vpop.f32.mrf.mxu0
      %v5128 = vadd.f32 0.0, %v5127
      %5129 = vmatmul.bf16.gmra.mxu0 %v4978
      %v5130 = vpop.f32.mrf.mxu0
      %v5131 = vadd.f32 0.0, %v5130
      %v5132 = vpop.f32.mrf.mxu0
      %v5133 = vadd.f32 0.0, %v5132
      %5134 = vmatmul.bf16.gmra.mxu0 %v4981
      %v5135 = vpop.f32.mrf.mxu0
      %v5136 = vadd.f32 0.0, %v5135
      %v5137 = vpop.f32.mrf.mxu0
      %v5138 = vadd.f32 0.0, %v5137
      %5139 = vmatmul.bf16.gmra.mxu0 %v4984
      %v5140 = vpop.f32.mrf.mxu0
      %v5141 = vadd.f32 0.0, %v5140
      %v5142 = vpop.f32.mrf.mxu0
      %v5143 = vadd.f32 0.0, %v5142
      %5144 = vmatmul.bf16.gmra.mxu0 %v4987
      %v5145 = vpop.f32.mrf.mxu0
      %v5146 = vadd.f32 0.0, %v5145
      %v5147 = vpop.f32.mrf.mxu0
      %v5148 = vadd.f32 0.0, %v5147
      %5149 = vmatmul.bf16.gmra.mxu0 %v4990
      %v5150 = vpop.f32.mrf.mxu0
      %v5151 = vadd.f32 0.0, %v5150
      %v5152 = vpop.f32.mrf.mxu0
      %v5153 = vadd.f32 0.0, %v5152
      %5154 = vmatmul.bf16.gmra.mxu0 %v4993
      %v5155 = vpop.f32.mrf.mxu0
      %v5156 = vadd.f32 0.0, %v5155
      %v5157 = vpop.f32.mrf.mxu0
      %v5158 = vadd.f32 0.0, %v5157
      %5159 = vmatmul.bf16.gmra.mxu0 %v4996
      %v5160 = vpop.f32.mrf.mxu0
      %v5161 = vadd.f32 0.0, %v5160
      %v5162 = vpop.f32.mrf.mxu0
      %v5163 = vadd.f32 0.0, %v5162
      %5164 = vmatmul.bf16.gmra.mxu0 %v4999
      %v5165 = vpop.f32.mrf.mxu0
      %v5166 = vadd.f32 0.0, %v5165
      %v5167 = vpop.f32.mrf.mxu0
      %v5168 = vadd.f32 0.0, %v5167
      %5169 = vdwg.mxu0
      %v5170 = vadd.f32 %v4682, %v5011
      %v5171 = vadd.f32 %v4684, %v5013
      %v5172 = vadd.f32 %v4687, %v5016
      %v5173 = vadd.f32 %v4689, %v5018
      %v5174 = vadd.f32 %v4692, %v5021
      %v5175 = vadd.f32 %v4694, %v5023
      %v5176 = vadd.f32 %v4697, %v5026
      %v5177 = vadd.f32 %v4699, %v5028
      %v5178 = vadd.f32 %v4702, %v5031
      %v5179 = vadd.f32 %v4704, %v5033
      %v5180 = vadd.f32 %v4707, %v5036
      %v5181 = vadd.f32 %v4709, %v5038
      %v5182 = vadd.f32 %v4712, %v5041
      %v5183 = vadd.f32 %v4714, %v5043
      %v5184 = vadd.f32 %v4717, %v5046
      %v5185 = vadd.f32 %v4719, %v5048
      %v5186 = vadd.f32 %v4722, %v5051
      %v5187 = vadd.f32 %v4724, %v5053
      %v5188 = vadd.f32 %v4727, %v5056
      %v5189 = vadd.f32 %v4729, %v5058
      %v5190 = vadd.f32 %v4732, %v5061
      %v5191 = vadd.f32 %v4734, %v5063
      %v5192 = vadd.f32 %v4737, %v5066
      %v5193 = vadd.f32 %v4739, %v5068
      %v5194 = vadd.f32 %v4742, %v5071
      %v5195 = vadd.f32 %v4744, %v5073
      %v5196 = vadd.f32 %v4747, %v5076
      %v5197 = vadd.f32 %v4749, %v5078
      %v5198 = vadd.f32 %v4752, %v5081
      %v5199 = vadd.f32 %v4754, %v5083
      %v5200 = vadd.f32 %v4757, %v5086
      %v5201 = vadd.f32 %v4759, %v5088
      %v5202 = vadd.f32 %v4762, %v5091
      %v5203 = vadd.f32 %v4764, %v5093
      %v5204 = vadd.f32 %v4767, %v5096
      %v5205 = vadd.f32 %v4769, %v5098
      %v5206 = vadd.f32 %v4772, %v5101
      %v5207 = vadd.f32 %v4774, %v5103
      %v5208 = vadd.f32 %v4777, %v5106
      %v5209 = vadd.f32 %v4779, %v5108
      %v5210 = vadd.f32 %v4782, %v5111
      %v5211 = vadd.f32 %v4784, %v5113
      %v5212 = vadd.f32 %v4787, %v5116
      %v5213 = vadd.f32 %v4789, %v5118
      %v5214 = vadd.f32 %v4792, %v5121
      %v5215 = vadd.f32 %v4794, %v5123
      %v5216 = vadd.f32 %v4797, %v5126
      %v5217 = vadd.f32 %v4799, %v5128
      %v5218 = vadd.f32 %v4802, %v5131
      %v5219 = vadd.f32 %v4804, %v5133
      %v5220 = vadd.f32 %v4807, %v5136
      %v5221 = vadd.f32 %v4809, %v5138
      %v5222 = vadd.f32 %v4812, %v5141
      %v5223 = vadd.f32 %v4814, %v5143
      %v5224 = vadd.f32 %v4817, %v5146
      %v5225 = vadd.f32 %v4819, %v5148
      %v5226 = vadd.f32 %v4822, %v5151
      %v5227 = vadd.f32 %v4824, %v5153
      %v5228 = vadd.f32 %v4827, %v5156
      %v5229 = vadd.f32 %v4829, %v5158
      %v5230 = vadd.f32 %v4832, %v5161
      %v5231 = vadd.f32 %v4834, %v5163
      %v5232 = vadd.f32 %v4837, %v5166
      %v5233 = vadd.f32 %v4839, %v5168
      %v5234 = vld [vmem:[%s18] sm:$0x1]
      %v5236 = vperm.slane %v5234, 0
      %v5238 = vadd.f32 %v5170, %v5236
      %v5239 = vadd.f32 %v5171, %v5236
      %v5240 = vadd.f32 %v5172, %v5236
      %v5241 = vadd.f32 %v5173, %v5236
      %v5242 = vadd.f32 %v5174, %v5236
      %v5243 = vadd.f32 %v5175, %v5236
      %v5244 = vadd.f32 %v5176, %v5236
      %v5245 = vadd.f32 %v5177, %v5236
      %v5246 = vadd.f32 %v5178, %v5236
      %v5247 = vadd.f32 %v5179, %v5236
      %v5248 = vadd.f32 %v5180, %v5236
      %v5249 = vadd.f32 %v5181, %v5236
      %v5250 = vadd.f32 %v5182, %v5236
      %v5251 = vadd.f32 %v5183, %v5236
      %v5252 = vadd.f32 %v5184, %v5236
      %v5253 = vadd.f32 %v5185, %v5236
      %v5254 = vadd.f32 %v5186, %v5236
      %v5255 = vadd.f32 %v5187, %v5236
      %v5256 = vadd.f32 %v5188, %v5236
      %v5257 = vadd.f32 %v5189, %v5236
      %v5258 = vadd.f32 %v5190, %v5236
      %v5259 = vadd.f32 %v5191, %v5236
      %v5260 = vadd.f32 %v5192, %v5236
      %v5261 = vadd.f32 %v5193, %v5236
      %v5262 = vadd.f32 %v5194, %v5236
      %v5263 = vadd.f32 %v5195, %v5236
      %v5264 = vadd.f32 %v5196, %v5236
      %v5265 = vadd.f32 %v5197, %v5236
      %v5266 = vadd.f32 %v5198, %v5236
      %v5267 = vadd.f32 %v5199, %v5236
      %v5268 = vadd.f32 %v5200, %v5236
      %v5269 = vadd.f32 %v5201, %v5236
      %v5270 = vadd.f32 %v5202, %v5236
      %v5271 = vadd.f32 %v5203, %v5236
      %v5272 = vadd.f32 %v5204, %v5236
      %v5273 = vadd.f32 %v5205, %v5236
      %v5274 = vadd.f32 %v5206, %v5236
      %v5275 = vadd.f32 %v5207, %v5236
      %v5276 = vadd.f32 %v5208, %v5236
      %v5277 = vadd.f32 %v5209, %v5236
      %v5278 = vadd.f32 %v5210, %v5236
      %v5279 = vadd.f32 %v5211, %v5236
      %v5280 = vadd.f32 %v5212, %v5236
      %v5281 = vadd.f32 %v5213, %v5236
      %v5282 = vadd.f32 %v5214, %v5236
      %v5283 = vadd.f32 %v5215, %v5236
      %v5284 = vadd.f32 %v5216, %v5236
      %v5285 = vadd.f32 %v5217, %v5236
      %v5286 = vadd.f32 %v5218, %v5236
      %v5287 = vadd.f32 %v5219, %v5236
      %v5288 = vadd.f32 %v5220, %v5236
      %v5289 = vadd.f32 %v5221, %v5236
      %v5290 = vadd.f32 %v5222, %v5236
      %v5291 = vadd.f32 %v5223, %v5236
      %v5292 = vadd.f32 %v5224, %v5236
      %v5293 = vadd.f32 %v5225, %v5236
      %v5294 = vadd.f32 %v5226, %v5236
      %v5295 = vadd.f32 %v5227, %v5236
      %v5296 = vadd.f32 %v5228, %v5236
      %v5297 = vadd.f32 %v5229, %v5236
      %v5298 = vadd.f32 %v5230, %v5236
      %v5299 = vadd.f32 %v5231, %v5236
      %v5300 = vadd.f32 %v5232, %v5236
      %v5301 = vadd.f32 %v5233, %v5236
      %v5302 = vlaneseq
      %v5303 = vand.u32 %v5302, 127
      %vm5304 = vcmp.lt.s32.totalorder %v5303, 3
      %vm5305 = vcmp.ge.s32.totalorder %v5303, 4
      %vm5306 = vcmp.lt.s32.totalorder %v5303, 7
      %vm5307 = vmand %vm5305, %vm5306
      %vm5308 = vmor %vm5304, %vm5307
      %v5309 = vmul.f32 %v5238, 0.5
      %v5310 = vmul.f32 %v5239, 0.5
      %v5311 = vmul.f32 %v5240, 0.5
      %v5312 = vmul.f32 %v5241, 0.5
      %v5313 = vmul.f32 %v5242, 0.5
      %v5314 = vmul.f32 %v5243, 0.5
      %v5315 = vmul.f32 %v5244, 0.5
      %v5316 = vmul.f32 %v5245, 0.5
      %v5317 = vmul.f32 %v5246, 0.5
      %v5318 = vmul.f32 %v5247, 0.5
      %v5319 = vmul.f32 %v5248, 0.5
      %v5320 = vmul.f32 %v5249, 0.5
      %v5321 = vmul.f32 %v5250, 0.5
      %v5322 = vmul.f32 %v5251, 0.5
      %v5323 = vmul.f32 %v5252, 0.5
      %v5324 = vmul.f32 %v5253, 0.5
      %v5325 = vmul.f32 %v5254, 0.5
      %v5326 = vmul.f32 %v5255, 0.5
      %v5327 = vmul.f32 %v5256, 0.5
      %v5328 = vmul.f32 %v5257, 0.5
      %v5329 = vmul.f32 %v5258, 0.5
      %v5330 = vmul.f32 %v5259, 0.5
      %v5331 = vmul.f32 %v5260, 0.5
      %v5332 = vmul.f32 %v5261, 0.5
      %v5333 = vmul.f32 %v5262, 0.5
      %v5334 = vmul.f32 %v5263, 0.5
      %v5335 = vmul.f32 %v5264, 0.5
      %v5336 = vmul.f32 %v5265, 0.5
      %v5337 = vmul.f32 %v5266, 0.5
      %v5338 = vmul.f32 %v5267, 0.5
      %v5339 = vmul.f32 %v5268, 0.5
      %v5340 = vmul.f32 %v5269, 0.5
      %v5341 = vmul.f32 %v5270, 0.5
      %v5342 = vmul.f32 %v5271, 0.5
      %v5343 = vmul.f32 %v5272, 0.5
      %v5344 = vmul.f32 %v5273, 0.5
      %v5345 = vmul.f32 %v5274, 0.5
      %v5346 = vmul.f32 %v5275, 0.5
      %v5347 = vmul.f32 %v5276, 0.5
      %v5348 = vmul.f32 %v5277, 0.5
      %v5349 = vmul.f32 %v5278, 0.5
      %v5350 = vmul.f32 %v5279, 0.5
      %v5351 = vmul.f32 %v5280, 0.5
      %v5352 = vmul.f32 %v5281, 0.5
      %v5353 = vmul.f32 %v5282, 0.5
      %v5354 = vmul.f32 %v5283, 0.5
      %v5355 = vmul.f32 %v5284, 0.5
      %v5356 = vmul.f32 %v5285, 0.5
      %v5357 = vmul.f32 %v5286, 0.5
      %v5358 = vmul.f32 %v5287, 0.5
      %v5359 = vmul.f32 %v5288, 0.5
      %v5360 = vmul.f32 %v5289, 0.5
      %v5361 = vmul.f32 %v5290, 0.5
      %v5362 = vmul.f32 %v5291, 0.5
      %v5363 = vmul.f32 %v5292, 0.5
      %v5364 = vmul.f32 %v5293, 0.5
      %v5365 = vmul.f32 %v5294, 0.5
      %v5366 = vmul.f32 %v5295, 0.5
      %v5367 = vmul.f32 %v5296, 0.5
      %v5368 = vmul.f32 %v5297, 0.5
      %v5369 = vmul.f32 %v5298, 0.5
      %v5370 = vmul.f32 %v5299, 0.5
      %v5371 = vmul.f32 %v5300, 0.5
      %v5372 = vmul.f32 %v5301, 0.5
      %v5373 = vtanh.pop %v5309
      %v5374 = vtanh.pop %v5310
      %v5375 = vtanh.pop %v5311
      %v5376 = vtanh.pop %v5312
      %v5377 = vtanh.pop %v5313
      %v5378 = vtanh.pop %v5314
      %v5379 = vtanh.pop %v5315
      %v5380 = vtanh.pop %v5316
      %v5381 = vtanh.pop %v5317
      %v5382 = vtanh.pop %v5318
      %v5383 = vtanh.pop %v5319
      %v5384 = vtanh.pop %v5320
      %v5385 = vtanh.pop %v5321
      %v5386 = vtanh.pop %v5322
      %v5387 = vtanh.pop %v5323
      %v5388 = vtanh.pop %v5324
      %v5389 = vtanh.pop %v5325
      %v5390 = vtanh.pop %v5326
      %v5391 = vtanh.pop %v5327
      %v5392 = vtanh.pop %v5328
      %v5393 = vtanh.pop %v5329
      %v5394 = vtanh.pop %v5330
      %v5395 = vtanh.pop %v5331
      %v5396 = vtanh.pop %v5332
      %v5397 = vtanh.pop %v5333
      %v5398 = vtanh.pop %v5334
      %v5399 = vtanh.pop %v5335
      %v5400 = vtanh.pop %v5336
      %v5401 = vtanh.pop %v5337
      %v5402 = vtanh.pop %v5338
      %v5403 = vtanh.pop %v5339
      %v5404 = vtanh.pop %v5340
      %v5405 = vtanh.pop %v5341
      %v5406 = vtanh.pop %v5342
      %v5407 = vtanh.pop %v5343
      %v5408 = vtanh.pop %v5344
      %v5409 = vtanh.pop %v5345
      %v5410 = vtanh.pop %v5346
      %v5411 = vtanh.pop %v5347
      %v5412 = vtanh.pop %v5348
      %v5413 = vtanh.pop %v5349
      %v5414 = vtanh.pop %v5350
      %v5415 = vtanh.pop %v5351
      %v5416 = vtanh.pop %v5352
      %v5417 = vtanh.pop %v5353
      %v5418 = vtanh.pop %v5354
      %v5419 = vtanh.pop %v5355
      %v5420 = vtanh.pop %v5356
      %v5421 = vtanh.pop %v5357
      %v5422 = vtanh.pop %v5358
      %v5423 = vtanh.pop %v5359
      %v5424 = vtanh.pop %v5360
      %v5425 = vtanh.pop %v5361
      %v5426 = vtanh.pop %v5362
      %v5427 = vtanh.pop %v5363
      %v5428 = vtanh.pop %v5364
      %v5429 = vtanh.pop %v5365
      %v5430 = vtanh.pop %v5366
      %v5431 = vtanh.pop %v5367
      %v5432 = vtanh.pop %v5368
      %v5433 = vtanh.pop %v5369
      %v5434 = vtanh.pop %v5370
      %v5435 = vtanh.pop %v5371
      %v5436 = vtanh.pop %v5372
      %v5437 = vmul.f32 %v5373, 0.5
      %v5438 = vmul.f32 %v5374, 0.5
      %v5439 = vmul.f32 %v5375, 0.5
      %v5440 = vmul.f32 %v5376, 0.5
      %v5441 = vmul.f32 %v5377, 0.5
      %v5442 = vmul.f32 %v5378, 0.5
      %v5443 = vmul.f32 %v5379, 0.5
      %v5444 = vmul.f32 %v5380, 0.5
      %v5445 = vmul.f32 %v5381, 0.5
      %v5446 = vmul.f32 %v5382, 0.5
      %v5447 = vmul.f32 %v5383, 0.5
      %v5448 = vmul.f32 %v5384, 0.5
      %v5449 = vmul.f32 %v5385, 0.5
      %v5450 = vmul.f32 %v5386, 0.5
      %v5451 = vmul.f32 %v5387, 0.5
      %v5452 = vmul.f32 %v5388, 0.5
      %v5453 = vmul.f32 %v5389, 0.5
      %v5454 = vmul.f32 %v5390, 0.5
      %v5455 = vmul.f32 %v5391, 0.5
      %v5456 = vmul.f32 %v5392, 0.5
      %v5457 = vmul.f32 %v5393, 0.5
      %v5458 = vmul.f32 %v5394, 0.5
      %v5459 = vmul.f32 %v5395, 0.5
      %v5460 = vmul.f32 %v5396, 0.5
      %v5461 = vmul.f32 %v5397, 0.5
      %v5462 = vmul.f32 %v5398, 0.5
      %v5463 = vmul.f32 %v5399, 0.5
      %v5464 = vmul.f32 %v5400, 0.5
      %v5465 = vmul.f32 %v5401, 0.5
      %v5466 = vmul.f32 %v5402, 0.5
      %v5467 = vmul.f32 %v5403, 0.5
      %v5468 = vmul.f32 %v5404, 0.5
      %v5469 = vmul.f32 %v5405, 0.5
      %v5470 = vmul.f32 %v5406, 0.5
      %v5471 = vmul.f32 %v5407, 0.5
      %v5472 = vmul.f32 %v5408, 0.5
      %v5473 = vmul.f32 %v5409, 0.5
      %v5474 = vmul.f32 %v5410, 0.5
      %v5475 = vmul.f32 %v5411, 0.5
      %v5476 = vmul.f32 %v5412, 0.5
      %v5477 = vmul.f32 %v5413, 0.5
      %v5478 = vmul.f32 %v5414, 0.5
      %v5479 = vmul.f32 %v5415, 0.5
      %v5480 = vmul.f32 %v5416, 0.5
      %v5481 = vmul.f32 %v5417, 0.5
      %v5482 = vmul.f32 %v5418, 0.5
      %v5483 = vmul.f32 %v5419, 0.5
      %v5484 = vmul.f32 %v5420, 0.5
      %v5485 = vmul.f32 %v5421, 0.5
      %v5486 = vmul.f32 %v5422, 0.5
      %v5487 = vmul.f32 %v5423, 0.5
      %v5488 = vmul.f32 %v5424, 0.5
      %v5489 = vmul.f32 %v5425, 0.5
      %v5490 = vmul.f32 %v5426, 0.5
      %v5491 = vmul.f32 %v5427, 0.5
      %v5492 = vmul.f32 %v5428, 0.5
      %v5493 = vmul.f32 %v5429, 0.5
      %v5494 = vmul.f32 %v5430, 0.5
      %v5495 = vmul.f32 %v5431, 0.5
      %v5496 = vmul.f32 %v5432, 0.5
      %v5497 = vmul.f32 %v5433, 0.5
      %v5498 = vmul.f32 %v5434, 0.5
      %v5499 = vmul.f32 %v5435, 0.5
      %v5500 = vmul.f32 %v5436, 0.5
      %v5501 = vadd.f32 %v5437, 0.5
      %v5502 = vadd.f32 %v5438, 0.5
      %v5503 = vadd.f32 %v5439, 0.5
      %v5504 = vadd.f32 %v5440, 0.5
      %v5505 = vadd.f32 %v5441, 0.5
      %v5506 = vadd.f32 %v5442, 0.5
      %v5507 = vadd.f32 %v5443, 0.5
      %v5508 = vadd.f32 %v5444, 0.5
      %v5509 = vadd.f32 %v5445, 0.5
      %v5510 = vadd.f32 %v5446, 0.5
      %v5511 = vadd.f32 %v5447, 0.5
      %v5512 = vadd.f32 %v5448, 0.5
      %v5513 = vadd.f32 %v5449, 0.5
      %v5514 = vadd.f32 %v5450, 0.5
      %v5515 = vadd.f32 %v5451, 0.5
      %v5516 = vadd.f32 %v5452, 0.5
      %v5517 = vadd.f32 %v5453, 0.5
      %v5518 = vadd.f32 %v5454, 0.5
      %v5519 = vadd.f32 %v5455, 0.5
      %v5520 = vadd.f32 %v5456, 0.5
      %v5521 = vadd.f32 %v5457, 0.5
      %v5522 = vadd.f32 %v5458, 0.5
      %v5523 = vadd.f32 %v5459, 0.5
      %v5524 = vadd.f32 %v5460, 0.5
      %v5525 = vadd.f32 %v5461, 0.5
      %v5526 = vadd.f32 %v5462, 0.5
      %v5527 = vadd.f32 %v5463, 0.5
      %v5528 = vadd.f32 %v5464, 0.5
      %v5529 = vadd.f32 %v5465, 0.5
      %v5530 = vadd.f32 %v5466, 0.5
      %v5531 = vadd.f32 %v5467, 0.5
      %v5532 = vadd.f32 %v5468, 0.5
      %v5533 = vadd.f32 %v5469, 0.5
      %v5534 = vadd.f32 %v5470, 0.5
      %v5535 = vadd.f32 %v5471, 0.5
      %v5536 = vadd.f32 %v5472, 0.5
      %v5537 = vadd.f32 %v5473, 0.5
      %v5538 = vadd.f32 %v5474, 0.5
      %v5539 = vadd.f32 %v5475, 0.5
      %v5540 = vadd.f32 %v5476, 0.5
      %v5541 = vadd.f32 %v5477, 0.5
      %v5542 = vadd.f32 %v5478, 0.5
      %v5543 = vadd.f32 %v5479, 0.5
      %v5544 = vadd.f32 %v5480, 0.5
      %v5545 = vadd.f32 %v5481, 0.5
      %v5546 = vadd.f32 %v5482, 0.5
      %v5547 = vadd.f32 %v5483, 0.5
      %v5548 = vadd.f32 %v5484, 0.5
      %v5549 = vadd.f32 %v5485, 0.5
      %v5550 = vadd.f32 %v5486, 0.5
      %v5551 = vadd.f32 %v5487, 0.5
      %v5552 = vadd.f32 %v5488, 0.5
      %v5553 = vadd.f32 %v5489, 0.5
      %v5554 = vadd.f32 %v5490, 0.5
      %v5555 = vadd.f32 %v5491, 0.5
      %v5556 = vadd.f32 %v5492, 0.5
      %v5557 = vadd.f32 %v5493, 0.5
      %v5558 = vadd.f32 %v5494, 0.5
      %v5559 = vadd.f32 %v5495, 0.5
      %v5560 = vadd.f32 %v5496, 0.5
      %v5561 = vadd.f32 %v5497, 0.5
      %v5562 = vadd.f32 %v5498, 0.5
      %v5563 = vadd.f32 %v5499, 0.5
      %v5564 = vadd.f32 %v5500, 0.5
      %vm5565 = vcmp.gt.f32.partialorder %v5238, 20.0
      %vm5566 = vcmp.gt.f32.partialorder %v5239, 20.0
      %vm5567 = vcmp.gt.f32.partialorder %v5240, 20.0
      %vm5568 = vcmp.gt.f32.partialorder %v5241, 20.0
      %vm5569 = vcmp.gt.f32.partialorder %v5242, 20.0
      %vm5570 = vcmp.gt.f32.partialorder %v5243, 20.0
      %vm5571 = vcmp.gt.f32.partialorder %v5244, 20.0
      %vm5572 = vcmp.gt.f32.partialorder %v5245, 20.0
      %vm5573 = vcmp.gt.f32.partialorder %v5246, 20.0
      %vm5574 = vcmp.gt.f32.partialorder %v5247, 20.0
      %vm5575 = vcmp.gt.f32.partialorder %v5248, 20.0
      %vm5576 = vcmp.gt.f32.partialorder %v5249, 20.0
      %vm5577 = vcmp.gt.f32.partialorder %v5250, 20.0
      %vm5578 = vcmp.gt.f32.partialorder %v5251, 20.0
      %vm5579 = vcmp.gt.f32.partialorder %v5252, 20.0
      %vm5580 = vcmp.gt.f32.partialorder %v5253, 20.0
      %vm5581 = vcmp.gt.f32.partialorder %v5254, 20.0
      %vm5582 = vcmp.gt.f32.partialorder %v5255, 20.0
      %vm5583 = vcmp.gt.f32.partialorder %v5256, 20.0
      %vm5584 = vcmp.gt.f32.partialorder %v5257, 20.0
      %vm5585 = vcmp.gt.f32.partialorder %v5258, 20.0
      %vm5586 = vcmp.gt.f32.partialorder %v5259, 20.0
      %vm5587 = vcmp.gt.f32.partialorder %v5260, 20.0
      %vm5588 = vcmp.gt.f32.partialorder %v5261, 20.0
      %vm5589 = vcmp.gt.f32.partialorder %v5262, 20.0
      %vm5590 = vcmp.gt.f32.partialorder %v5263, 20.0
      %vm5591 = vcmp.gt.f32.partialorder %v5264, 20.0
      %vm5592 = vcmp.gt.f32.partialorder %v5265, 20.0
      %vm5593 = vcmp.gt.f32.partialorder %v5266, 20.0
      %vm5594 = vcmp.gt.f32.partialorder %v5267, 20.0
      %vm5595 = vcmp.gt.f32.partialorder %v5268, 20.0
      %vm5596 = vcmp.gt.f32.partialorder %v5269, 20.0
      %vm5597 = vcmp.gt.f32.partialorder %v5270, 20.0
      %vm5598 = vcmp.gt.f32.partialorder %v5271, 20.0
      %vm5599 = vcmp.gt.f32.partialorder %v5272, 20.0
      %vm5600 = vcmp.gt.f32.partialorder %v5273, 20.0
      %vm5601 = vcmp.gt.f32.partialorder %v5274, 20.0
      %vm5602 = vcmp.gt.f32.partialorder %v5275, 20.0
      %vm5603 = vcmp.gt.f32.partialorder %v5276, 20.0
      %vm5604 = vcmp.gt.f32.partialorder %v5277, 20.0
      %vm5605 = vcmp.gt.f32.partialorder %v5278, 20.0
      %vm5606 = vcmp.gt.f32.partialorder %v5279, 20.0
      %vm5607 = vcmp.gt.f32.partialorder %v5280, 20.0
      %vm5608 = vcmp.gt.f32.partialorder %v5281, 20.0
      %vm5609 = vcmp.gt.f32.partialorder %v5282, 20.0
      %vm5610 = vcmp.gt.f32.partialorder %v5283, 20.0
      %vm5611 = vcmp.gt.f32.partialorder %v5284, 20.0
      %vm5612 = vcmp.gt.f32.partialorder %v5285, 20.0
      %vm5613 = vcmp.gt.f32.partialorder %v5286, 20.0
      %vm5614 = vcmp.gt.f32.partialorder %v5287, 20.0
      %vm5615 = vcmp.gt.f32.partialorder %v5288, 20.0
      %vm5616 = vcmp.gt.f32.partialorder %v5289, 20.0
      %vm5617 = vcmp.gt.f32.partialorder %v5290, 20.0
      %vm5618 = vcmp.gt.f32.partialorder %v5291, 20.0
      %vm5619 = vcmp.gt.f32.partialorder %v5292, 20.0
      %vm5620 = vcmp.gt.f32.partialorder %v5293, 20.0
      %vm5621 = vcmp.gt.f32.partialorder %v5294, 20.0
      %vm5622 = vcmp.gt.f32.partialorder %v5295, 20.0
      %vm5623 = vcmp.gt.f32.partialorder %v5296, 20.0
      %vm5624 = vcmp.gt.f32.partialorder %v5297, 20.0
      %vm5625 = vcmp.gt.f32.partialorder %v5298, 20.0
      %vm5626 = vcmp.gt.f32.partialorder %v5299, 20.0
      %vm5627 = vcmp.gt.f32.partialorder %v5300, 20.0
      %vm5628 = vcmp.gt.f32.partialorder %v5301, 20.0
      %v5629 = vmin.f32 %v5238, 20.0
      %v5630 = vmin.f32 %v5239, 20.0
      %v5631 = vmin.f32 %v5240, 20.0
      %v5632 = vmin.f32 %v5241, 20.0
      %v5633 = vmin.f32 %v5242, 20.0
      %v5634 = vmin.f32 %v5243, 20.0
      %v5635 = vmin.f32 %v5244, 20.0
      %v5636 = vmin.f32 %v5245, 20.0
      %v5637 = vmin.f32 %v5246, 20.0
      %v5638 = vmin.f32 %v5247, 20.0
      %v5639 = vmin.f32 %v5248, 20.0
      %v5640 = vmin.f32 %v5249, 20.0
      %v5641 = vmin.f32 %v5250, 20.0
      %v5642 = vmin.f32 %v5251, 20.0
      %v5643 = vmin.f32 %v5252, 20.0
      %v5644 = vmin.f32 %v5253, 20.0
      %v5645 = vmin.f32 %v5254, 20.0
      %v5646 = vmin.f32 %v5255, 20.0
      %v5647 = vmin.f32 %v5256, 20.0
      %v5648 = vmin.f32 %v5257, 20.0
      %v5649 = vmin.f32 %v5258, 20.0
      %v5650 = vmin.f32 %v5259, 20.0
      %v5651 = vmin.f32 %v5260, 20.0
      %v5652 = vmin.f32 %v5261, 20.0
      %v5653 = vmin.f32 %v5262, 20.0
      %v5654 = vmin.f32 %v5263, 20.0
      %v5655 = vmin.f32 %v5264, 20.0
      %v5656 = vmin.f32 %v5265, 20.0
      %v5657 = vmin.f32 %v5266, 20.0
      %v5658 = vmin.f32 %v5267, 20.0
      %v5659 = vmin.f32 %v5268, 20.0
      %v5660 = vmin.f32 %v5269, 20.0
      %v5661 = vmin.f32 %v5270, 20.0
      %v5662 = vmin.f32 %v5271, 20.0
      %v5663 = vmin.f32 %v5272, 20.0
      %v5664 = vmin.f32 %v5273, 20.0
      %v5665 = vmin.f32 %v5274, 20.0
      %v5666 = vmin.f32 %v5275, 20.0
      %v5667 = vmin.f32 %v5276, 20.0
      %v5668 = vmin.f32 %v5277, 20.0
      %v5669 = vmin.f32 %v5278, 20.0
      %v5670 = vmin.f32 %v5279, 20.0
      %v5671 = vmin.f32 %v5280, 20.0
      %v5672 = vmin.f32 %v5281, 20.0
      %v5673 = vmin.f32 %v5282, 20.0
      %v5674 = vmin.f32 %v5283, 20.0
      %v5675 = vmin.f32 %v5284, 20.0
      %v5676 = vmin.f32 %v5285, 20.0
      %v5677 = vmin.f32 %v5286, 20.0
      %v5678 = vmin.f32 %v5287, 20.0
      %v5679 = vmin.f32 %v5288, 20.0
      %v5680 = vmin.f32 %v5289, 20.0
      %v5681 = vmin.f32 %v5290, 20.0
      %v5682 = vmin.f32 %v5291, 20.0
      %v5683 = vmin.f32 %v5292, 20.0
      %v5684 = vmin.f32 %v5293, 20.0
      %v5685 = vmin.f32 %v5294, 20.0
      %v5686 = vmin.f32 %v5295, 20.0
      %v5687 = vmin.f32 %v5296, 20.0
      %v5688 = vmin.f32 %v5297, 20.0
      %v5689 = vmin.f32 %v5298, 20.0
      %v5690 = vmin.f32 %v5299, 20.0
      %v5691 = vmin.f32 %v5300, 20.0
      %v5692 = vmin.f32 %v5301, 20.0
      %v5693 = vmul.f32 %v5629, 1.442695
      %v5694 = vpow.pop %v5693
      %v5695 = vmul.f32 %v5630, 1.442695
      %v5696 = vpow.pop %v5695
      %v5697 = vmul.f32 %v5631, 1.442695
      %v5698 = vpow.pop %v5697
      %v5699 = vmul.f32 %v5632, 1.442695
      %v5700 = vpow.pop %v5699
      %v5701 = vmul.f32 %v5633, 1.442695
      %v5702 = vpow.pop %v5701
      %v5703 = vmul.f32 %v5634, 1.442695
      %v5704 = vpow.pop %v5703
      %v5705 = vmul.f32 %v5635, 1.442695
      %v5706 = vpow.pop %v5705
      %v5707 = vmul.f32 %v5636, 1.442695
      %v5708 = vpow.pop %v5707
      %v5709 = vmul.f32 %v5637, 1.442695
      %v5710 = vpow.pop %v5709
      %v5711 = vmul.f32 %v5638, 1.442695
      %v5712 = vpow.pop %v5711
      %v5713 = vmul.f32 %v5639, 1.442695
      %v5714 = vpow.pop %v5713
      %v5715 = vmul.f32 %v5640, 1.442695
      %v5716 = vpow.pop %v5715
      %v5717 = vmul.f32 %v5641, 1.442695
      %v5718 = vpow.pop %v5717
      %v5719 = vmul.f32 %v5642, 1.442695
      %v5720 = vpow.pop %v5719
      %v5721 = vmul.f32 %v5643, 1.442695
      %v5722 = vpow.pop %v5721
      %v5723 = vmul.f32 %v5644, 1.442695
      %v5724 = vpow.pop %v5723
      %v5725 = vmul.f32 %v5645, 1.442695
      %v5726 = vpow.pop %v5725
      %v5727 = vmul.f32 %v5646, 1.442695
      %v5728 = vpow.pop %v5727
      %v5729 = vmul.f32 %v5647, 1.442695
      %v5730 = vpow.pop %v5729
      %v5731 = vmul.f32 %v5648, 1.442695
      %v5732 = vpow.pop %v5731
      %v5733 = vmul.f32 %v5649, 1.442695
      %v5734 = vpow.pop %v5733
      %v5735 = vmul.f32 %v5650, 1.442695
      %v5736 = vpow.pop %v5735
      %v5737 = vmul.f32 %v5651, 1.442695
      %v5738 = vpow.pop %v5737
      %v5739 = vmul.f32 %v5652, 1.442695
      %v5740 = vpow.pop %v5739
      %v5741 = vmul.f32 %v5653, 1.442695
      %v5742 = vpow.pop %v5741
      %v5743 = vmul.f32 %v5654, 1.442695
      %v5744 = vpow.pop %v5743
      %v5745 = vmul.f32 %v5655, 1.442695
      %v5746 = vpow.pop %v5745
      %v5747 = vmul.f32 %v5656, 1.442695
      %v5748 = vpow.pop %v5747
      %v5749 = vmul.f32 %v5657, 1.442695
      %v5750 = vpow.pop %v5749
      %v5751 = vmul.f32 %v5658, 1.442695
      %v5752 = vpow.pop %v5751
      %v5753 = vmul.f32 %v5659, 1.442695
      %v5754 = vpow.pop %v5753
      %v5755 = vmul.f32 %v5660, 1.442695
      %v5756 = vpow.pop %v5755
      %v5757 = vmul.f32 %v5661, 1.442695
      %v5758 = vpow.pop %v5757
      %v5759 = vmul.f32 %v5662, 1.442695
      %v5760 = vpow.pop %v5759
      %v5761 = vmul.f32 %v5663, 1.442695
      %v5762 = vpow.pop %v5761
      %v5763 = vmul.f32 %v5664, 1.442695
      %v5764 = vpow.pop %v5763
      %v5765 = vmul.f32 %v5665, 1.442695
      %v5766 = vpow.pop %v5765
      %v5767 = vmul.f32 %v5666, 1.442695
      %v5768 = vpow.pop %v5767
      %v5769 = vmul.f32 %v5667, 1.442695
      %v5770 = vpow.pop %v5769
      %v5771 = vmul.f32 %v5668, 1.442695
      %v5772 = vpow.pop %v5771
      %v5773 = vmul.f32 %v5669, 1.442695
      %v5774 = vpow.pop %v5773
      %v5775 = vmul.f32 %v5670, 1.442695
      %v5776 = vpow.pop %v5775
      %v5777 = vmul.f32 %v5671, 1.442695
      %v5778 = vpow.pop %v5777
      %v5779 = vmul.f32 %v5672, 1.442695
      %v5780 = vpow.pop %v5779
      %v5781 = vmul.f32 %v5673, 1.442695
      %v5782 = vpow.pop %v5781
      %v5783 = vmul.f32 %v5674, 1.442695
      %v5784 = vpow.pop %v5783
      %v5785 = vmul.f32 %v5675, 1.442695
      %v5786 = vpow.pop %v5785
      %v5787 = vmul.f32 %v5676, 1.442695
      %v5788 = vpow.pop %v5787
      %v5789 = vmul.f32 %v5677, 1.442695
      %v5790 = vpow.pop %v5789
      %v5791 = vmul.f32 %v5678, 1.442695
      %v5792 = vpow.pop %v5791
      %v5793 = vmul.f32 %v5679, 1.442695
      %v5794 = vpow.pop %v5793
      %v5795 = vmul.f32 %v5680, 1.442695
      %v5796 = vpow.pop %v5795
      %v5797 = vmul.f32 %v5681, 1.442695
      %v5798 = vpow.pop %v5797
      %v5799 = vmul.f32 %v5682, 1.442695
      %v5800 = vpow.pop %v5799
      %v5801 = vmul.f32 %v5683, 1.442695
      %v5802 = vpow.pop %v5801
      %v5803 = vmul.f32 %v5684, 1.442695
      %v5804 = vpow.pop %v5803
      %v5805 = vmul.f32 %v5685, 1.442695
      %v5806 = vpow.pop %v5805
      %v5807 = vmul.f32 %v5686, 1.442695
      %v5808 = vpow.pop %v5807
      %v5809 = vmul.f32 %v5687, 1.442695
      %v5810 = vpow.pop %v5809
      %v5811 = vmul.f32 %v5688, 1.442695
      %v5812 = vpow.pop %v5811
      %v5813 = vmul.f32 %v5689, 1.442695
      %v5814 = vpow.pop %v5813
      %v5815 = vmul.f32 %v5690, 1.442695
      %v5816 = vpow.pop %v5815
      %v5817 = vmul.f32 %v5691, 1.442695
      %v5818 = vpow.pop %v5817
      %v5819 = vmul.f32 %v5692, 1.442695
      %v5820 = vpow.pop %v5819
      %v5821 = vadd.f32 %v5694, 1.0
      %v5822 = vadd.f32 %v5696, 1.0
      %v5823 = vadd.f32 %v5698, 1.0
      %v5824 = vadd.f32 %v5700, 1.0
      %v5825 = vadd.f32 %v5702, 1.0
      %v5826 = vadd.f32 %v5704, 1.0
      %v5827 = vadd.f32 %v5706, 1.0
      %v5828 = vadd.f32 %v5708, 1.0
      %v5829 = vadd.f32 %v5710, 1.0
      %v5830 = vadd.f32 %v5712, 1.0
      %v5831 = vadd.f32 %v5714, 1.0
      %v5832 = vadd.f32 %v5716, 1.0
      %v5833 = vadd.f32 %v5718, 1.0
      %v5834 = vadd.f32 %v5720, 1.0
      %v5835 = vadd.f32 %v5722, 1.0
      %v5836 = vadd.f32 %v5724, 1.0
      %v5837 = vadd.f32 %v5726, 1.0
      %v5838 = vadd.f32 %v5728, 1.0
      %v5839 = vadd.f32 %v5730, 1.0
      %v5840 = vadd.f32 %v5732, 1.0
      %v5841 = vadd.f32 %v5734, 1.0
      %v5842 = vadd.f32 %v5736, 1.0
      %v5843 = vadd.f32 %v5738, 1.0
      %v5844 = vadd.f32 %v5740, 1.0
      %v5845 = vadd.f32 %v5742, 1.0
      %v5846 = vadd.f32 %v5744, 1.0
      %v5847 = vadd.f32 %v5746, 1.0
      %v5848 = vadd.f32 %v5748, 1.0
      %v5849 = vadd.f32 %v5750, 1.0
      %v5850 = vadd.f32 %v5752, 1.0
      %v5851 = vadd.f32 %v5754, 1.0
      %v5852 = vadd.f32 %v5756, 1.0
      %v5853 = vadd.f32 %v5758, 1.0
      %v5854 = vadd.f32 %v5760, 1.0
      %v5855 = vadd.f32 %v5762, 1.0
      %v5856 = vadd.f32 %v5764, 1.0
      %v5857 = vadd.f32 %v5766, 1.0
      %v5858 = vadd.f32 %v5768, 1.0
      %v5859 = vadd.f32 %v5770, 1.0
      %v5860 = vadd.f32 %v5772, 1.0
      %v5861 = vadd.f32 %v5774, 1.0
      %v5862 = vadd.f32 %v5776, 1.0
      %v5863 = vadd.f32 %v5778, 1.0
      %v5864 = vadd.f32 %v5780, 1.0
      %v5865 = vadd.f32 %v5782, 1.0
      %v5866 = vadd.f32 %v5784, 1.0
      %v5867 = vadd.f32 %v5786, 1.0
      %v5868 = vadd.f32 %v5788, 1.0
      %v5869 = vadd.f32 %v5790, 1.0
      %v5870 = vadd.f32 %v5792, 1.0
      %v5871 = vadd.f32 %v5794, 1.0
      %v5872 = vadd.f32 %v5796, 1.0
      %v5873 = vadd.f32 %v5798, 1.0
      %v5874 = vadd.f32 %v5800, 1.0
      %v5875 = vadd.f32 %v5802, 1.0
      %v5876 = vadd.f32 %v5804, 1.0
      %v5877 = vadd.f32 %v5806, 1.0
      %v5878 = vadd.f32 %v5808, 1.0
      %v5879 = vadd.f32 %v5810, 1.0
      %v5880 = vadd.f32 %v5812, 1.0
      %v5881 = vadd.f32 %v5814, 1.0
      %v5882 = vadd.f32 %v5816, 1.0
      %v5883 = vadd.f32 %v5818, 1.0
      %v5884 = vadd.f32 %v5820, 1.0
      %v5885 = vlog2.pop %v5821
      %v5886 = vmul.f32 %v5885, 0.6931472
      %v5887 = vlog2.pop %v5822
      %v5888 = vmul.f32 %v5887, 0.6931472
      %v5889 = vlog2.pop %v5823
      %v5890 = vmul.f32 %v5889, 0.6931472
      %v5891 = vlog2.pop %v5824
      %v5892 = vmul.f32 %v5891, 0.6931472
      %v5893 = vlog2.pop %v5825
      %v5894 = vmul.f32 %v5893, 0.6931472
      %v5895 = vlog2.pop %v5826
      %v5896 = vmul.f32 %v5895, 0.6931472
      %v5897 = vlog2.pop %v5827
      %v5898 = vmul.f32 %v5897, 0.6931472
      %v5899 = vlog2.pop %v5828
      %v5900 = vmul.f32 %v5899, 0.6931472
      %v5901 = vlog2.pop %v5829
      %v5902 = vmul.f32 %v5901, 0.6931472
      %v5903 = vlog2.pop %v5830
      %v5904 = vmul.f32 %v5903, 0.6931472
      %v5905 = vlog2.pop %v5831
      %v5906 = vmul.f32 %v5905, 0.6931472
      %v5907 = vlog2.pop %v5832
      %v5908 = vmul.f32 %v5907, 0.6931472
      %v5909 = vlog2.pop %v5833
      %v5910 = vmul.f32 %v5909, 0.6931472
      %v5911 = vlog2.pop %v5834
      %v5912 = vmul.f32 %v5911, 0.6931472
      %v5913 = vlog2.pop %v5835
      %v5914 = vmul.f32 %v5913, 0.6931472
      %v5915 = vlog2.pop %v5836
      %v5916 = vmul.f32 %v5915, 0.6931472
      %v5917 = vlog2.pop %v5837
      %v5918 = vmul.f32 %v5917, 0.6931472
      %v5919 = vlog2.pop %v5838
      %v5920 = vmul.f32 %v5919, 0.6931472
      %v5921 = vlog2.pop %v5839
      %v5922 = vmul.f32 %v5921, 0.6931472
      %v5923 = vlog2.pop %v5840
      %v5924 = vmul.f32 %v5923, 0.6931472
      %v5925 = vlog2.pop %v5841
      %v5926 = vmul.f32 %v5925, 0.6931472
      %v5927 = vlog2.pop %v5842
      %v5928 = vmul.f32 %v5927, 0.6931472
      %v5929 = vlog2.pop %v5843
      %v5930 = vmul.f32 %v5929, 0.6931472
      %v5931 = vlog2.pop %v5844
      %v5932 = vmul.f32 %v5931, 0.6931472
      %v5933 = vlog2.pop %v5845
      %v5934 = vmul.f32 %v5933, 0.6931472
      %v5935 = vlog2.pop %v5846
      %v5936 = vmul.f32 %v5935, 0.6931472
      %v5937 = vlog2.pop %v5847
      %v5938 = vmul.f32 %v5937, 0.6931472
      %v5939 = vlog2.pop %v5848
      %v5940 = vmul.f32 %v5939, 0.6931472
      %v5941 = vlog2.pop %v5849
      %v5942 = vmul.f32 %v5941, 0.6931472
      %v5943 = vlog2.pop %v5850
      %v5944 = vmul.f32 %v5943, 0.6931472
      %v5945 = vlog2.pop %v5851
      %v5946 = vmul.f32 %v5945, 0.6931472
      %v5947 = vlog2.pop %v5852
      %v5948 = vmul.f32 %v5947, 0.6931472
      %v5949 = vlog2.pop %v5853
      %v5950 = vmul.f32 %v5949, 0.6931472
      %v5951 = vlog2.pop %v5854
      %v5952 = vmul.f32 %v5951, 0.6931472
      %v5953 = vlog2.pop %v5855
      %v5954 = vmul.f32 %v5953, 0.6931472
      %v5955 = vlog2.pop %v5856
      %v5956 = vmul.f32 %v5955, 0.6931472
      %v5957 = vlog2.pop %v5857
      %v5958 = vmul.f32 %v5957, 0.6931472
      %v5959 = vlog2.pop %v5858
      %v5960 = vmul.f32 %v5959, 0.6931472
      %v5961 = vlog2.pop %v5859
      %v5962 = vmul.f32 %v5961, 0.6931472
      %v5963 = vlog2.pop %v5860
      %v5964 = vmul.f32 %v5963, 0.6931472
      %v5965 = vlog2.pop %v5861
      %v5966 = vmul.f32 %v5965, 0.6931472
      %v5967 = vlog2.pop %v5862
      %v5968 = vmul.f32 %v5967, 0.6931472
      %v5969 = vlog2.pop %v5863
      %v5970 = vmul.f32 %v5969, 0.6931472
      %v5971 = vlog2.pop %v5864
      %v5972 = vmul.f32 %v5971, 0.6931472
      %v5973 = vlog2.pop %v5865
      %v5974 = vmul.f32 %v5973, 0.6931472
      %v5975 = vlog2.pop %v5866
      %v5976 = vmul.f32 %v5975, 0.6931472
      %v5977 = vlog2.pop %v5867
      %v5978 = vmul.f32 %v5977, 0.6931472
      %v5979 = vlog2.pop %v5868
      %v5980 = vmul.f32 %v5979, 0.6931472
      %v5981 = vlog2.pop %v5869
      %v5982 = vmul.f32 %v5981, 0.6931472
      %v5983 = vlog2.pop %v5870
      %v5984 = vmul.f32 %v5983, 0.6931472
      %v5985 = vlog2.pop %v5871
      %v5986 = vmul.f32 %v5985, 0.6931472
      %v5987 = vlog2.pop %v5872
      %v5988 = vmul.f32 %v5987, 0.6931472
      %v5989 = vlog2.pop %v5873
      %v5990 = vmul.f32 %v5989, 0.6931472
      %v5991 = vlog2.pop %v5874
      %v5992 = vmul.f32 %v5991, 0.6931472
      %v5993 = vlog2.pop %v5875
      %v5994 = vmul.f32 %v5993, 0.6931472
      %v5995 = vlog2.pop %v5876
      %v5996 = vmul.f32 %v5995, 0.6931472
      %v5997 = vlog2.pop %v5877
      %v5998 = vmul.f32 %v5997, 0.6931472
      %v5999 = vlog2.pop %v5878
      %v6000 = vmul.f32 %v5999, 0.6931472
      %v6001 = vlog2.pop %v5879
      %v6002 = vmul.f32 %v6001, 0.6931472
      %v6003 = vlog2.pop %v5880
      %v6004 = vmul.f32 %v6003, 0.6931472
      %v6005 = vlog2.pop %v5881
      %v6006 = vmul.f32 %v6005, 0.6931472
      %v6007 = vlog2.pop %v5882
      %v6008 = vmul.f32 %v6007, 0.6931472
      %v6009 = vlog2.pop %v5883
      %v6010 = vmul.f32 %v6009, 0.6931472
      %v6011 = vlog2.pop %v5884
      %v6012 = vmul.f32 %v6011, 0.6931472
      %v6013 = vsel %vm5565, %v5238, %v5886
      %v6014 = vsel %vm5566, %v5239, %v5888
      %v6015 = vsel %vm5567, %v5240, %v5890
      %v6016 = vsel %vm5568, %v5241, %v5892
      %v6017 = vsel %vm5569, %v5242, %v5894
      %v6018 = vsel %vm5570, %v5243, %v5896
      %v6019 = vsel %vm5571, %v5244, %v5898
      %v6020 = vsel %vm5572, %v5245, %v5900
      %v6021 = vsel %vm5573, %v5246, %v5902
      %v6022 = vsel %vm5574, %v5247, %v5904
      %v6023 = vsel %vm5575, %v5248, %v5906
      %v6024 = vsel %vm5576, %v5249, %v5908
      %v6025 = vsel %vm5577, %v5250, %v5910
      %v6026 = vsel %vm5578, %v5251, %v5912
      %v6027 = vsel %vm5579, %v5252, %v5914
      %v6028 = vsel %vm5580, %v5253, %v5916
      %v6029 = vsel %vm5581, %v5254, %v5918
      %v6030 = vsel %vm5582, %v5255, %v5920
      %v6031 = vsel %vm5583, %v5256, %v5922
      %v6032 = vsel %vm5584, %v5257, %v5924
      %v6033 = vsel %vm5585, %v5258, %v5926
      %v6034 = vsel %vm5586, %v5259, %v5928
      %v6035 = vsel %vm5587, %v5260, %v5930
      %v6036 = vsel %vm5588, %v5261, %v5932
      %v6037 = vsel %vm5589, %v5262, %v5934
      %v6038 = vsel %vm5590, %v5263, %v5936
      %v6039 = vsel %vm5591, %v5264, %v5938
      %v6040 = vsel %vm5592, %v5265, %v5940
      %v6041 = vsel %vm5593, %v5266, %v5942
      %v6042 = vsel %vm5594, %v5267, %v5944
      %v6043 = vsel %vm5595, %v5268, %v5946
      %v6044 = vsel %vm5596, %v5269, %v5948
      %v6045 = vsel %vm5597, %v5270, %v5950
      %v6046 = vsel %vm5598, %v5271, %v5952
      %v6047 = vsel %vm5599, %v5272, %v5954
      %v6048 = vsel %vm5600, %v5273, %v5956
      %v6049 = vsel %vm5601, %v5274, %v5958
      %v6050 = vsel %vm5602, %v5275, %v5960
      %v6051 = vsel %vm5603, %v5276, %v5962
      %v6052 = vsel %vm5604, %v5277, %v5964
      %v6053 = vsel %vm5605, %v5278, %v5966
      %v6054 = vsel %vm5606, %v5279, %v5968
      %v6055 = vsel %vm5607, %v5280, %v5970
      %v6056 = vsel %vm5608, %v5281, %v5972
      %v6057 = vsel %vm5609, %v5282, %v5974
      %v6058 = vsel %vm5610, %v5283, %v5976
      %v6059 = vsel %vm5611, %v5284, %v5978
      %v6060 = vsel %vm5612, %v5285, %v5980
      %v6061 = vsel %vm5613, %v5286, %v5982
      %v6062 = vsel %vm5614, %v5287, %v5984
      %v6063 = vsel %vm5615, %v5288, %v5986
      %v6064 = vsel %vm5616, %v5289, %v5988
      %v6065 = vsel %vm5617, %v5290, %v5990
      %v6066 = vsel %vm5618, %v5291, %v5992
      %v6067 = vsel %vm5619, %v5292, %v5994
      %v6068 = vsel %vm5620, %v5293, %v5996
      %v6069 = vsel %vm5621, %v5294, %v5998
      %v6070 = vsel %vm5622, %v5295, %v6000
      %v6071 = vsel %vm5623, %v5296, %v6002
      %v6072 = vsel %vm5624, %v5297, %v6004
      %v6073 = vsel %vm5625, %v5298, %v6006
      %v6074 = vsel %vm5626, %v5299, %v6008
      %v6075 = vsel %vm5627, %v5300, %v6010
      %v6076 = vsel %vm5628, %v5301, %v6012
      %v6077 = vsel %vm5308, %v5501, %v6013
      %v6078 = vsel %vm5308, %v5502, %v6014
      %v6079 = vsel %vm5308, %v5503, %v6015
      %v6080 = vsel %vm5308, %v5504, %v6016
      %v6081 = vsel %vm5308, %v5505, %v6017
      %v6082 = vsel %vm5308, %v5506, %v6018
      %v6083 = vsel %vm5308, %v5507, %v6019
      %v6084 = vsel %vm5308, %v5508, %v6020
      %v6085 = vsel %vm5308, %v5509, %v6021
      %v6086 = vsel %vm5308, %v5510, %v6022
      %v6087 = vsel %vm5308, %v5511, %v6023
      %v6088 = vsel %vm5308, %v5512, %v6024
      %v6089 = vsel %vm5308, %v5513, %v6025
      %v6090 = vsel %vm5308, %v5514, %v6026
      %v6091 = vsel %vm5308, %v5515, %v6027
      %v6092 = vsel %vm5308, %v5516, %v6028
      %v6093 = vsel %vm5308, %v5517, %v6029
      %v6094 = vsel %vm5308, %v5518, %v6030
      %v6095 = vsel %vm5308, %v5519, %v6031
      %v6096 = vsel %vm5308, %v5520, %v6032
      %v6097 = vsel %vm5308, %v5521, %v6033
      %v6098 = vsel %vm5308, %v5522, %v6034
      %v6099 = vsel %vm5308, %v5523, %v6035
      %v6100 = vsel %vm5308, %v5524, %v6036
      %v6101 = vsel %vm5308, %v5525, %v6037
      %v6102 = vsel %vm5308, %v5526, %v6038
      %v6103 = vsel %vm5308, %v5527, %v6039
      %v6104 = vsel %vm5308, %v5528, %v6040
      %v6105 = vsel %vm5308, %v5529, %v6041
      %v6106 = vsel %vm5308, %v5530, %v6042
      %v6107 = vsel %vm5308, %v5531, %v6043
      %v6108 = vsel %vm5308, %v5532, %v6044
      %v6109 = vsel %vm5308, %v5533, %v6045
      %v6110 = vsel %vm5308, %v5534, %v6046
      %v6111 = vsel %vm5308, %v5535, %v6047
      %v6112 = vsel %vm5308, %v5536, %v6048
      %v6113 = vsel %vm5308, %v5537, %v6049
      %v6114 = vsel %vm5308, %v5538, %v6050
      %v6115 = vsel %vm5308, %v5539, %v6051
      %v6116 = vsel %vm5308, %v5540, %v6052
      %v6117 = vsel %vm5308, %v5541, %v6053
      %v6118 = vsel %vm5308, %v5542, %v6054
      %v6119 = vsel %vm5308, %v5543, %v6055
      %v6120 = vsel %vm5308, %v5544, %v6056
      %v6121 = vsel %vm5308, %v5545, %v6057
      %v6122 = vsel %vm5308, %v5546, %v6058
      %v6123 = vsel %vm5308, %v5547, %v6059
      %v6124 = vsel %vm5308, %v5548, %v6060
      %v6125 = vsel %vm5308, %v5549, %v6061
      %v6126 = vsel %vm5308, %v5550, %v6062
      %v6127 = vsel %vm5308, %v5551, %v6063
      %v6128 = vsel %vm5308, %v5552, %v6064
      %v6129 = vsel %vm5308, %v5553, %v6065
      %v6130 = vsel %vm5308, %v5554, %v6066
      %v6131 = vsel %vm5308, %v5555, %v6067
      %v6132 = vsel %vm5308, %v5556, %v6068
      %v6133 = vsel %vm5308, %v5557, %v6069
      %v6134 = vsel %vm5308, %v5558, %v6070
      %v6135 = vsel %vm5308, %v5559, %v6071
      %v6136 = vsel %vm5308, %v5560, %v6072
      %v6137 = vsel %vm5308, %v5561, %v6073
      %v6138 = vsel %vm5308, %v5562, %v6074
      %v6139 = vsel %vm5308, %v5563, %v6075
      %v6140 = vsel %vm5308, %v5564, %v6076
      %vm6141 = vcmp.lt.s32.totalorder %v5303, 9
      %v6142 = vsel %vm6141, %v6077, 0.0
      %v6143 = vsel %vm6141, %v6078, 0.0
      %v6144 = vsel %vm6141, %v6079, 0.0
      %v6145 = vsel %vm6141, %v6080, 0.0
      %v6146 = vsel %vm6141, %v6081, 0.0
      %v6147 = vsel %vm6141, %v6082, 0.0
      %v6148 = vsel %vm6141, %v6083, 0.0
      %v6149 = vsel %vm6141, %v6084, 0.0
      %v6150 = vsel %vm6141, %v6085, 0.0
      %v6151 = vsel %vm6141, %v6086, 0.0
      %v6152 = vsel %vm6141, %v6087, 0.0
      %v6153 = vsel %vm6141, %v6088, 0.0
      %v6154 = vsel %vm6141, %v6089, 0.0
      %v6155 = vsel %vm6141, %v6090, 0.0
      %v6156 = vsel %vm6141, %v6091, 0.0
      %v6157 = vsel %vm6141, %v6092, 0.0
      %v6158 = vsel %vm6141, %v6093, 0.0
      %v6159 = vsel %vm6141, %v6094, 0.0
      %v6160 = vsel %vm6141, %v6095, 0.0
      %v6161 = vsel %vm6141, %v6096, 0.0
      %v6162 = vsel %vm6141, %v6097, 0.0
      %v6163 = vsel %vm6141, %v6098, 0.0
      %v6164 = vsel %vm6141, %v6099, 0.0
      %v6165 = vsel %vm6141, %v6100, 0.0
      %v6166 = vsel %vm6141, %v6101, 0.0
      %v6167 = vsel %vm6141, %v6102, 0.0
      %v6168 = vsel %vm6141, %v6103, 0.0
      %v6169 = vsel %vm6141, %v6104, 0.0
      %v6170 = vsel %vm6141, %v6105, 0.0
      %v6171 = vsel %vm6141, %v6106, 0.0
      %v6172 = vsel %vm6141, %v6107, 0.0
      %v6173 = vsel %vm6141, %v6108, 0.0
      %v6174 = vsel %vm6141, %v6109, 0.0
      %v6175 = vsel %vm6141, %v6110, 0.0
      %v6176 = vsel %vm6141, %v6111, 0.0
      %v6177 = vsel %vm6141, %v6112, 0.0
      %v6178 = vsel %vm6141, %v6113, 0.0
      %v6179 = vsel %vm6141, %v6114, 0.0
      %v6180 = vsel %vm6141, %v6115, 0.0
      %v6181 = vsel %vm6141, %v6116, 0.0
      %v6182 = vsel %vm6141, %v6117, 0.0
      %v6183 = vsel %vm6141, %v6118, 0.0
      %v6184 = vsel %vm6141, %v6119, 0.0
      %v6185 = vsel %vm6141, %v6120, 0.0
      %v6186 = vsel %vm6141, %v6121, 0.0
      %v6187 = vsel %vm6141, %v6122, 0.0
      %v6188 = vsel %vm6141, %v6123, 0.0
      %v6189 = vsel %vm6141, %v6124, 0.0
      %v6190 = vsel %vm6141, %v6125, 0.0
      %v6191 = vsel %vm6141, %v6126, 0.0
      %v6192 = vsel %vm6141, %v6127, 0.0
      %v6193 = vsel %vm6141, %v6128, 0.0
      %v6194 = vsel %vm6141, %v6129, 0.0
      %v6195 = vsel %vm6141, %v6130, 0.0
      %v6196 = vsel %vm6141, %v6131, 0.0
      %v6197 = vsel %vm6141, %v6132, 0.0
      %v6198 = vsel %vm6141, %v6133, 0.0
      %v6199 = vsel %vm6141, %v6134, 0.0
      %v6200 = vsel %vm6141, %v6135, 0.0
      %v6201 = vsel %vm6141, %v6136, 0.0
      %v6202 = vsel %vm6141, %v6137, 0.0
      %v6203 = vsel %vm6141, %v6138, 0.0
      %v6204 = vsel %vm6141, %v6139, 0.0
      %v6205 = vsel %vm6141, %v6140, 0.0
      %6206 = vst.msk [vmem:[%s604] sm:$0xff] %vm1908, %v6142
      %6207 = vst.msk [vmem:[%s604 + $0x8] sm:$0xff] %vm1908, %v6143
      %6208 = vst.msk [vmem:[%s604 + $0x10] sm:$0xff] %vm1908, %v6144
      %6209 = vst.msk [vmem:[%s604 + $0x18] sm:$0xff] %vm1908, %v6145
      %6210 = vst.msk [vmem:[%s604 + $0x20] sm:$0xff] %vm1908, %v6146
      %6211 = vst.msk [vmem:[%s604 + $0x28] sm:$0xff] %vm1908, %v6147
      %6212 = vst.msk [vmem:[%s604 + $0x30] sm:$0xff] %vm1908, %v6148
      %6213 = vst.msk [vmem:[%s604 + $0x38] sm:$0xff] %vm1908, %v6149
      %6214 = vst.msk [vmem:[%s604 + $0x40] sm:$0xff] %vm1908, %v6150
      %6215 = vst.msk [vmem:[%s604 + $0x48] sm:$0xff] %vm1908, %v6151
      %6216 = vst.msk [vmem:[%s604 + $0x50] sm:$0xff] %vm1908, %v6152
      %6217 = vst.msk [vmem:[%s604 + $0x58] sm:$0xff] %vm1908, %v6153
      %6218 = vst.msk [vmem:[%s604 + $0x60] sm:$0xff] %vm1908, %v6154
      %6219 = vst.msk [vmem:[%s604 + $0x68] sm:$0xff] %vm1908, %v6155
      %6220 = vst.msk [vmem:[%s604 + $0x70] sm:$0xff] %vm1908, %v6156
      %6221 = vst.msk [vmem:[%s604 + $0x78] sm:$0xff] %vm1908, %v6157
      %6222 = vst.msk [vmem:[%s604 + $0x80] sm:$0xff] %vm1908, %v6158
      %6223 = vst.msk [vmem:[%s604 + $0x88] sm:$0xff] %vm1908, %v6159
      %6224 = vst.msk [vmem:[%s604 + $0x90] sm:$0xff] %vm1908, %v6160
      %6225 = vst.msk [vmem:[%s604 + $0x98] sm:$0xff] %vm1908, %v6161
      %6226 = vst.msk [vmem:[%s604 + $0xa0] sm:$0xff] %vm1908, %v6162
      %6227 = vst.msk [vmem:[%s604 + $0xa8] sm:$0xff] %vm1908, %v6163
      %6228 = vst.msk [vmem:[%s604 + $0xb0] sm:$0xff] %vm1908, %v6164
      %6229 = vst.msk [vmem:[%s604 + $0xb8] sm:$0xff] %vm1908, %v6165
      %6230 = vst.msk [vmem:[%s604 + $0xc0] sm:$0xff] %vm1908, %v6166
      %6231 = vst.msk [vmem:[%s604 + $0xc8] sm:$0xff] %vm1908, %v6167
      %6232 = vst.msk [vmem:[%s604 + $0xd0] sm:$0xff] %vm1908, %v6168
      %6233 = vst.msk [vmem:[%s604 + $0xd8] sm:$0xff] %vm1908, %v6169
      %6234 = vst.msk [vmem:[%s604 + $0xe0] sm:$0xff] %vm1908, %v6170
      %6235 = vst.msk [vmem:[%s604 + $0xe8] sm:$0xff] %vm1908, %v6171
      %6236 = vst.msk [vmem:[%s604 + $0xf0] sm:$0xff] %vm1908, %v6172
      %6237 = vst.msk [vmem:[%s604 + $0xf8] sm:$0xff] %vm1908, %v6173
      %6238 = vst.msk [vmem:[%s604 + $0x100] sm:$0xff] %vm1908, %v6174
      %6239 = vst.msk [vmem:[%s604 + $0x108] sm:$0xff] %vm1908, %v6175
      %6240 = vst.msk [vmem:[%s604 + $0x110] sm:$0xff] %vm1908, %v6176
      %6241 = vst.msk [vmem:[%s604 + $0x118] sm:$0xff] %vm1908, %v6177
      %6242 = vst.msk [vmem:[%s604 + $0x120] sm:$0xff] %vm1908, %v6178
      %6243 = vst.msk [vmem:[%s604 + $0x128] sm:$0xff] %vm1908, %v6179
      %6244 = vst.msk [vmem:[%s604 + $0x130] sm:$0xff] %vm1908, %v6180
      %6245 = vst.msk [vmem:[%s604 + $0x138] sm:$0xff] %vm1908, %v6181
      %6246 = vst.msk [vmem:[%s604 + $0x140] sm:$0xff] %vm1908, %v6182
      %6247 = vst.msk [vmem:[%s604 + $0x148] sm:$0xff] %vm1908, %v6183
      %6248 = vst.msk [vmem:[%s604 + $0x150] sm:$0xff] %vm1908, %v6184
      %6249 = vst.msk [vmem:[%s604 + $0x158] sm:$0xff] %vm1908, %v6185
      %6250 = vst.msk [vmem:[%s604 + $0x160] sm:$0xff] %vm1908, %v6186
      %6251 = vst.msk [vmem:[%s604 + $0x168] sm:$0xff] %vm1908, %v6187
      %6252 = vst.msk [vmem:[%s604 + $0x170] sm:$0xff] %vm1908, %v6188
      %6253 = vst.msk [vmem:[%s604 + $0x178] sm:$0xff] %vm1908, %v6189
      %6254 = vst.msk [vmem:[%s604 + $0x180] sm:$0xff] %vm1908, %v6190
      %6255 = vst.msk [vmem:[%s604 + $0x188] sm:$0xff] %vm1908, %v6191
      %6256 = vst.msk [vmem:[%s604 + $0x190] sm:$0xff] %vm1908, %v6192
      %6257 = vst.msk [vmem:[%s604 + $0x198] sm:$0xff] %vm1908, %v6193
      %6258 = vst.msk [vmem:[%s604 + $0x1a0] sm:$0xff] %vm1908, %v6194
      %6259 = vst.msk [vmem:[%s604 + $0x1a8] sm:$0xff] %vm1908, %v6195
      %6260 = vst.msk [vmem:[%s604 + $0x1b0] sm:$0xff] %vm1908, %v6196
      %6261 = vst.msk [vmem:[%s604 + $0x1b8] sm:$0xff] %vm1908, %v6197
      %6262 = vst.msk [vmem:[%s604 + $0x1c0] sm:$0xff] %vm1908, %v6198
      %6263 = vst.msk [vmem:[%s604 + $0x1c8] sm:$0xff] %vm1908, %v6199
      %6264 = vst.msk [vmem:[%s604 + $0x1d0] sm:$0xff] %vm1908, %v6200
      %6265 = vst.msk [vmem:[%s604 + $0x1d8] sm:$0xff] %vm1908, %v6201
      %6266 = vst.msk [vmem:[%s604 + $0x1e0] sm:$0xff] %vm1908, %v6202
      %6267 = vst.msk [vmem:[%s604 + $0x1e8] sm:$0xff] %vm1908, %v6203
      %6268 = vst.msk [vmem:[%s604 + $0x1f0] sm:$0xff] %vm1908, %v6204
      %6269 = vst.msk [vmem:[%s604 + $0x1f8] sm:$0xff] %vm1908, %v6205
      %s6270 = smul.u32 64, %s30
      %p6271 = scmp.lt.s32.totalorder %s6270, 127
      %s6272 = scalar_select %p6271, %s6270, 127
      %s6273 = smul.addr %s6272, 8
      %s6274 = scalar_lea.vmem %s19, %s6273
      // Predicated region
      $region97: #{nerf_forward_pallas.1} parent=95 // pred_check
        %p6275 = pneg %p452
      $region98: #{nerf_forward_pallas.1} parent=95 // pred_check_branch
        %6277 = sbr.rel (%p6275) target = $region100
      $region99: #{nerf_forward_pallas.1} parent=95 // pred_region
        %s6278 = smul.u32 64, %s30
      $region100: #{nerf_forward_pallas.1} parent=95 // pred_fallthru
        _
    $region96: #{nerf_forward_pallas.1} parent=5 // pred_fallthru
      _
    %p6279 = scmp.le.s32.totalorder 2, %s25
    // Predicated region
    $region101: #{nerf_forward_pallas.1} parent=5 // pred_check
      %p6280 = pneg %p6279
    $region102: #{nerf_forward_pallas.1} parent=5 // pred_check_branch
      %6282 = sbr.rel (%p6280) target = $region104
    $region103: #{nerf_forward_pallas.1} parent=5 // pred_region
      %s6283 = ssub.s32 %s25, 2
      // Predicated region
      $region105: #{nerf_forward_pallas.1} parent=103 // pred_check
        %p6284 = pneg %p458
      $region106: #{nerf_forward_pallas.1} parent=103 // pred_check_branch
        %6286 = sbr.rel (%p6284) target = $region108
      $region107: #{nerf_forward_pallas.1} parent=103 // pred_region
        %s6287 = smul.u32 64, %s31
        %p6288 = scmp.lt.s32.totalorder %s6287, 127
        %s6289 = scalar_select %p6288, %s6287, 127
        %s6290 = smul.addr %s6289, 8
        %s6291 = scalar_lea.vmem %s19, %s6290
      $region108: #{nerf_forward_pallas.1} parent=103 // pred_fallthru
        _
    $region104: #{nerf_forward_pallas.1} parent=5 // pred_fallthru
      _
  $region6: #{nerf_forward_pallas.1} parent=0 // loop_footer
    %s29 = sadd.s32 1, %s25
  $region7: #{nerf_forward_pallas.1} parent=0 // loop_footer_branch
    %24 = sbr.rel target = $region3
  $region8: #{nerf_forward_pallas.1} parent=0 // loop_exit
    _

</llo_original>
